<compile_context>
chip_gen: v5e
topology: v5e:2x2
jax: 0.10.0
libtpu: 0.0.40
codegen_flags: <defaults>
</compile_context>

<pallas_src>
import functools

import jax
import jax.numpy as jnp
from jax.experimental import pallas as pl
from jax.experimental.pallas import tpu as pltpu


# ----------------------------------------------------------------------------
# Scaled-down dims (original: noise=100, H1=512, H2=65536, OUT=16384)
# ----------------------------------------------------------------------------
NOISE_DIM = 128
H1 = 256
H2 = 512
IMG = 16
OUT = 1 * IMG * IMG          # 256 -> lane-dense (multiple of 128)
BN_EPS = 1e-5


# ----------------------------------------------------------------------------
# One fused kernel: Linear+LeakyReLU -> Linear -> BN(train)+LeakyReLU
#                   -> Linear+Tanh
# Everything (weights + activations) is a whole-array VMEM block; no grid.
# Matmul operands are bf16 (MXU fast path, half the weight DMA); accumulation
# and all elementwise math are f32.
# ----------------------------------------------------------------------------
def _generator_kernel(z_ref, w1_ref, b1_ref, w2_ref, b2_ref,
                      g_ref, be_ref, w3_ref, b3_ref, o_ref, *, eps):
    z = z_ref[...].astype(jnp.bfloat16)

    # Linear(noise -> H1) + LeakyReLU(0.2)
    h = jnp.dot(z, w1_ref[...], preferred_element_type=jnp.float32) + b1_ref[...]
    h = jnp.maximum(h, 0.2 * h)

    # Linear(H1 -> H2)
    h = jnp.dot(h.astype(jnp.bfloat16), w2_ref[...],
                preferred_element_type=jnp.float32) + b2_ref[...]

    # BatchNorm1d, training mode: biased batch variance, eps inside rsqrt,
    # affine gamma/beta. Batch reduction is a within-block sublane reduce
    # over the FULL batch (resident in this single block).
    mean = jnp.mean(h, axis=0, keepdims=True)
    diff = h - mean
    var = jnp.mean(diff * diff, axis=0, keepdims=True)
    h = diff * jax.lax.rsqrt(var + eps)
    h = h * g_ref[...] + be_ref[...]

    # LeakyReLU(0.2)
    h = jnp.maximum(h, 0.2 * h)

    # Linear(H2 -> OUT) + Tanh
    y = jnp.dot(h.astype(jnp.bfloat16), w3_ref[...],
                preferred_element_type=jnp.float32) + b3_ref[...]
    o_ref[...] = jnp.tanh(y).astype(o_ref.dtype)


def generator_pallas(z, params):
    B = z.shape[0]
    vmem = pl.BlockSpec(memory_space=pltpu.MemorySpace.VMEM)

    flops = 2 * B * (NOISE_DIM * H1 + H1 * H2 + H2 * OUT)
    weight_bytes = 2 * (NOISE_DIM * H1 + H1 * H2 + H2 * OUT)   # bf16 weights
    bias_bytes = 4 * (H1 + H2 + OUT + 2 * H2)                  # f32 biases + gamma/beta
    io_bytes = 4 * B * (NOISE_DIM + OUT)                       # f32 z in, f32 img out
    cost = pl.CostEstimate(
        flops=flops,
        transcendentals=B * OUT + H2,          # tanh + rsqrt
        bytes_accessed=weight_bytes + bias_bytes + io_bytes,
    )

    return pl.pallas_call(
        functools.partial(_generator_kernel, eps=BN_EPS),
        out_shape=jax.ShapeDtypeStruct((B, OUT), z.dtype),
        in_specs=[vmem] * 9,
        out_specs=vmem,
        cost_estimate=cost,
    )(z, params["w1t"], params["b1"], params["w2t"], params["b2"],
      params["gamma"], params["beta"], params["w3t"], params["b3"])


# ----------------------------------------------------------------------------
# Params: weights pre-transposed as (in, out) so kernels do x @ Wt + b.
# Weights stored in bf16 (matmul operands); biases / BN affine stay f32.
# ----------------------------------------------------------------------------
def init_params(key):
    ks = jax.random.split(key, 6)

    def lin(kw, kb, fan_in, fan_out):
        bound = 1.0 / jnp.sqrt(fan_in)
        wt = jax.random.uniform(kw, (fan_in, fan_out), jnp.float32, -bound, bound)
        b = jax.random.uniform(kb, (1, fan_out), jnp.float32, -bound, bound)
        return wt.astype(jnp.bfloat16), b

    w1t, b1 = lin(ks[0], ks[1], NOISE_DIM, H1)
    w2t, b2 = lin(ks[2], ks[3], H1, H2)
    w3t, b3 = lin(ks[4], ks[5], H2, OUT)
    gamma = jnp.ones((1, H2), jnp.float32)    # BatchNorm affine init
    beta = jnp.zeros((1, H2), jnp.float32)
    return dict(w1t=w1t, b1=b1, w2t=w2t, b2=b2, gamma=gamma, beta=beta,
                w3t=w3t, b3=b3)


@jax.jit
def generator_forward(z, params):
    img = generator_pallas(z, params)
    # NCHW view, matches PyTorch img.view(B, 1, H, W); kept in plain JAX so
    # the kernel output stays lane-dense.
    return img.reshape(z.shape[0], 1, IMG, IMG)


def _reference_forward(z, p):
    # Reference uses the same bf16 matmul operands / f32 accumulation so the
    # tolerance check stays tight.
    def mm(x, wt):
        return jnp.dot(x.astype(jnp.bfloat16), wt,
                       preferred_element_type=jnp.float32)

    h = mm(z, p["w1t"]) + p["b1"]
    h = jnp.maximum(h, 0.2 * h)
    h = mm(h, p["w2t"]) + p["b2"]
    m = jnp.mean(h, axis=0, keepdims=True)
    v = jnp.mean((h - m) ** 2, axis=0, keepdims=True)
    h = (h - m) / jnp.sqrt(v + BN_EPS) * p["gamma"] + p["beta"]
    h = jnp.maximum(h, 0.2 * h)
    h = jnp.tanh(mm(h, p["w3t"]) + p["b3"])
    return h.reshape(z.shape[0], 1, IMG, IMG)


if __name__ == "__main__":
    key = jax.random.PRNGKey(0)
    k_z, k_p = jax.random.split(key)
    B = 256   # M >= 256 fills the 256-wide MXU on v6e/v7x (and 2x128 on v5e)
    z = jax.random.normal(k_z, (B, NOISE_DIM), jnp.float32)
    params = init_params(k_p)

    img = generator_forward(z, params)
    jax.block_until_ready(img)

    ref = _reference_forward(z, params)
    assert img.shape == (B, 1, IMG, IMG)
    assert jnp.allclose(img, ref, atol=1e-2, rtol=1e-2)

    print("KERNEL_OK")
</pallas_src>

<mosaic_0001>
module attributes {stable_mosaic.version = 11 : i64} {
  func.func @_generator_kernel(%arg0: memref<256x128xf32, #tpu.memory_space<vmem>>, %arg1: memref<128x256xbf16, #tpu.memory_space<vmem>>, %arg2: memref<1x256xf32, #tpu.memory_space<vmem>>, %arg3: memref<256x512xbf16, #tpu.memory_space<vmem>>, %arg4: memref<1x512xf32, #tpu.memory_space<vmem>>, %arg5: memref<1x512xf32, #tpu.memory_space<vmem>>, %arg6: memref<1x512xf32, #tpu.memory_space<vmem>>, %arg7: memref<512x256xbf16, #tpu.memory_space<vmem>>, %arg8: memref<1x256xf32, #tpu.memory_space<vmem>>, %arg9: memref<256x256xf32, #tpu.memory_space<vmem>>) attributes {dimension_semantics = [], scalar_prefetch = 0 : i64, scratch_operands = 0 : i64, tpu.core_type = #tpu.core_type<tc>} {
    %c0 = arith.constant 0 : index
    %c0_0 = arith.constant 0 : index
    %0 = vector.load %arg0[%c0, %c0_0] : memref<256x128xf32, #tpu.memory_space<vmem>>, vector<256x128xf32>
    %1 = arith.truncf %0 : vector<256x128xf32> to vector<256x128xbf16>
    %c0_1 = arith.constant 0 : index
    %c0_2 = arith.constant 0 : index
    %2 = vector.load %arg1[%c0_1, %c0_2] : memref<128x256xbf16, #tpu.memory_space<vmem>>, vector<128x256xbf16>
    %cst = arith.constant dense<0.000000e+00> : vector<256x256xf32>
    %3 = tpu.matmul %1, %2, %cst {dimension_numbers = #tpu.dot_dimension_numbers<[1], [0], [0], [1], [0, 0, 1, 1], [], []>} : vector<256x128xbf16>, vector<128x256xbf16>, vector<256x256xf32> -> vector<256x256xf32>
    %c0_3 = arith.constant 0 : index
    %c0_4 = arith.constant 0 : index
    %4 = vector.load %arg2[%c0_3, %c0_4] : memref<1x256xf32, #tpu.memory_space<vmem>>, vector<1x256xf32>
    %5 = vector.broadcast %4 : vector<1x256xf32> to vector<256x256xf32>
    %6 = arith.addf %3, %5 : vector<256x256xf32>
    %cst_5 = arith.constant 2.000000e-01 : f32
    %7 = vector.broadcast %cst_5 : f32 to vector<256x256xf32>
    %8 = arith.mulf %7, %6 : vector<256x256xf32>
    %9 = arith.maximumf %6, %8 : vector<256x256xf32>
    %10 = arith.truncf %9 : vector<256x256xf32> to vector<256x256xbf16>
    %c0_6 = arith.constant 0 : index
    %c0_7 = arith.constant 0 : index
    %11 = vector.load %arg3[%c0_6, %c0_7] : memref<256x512xbf16, #tpu.memory_space<vmem>>, vector<256x512xbf16>
    %cst_8 = arith.constant dense<0.000000e+00> : vector<256x512xf32>
    %12 = tpu.matmul %10, %11, %cst_8 {dimension_numbers = #tpu.dot_dimension_numbers<[1], [0], [0], [1], [0, 0, 1, 1], [], []>} : vector<256x256xbf16>, vector<256x512xbf16>, vector<256x512xf32> -> vector<256x512xf32>
    %c0_9 = arith.constant 0 : index
    %c0_10 = arith.constant 0 : index
    %13 = vector.load %arg4[%c0_9, %c0_10] : memref<1x512xf32, #tpu.memory_space<vmem>>, vector<1x512xf32>
    %14 = vector.broadcast %13 : vector<1x512xf32> to vector<256x512xf32>
    %15 = arith.addf %12, %14 : vector<256x512xf32>
    %cst_11 = arith.constant dense<0.000000e+00> : vector<512xf32>
    %16 = vector.multi_reduction <add>, %15, %cst_11 [0] : vector<256x512xf32> to vector<512xf32>
    %17 = vector.shape_cast %16 : vector<512xf32> to vector<1x512xf32>
    %cst_12 = arith.constant 2.560000e+02 : f32
    %18 = vector.broadcast %cst_12 : f32 to vector<1x512xf32>
    %19 = arith.divf %17, %18 : vector<1x512xf32>
    %20 = vector.broadcast %19 : vector<1x512xf32> to vector<256x512xf32>
    %21 = arith.subf %15, %20 : vector<256x512xf32>
    %22 = arith.mulf %21, %21 : vector<256x512xf32>
    %cst_13 = arith.constant dense<0.000000e+00> : vector<512xf32>
    %23 = vector.multi_reduction <add>, %22, %cst_13 [0] : vector<256x512xf32> to vector<512xf32>
    %24 = vector.shape_cast %23 : vector<512xf32> to vector<1x512xf32>
    %cst_14 = arith.constant 2.560000e+02 : f32
    %25 = vector.broadcast %cst_14 : f32 to vector<1x512xf32>
    %26 = arith.divf %24, %25 : vector<1x512xf32>
    %cst_15 = arith.constant 9.99999974E-6 : f32
    %27 = vector.broadcast %cst_15 : f32 to vector<1x512xf32>
    %28 = arith.addf %26, %27 : vector<1x512xf32>
    %29 = math.rsqrt %28 : vector<1x512xf32>
    %30 = vector.broadcast %29 : vector<1x512xf32> to vector<256x512xf32>
    %31 = arith.mulf %21, %30 : vector<256x512xf32>
    %c0_16 = arith.constant 0 : index
    %c0_17 = arith.constant 0 : index
    %32 = vector.load %arg5[%c0_16, %c0_17] : memref<1x512xf32, #tpu.memory_space<vmem>>, vector<1x512xf32>
    %33 = vector.broadcast %32 : vector<1x512xf32> to vector<256x512xf32>
    %34 = arith.mulf %31, %33 : vector<256x512xf32>
    %c0_18 = arith.constant 0 : index
    %c0_19 = arith.constant 0 : index
    %35 = vector.load %arg6[%c0_18, %c0_19] : memref<1x512xf32, #tpu.memory_space<vmem>>, vector<1x512xf32>
    %36 = vector.broadcast %35 : vector<1x512xf32> to vector<256x512xf32>
    %37 = arith.addf %34, %36 : vector<256x512xf32>
    %cst_20 = arith.constant 2.000000e-01 : f32
    %38 = vector.broadcast %cst_20 : f32 to vector<256x512xf32>
    %39 = arith.mulf %38, %37 : vector<256x512xf32>
    %40 = arith.maximumf %37, %39 : vector<256x512xf32>
    %41 = arith.truncf %40 : vector<256x512xf32> to vector<256x512xbf16>
    %c0_21 = arith.constant 0 : index
    %c0_22 = arith.constant 0 : index
    %42 = vector.load %arg7[%c0_21, %c0_22] : memref<512x256xbf16, #tpu.memory_space<vmem>>, vector<512x256xbf16>
    %cst_23 = arith.constant dense<0.000000e+00> : vector<256x256xf32>
    %43 = tpu.matmul %41, %42, %cst_23 {dimension_numbers = #tpu.dot_dimension_numbers<[1], [0], [0], [1], [0, 0, 1, 1], [], []>} : vector<256x512xbf16>, vector<512x256xbf16>, vector<256x256xf32> -> vector<256x256xf32>
    %c0_24 = arith.constant 0 : index
    %c0_25 = arith.constant 0 : index
    %44 = vector.load %arg8[%c0_24, %c0_25] : memref<1x256xf32, #tpu.memory_space<vmem>>, vector<1x256xf32>
    %45 = vector.broadcast %44 : vector<1x256xf32> to vector<256x256xf32>
    %46 = arith.addf %43, %45 : vector<256x256xf32>
    %47 = math.tanh %46 : vector<256x256xf32>
    %c0_26 = arith.constant 0 : index
    %c0_27 = arith.constant 0 : index
    %48 = vector.load %arg9[%c0_26, %c0_27] : memref<256x256xf32, #tpu.memory_space<vmem>>, vector<256x256xf32>
    tpu.vector_store %arg9[%c0_26, %c0_27], %47 {strides = array<i32>} : memref<256x256xf32, #tpu.memory_space<vmem>>, vector<256x256xf32>,
    return
  }
}

</mosaic_0001>

<llo_original>
// kernel: generator_forward.1
$region0: #{generator_forward.1}
  #allocation0 [shape = 'u32[]', space=smem, size = 0x4, offset = 0x4, fixed_abs, tag = 'smem constant byte address 0x4 - core index']
  #allocation1 [shape = 'u32[72,128]{1,0:T(1,128)}', space=vmem, size = 0x9000, scoped, tag = 'internal scratch']
  %s0 = inlined_call_operand.hbm [shape: f32[256,128], index: 0, kind: input, shape index: {}]
  %s1 = inlined_call_operand.hbm [shape: bf16[128,256], index: 1, kind: input, shape index: {}]
  %s2 = inlined_call_operand.hbm [shape: f32[1,256], index: 2, kind: input, shape index: {}]
  %s3 = inlined_call_operand.hbm [shape: bf16[256,512], index: 3, kind: input, shape index: {}]
  %s4 = inlined_call_operand.hbm [shape: f32[1,512], index: 4, kind: input, shape index: {}]
  %s5 = inlined_call_operand.vmem [shape: f32[1,512], index: 5, kind: input, shape index: {}]
  %s6 = inlined_call_operand.hbm [shape: f32[1,512], index: 6, kind: input, shape index: {}]
  %s7 = inlined_call_operand.hbm [shape: bf16[512,256], index: 7, kind: input, shape index: {}]
  %s8 = inlined_call_operand.hbm [shape: f32[1,256], index: 8, kind: input, shape index: {}]
  %s9 = inlined_call_operand.vmem [shape: f32[256,256], index: 9, kind: output, shape index: {}]
  %s10 = sld [smem:[#allocation0]]
  $region78: #{generator_forward.1} parent=0
    _
  %s12 = ssub.s32 1, %s10
  %s13 = scalar_select 0, %s12, %s10
  $region1: #{generator_forward.1} parent=0
    #allocation2 [shape = 'u8[131072]{0}', space=vmem, size = 0x20000, scoped, tag = 'input window, operand 0, single buffered']
    #allocation3 [shape = 's32[1]{0}', space=sflag, size = 0x4, scoped, tag = 'scoped memory for generator_forward.1']
    #allocation4 [shape = 'u8[65536]{0}', space=vmem, size = 0x10000, scoped, tag = 'input window, operand 1, single buffered']
    #allocation5 [shape = 's32[1]{0}', space=sflag, size = 0x4, scoped, tag = 'scoped memory for generator_forward.1']
    #allocation6 [shape = 'u8[1024]{0}', space=vmem, size = 0x400, scoped, tag = 'input window, operand 2, single buffered']
    #allocation7 [shape = 'u8[262144]{0}', space=vmem, size = 0x40000, scoped, tag = 'input window, operand 3, single buffered']
    #allocation8 [shape = 's32[1]{0}', space=sflag, size = 0x4, scoped, tag = 'scoped memory for generator_forward.1']
    #allocation9 [shape = 'u8[2048]{0}', space=vmem, size = 0x800, scoped, tag = 'input window, operand 4, single buffered']
    #allocation10 [shape = 'u8[2048]{0}', space=vmem, size = 0x800, scoped, tag = 'input window, operand 6, single buffered']
    #allocation11 [shape = 's32[1]{0}', space=sflag, size = 0x4, scoped, tag = 'scoped memory for generator_forward.1']
    #allocation12 [shape = 'u8[262144]{0}', space=vmem, size = 0x40000, scoped, tag = 'input window, operand 7, single buffered']
    #allocation13 [shape = 'u8[1024]{0}', space=vmem, size = 0x400, scoped, tag = 'input window, operand 8, single buffered']
    #allocation14 [shape = 's32[1]{0}', space=sflag, size = 0x4, scoped, tag = 'scoped memory for generator_forward.1']
    %14 = vsyncpa [#allocation3], 0
    %15 = vsyncpa [#allocation5], 0
    %16 = vsyncpa [#allocation8], 0
    %17 = vsyncpa [#allocation11], 0
    %18 = vsyncpa [#allocation14], 0
    // Predicated region
    $region2: #{generator_forward.1} parent=1 // pred_check
      _
    $region3: #{generator_forward.1} parent=1 // pred_check_branch
      %20 = sbr.rel (0) target = $region5
    $region4: #{generator_forward.1} parent=1 // pred_region
      %22 = vsyncadd [#allocation3], 0
      %s23 = sshll.u32 %s0, 4
      %s24 = int_to_ptr.hbm [resolvable:$true] %s23
      %s25 = sshll.u32 [#allocation2], 4
      %s26 = int_to_ptr.vmem [resolvable:$true] %s25
      %31 = dma.hbm_to_vmem [thread:$0]  %s24, 4096, %s26, [#allocation3], 128, 128, 8
    $region5: #{generator_forward.1} parent=1 // pred_fallthru
      _
    // Predicated region
    $region6: #{generator_forward.1} parent=1 // pred_check
      _
    $region7: #{generator_forward.1} parent=1 // pred_check_branch
      %33 = sbr.rel (0) target = $region9
    $region8: #{generator_forward.1} parent=1 // pred_region
      %35 = vsyncadd [#allocation5], 0
      %s36 = sshll.u32 %s1, 4
      %s37 = int_to_ptr.hbm [resolvable:$true] %s36
      %s38 = sshll.u32 [#allocation4], 4
      %s39 = int_to_ptr.vmem [resolvable:$true] %s38
      %44 = dma.hbm_to_vmem [thread:$0]  %s37, 2048, %s39, [#allocation5], 128, 128, 8
    $region9: #{generator_forward.1} parent=1 // pred_fallthru
      _
    // Predicated region
    $region10: #{generator_forward.1} parent=1 // pred_check
      _
    $region11: #{generator_forward.1} parent=1 // pred_check_branch
      %46 = sbr.rel (0) target = $region13
    $region12: #{generator_forward.1} parent=1 // pred_region
      %48 = vsyncadd [#allocation5], 0
      %s50 = sshll.u32 %s2, 4
      %s51 = int_to_ptr.hbm [resolvable:$true] %s50
      %s52 = sshll.u32 [#allocation6], 4
      %s53 = int_to_ptr.vmem [resolvable:$true] %s52
      %55 = dma.hbm_to_vmem [thread:$0]  %s51, 32, %s53, [#allocation5]
    $region13: #{generator_forward.1} parent=1 // pred_fallthru
      _
    // Predicated region
    $region14: #{generator_forward.1} parent=1 // pred_check
      _
    $region15: #{generator_forward.1} parent=1 // pred_check_branch
      %57 = sbr.rel (0) target = $region17
    $region16: #{generator_forward.1} parent=1 // pred_region
      %59 = vsyncadd [#allocation8], 0
      %s60 = sshll.u32 %s3, 4
      %s61 = int_to_ptr.hbm [resolvable:$true] %s60
      %s62 = sshll.u32 [#allocation7], 4
      %s63 = int_to_ptr.vmem [resolvable:$true] %s62
      %68 = dma.hbm_to_vmem [thread:$0]  %s61, 8192, %s63, [#allocation8], 256, 256, 16
    $region17: #{generator_forward.1} parent=1 // pred_fallthru
      _
    // Predicated region
    $region18: #{generator_forward.1} parent=1 // pred_check
      _
    $region19: #{generator_forward.1} parent=1 // pred_check_branch
      %70 = sbr.rel (0) target = $region21
    $region20: #{generator_forward.1} parent=1 // pred_region
      %72 = vsyncadd [#allocation8], 0
      %s74 = sshll.u32 %s4, 4
      %s75 = int_to_ptr.hbm [resolvable:$true] %s74
      %s76 = sshll.u32 [#allocation9], 4
      %s77 = int_to_ptr.vmem [resolvable:$true] %s76
      %79 = dma.hbm_to_vmem [thread:$0]  %s75, 64, %s77, [#allocation8]
    $region21: #{generator_forward.1} parent=1 // pred_fallthru
      _
    // Predicated region
    $region22: #{generator_forward.1} parent=1 // pred_check
      _
    $region23: #{generator_forward.1} parent=1 // pred_check_branch
      %81 = sbr.rel (0) target = $region25
    $region24: #{generator_forward.1} parent=1 // pred_region
      _
    $region25: #{generator_forward.1} parent=1 // pred_fallthru
      _
    // Predicated region
    $region26: #{generator_forward.1} parent=1 // pred_check
      _
    $region27: #{generator_forward.1} parent=1 // pred_check_branch
      %83 = sbr.rel (0) target = $region29
    $region28: #{generator_forward.1} parent=1 // pred_region
      %85 = vsyncadd [#allocation11], 0
      %s87 = sshll.u32 %s6, 4
      %s88 = int_to_ptr.hbm [resolvable:$true] %s87
      %s89 = sshll.u32 [#allocation10], 4
      %s90 = int_to_ptr.vmem [resolvable:$true] %s89
      %92 = dma.hbm_to_vmem [thread:$0]  %s88, 64, %s90, [#allocation11]
    $region29: #{generator_forward.1} parent=1 // pred_fallthru
      _
    // Predicated region
    $region30: #{generator_forward.1} parent=1 // pred_check
      _
    $region31: #{generator_forward.1} parent=1 // pred_check_branch
      %94 = sbr.rel (0) target = $region33
    $region32: #{generator_forward.1} parent=1 // pred_region
      %96 = vsyncadd [#allocation11], 0
      %s97 = sshll.u32 %s7, 4
      %s98 = int_to_ptr.hbm [resolvable:$true] %s97
      %s99 = sshll.u32 [#allocation12], 4
      %s100 = int_to_ptr.vmem [resolvable:$true] %s99
      %105 = dma.hbm_to_vmem [thread:$0]  %s98, 8192, %s100, [#allocation11], 128, 128, 8
    $region33: #{generator_forward.1} parent=1 // pred_fallthru
      _
    // Predicated region
    $region34: #{generator_forward.1} parent=1 // pred_check
      _
    $region35: #{generator_forward.1} parent=1 // pred_check_branch
      %107 = sbr.rel (0) target = $region37
    $region36: #{generator_forward.1} parent=1 // pred_region
      %109 = vsyncadd [#allocation14], 0
      %s111 = sshll.u32 %s8, 4
      %s112 = int_to_ptr.hbm [resolvable:$true] %s111
      %s113 = sshll.u32 [#allocation13], 4
      %s114 = int_to_ptr.vmem [resolvable:$true] %s113
      %116 = dma.hbm_to_vmem [thread:$0]  %s112, 32, %s114, [#allocation14]
    $region37: #{generator_forward.1} parent=1 // pred_fallthru
      _
    // Predicated region
    $region38: #{generator_forward.1} parent=1 // pred_check
      _
    $region39: #{generator_forward.1} parent=1 // pred_check_branch
      %118 = sbr.rel (0) target = $region41
    $region40: #{generator_forward.1} parent=1 // pred_region
      %120 = dma.done [#allocation3], 4096
    $region41: #{generator_forward.1} parent=1 // pred_fallthru
      _
    // Predicated region
    $region42: #{generator_forward.1} parent=1 // pred_check
      _
    $region43: #{generator_forward.1} parent=1 // pred_check_branch
      %122 = sbr.rel (0) target = $region45
    $region44: #{generator_forward.1} parent=1 // pred_region
      %124 = dma.done [#allocation5], 2048
    $region45: #{generator_forward.1} parent=1 // pred_fallthru
      _
    // Predicated region
    $region46: #{generator_forward.1} parent=1 // pred_check
      _
    $region47: #{generator_forward.1} parent=1 // pred_check_branch
      %126 = sbr.rel (0) target = $region49
    $region48: #{generator_forward.1} parent=1 // pred_region
      %128 = dma.done [#allocation5], 32
    $region49: #{generator_forward.1} parent=1 // pred_fallthru
      _
    // Predicated region
    $region50: #{generator_forward.1} parent=1 // pred_check
      _
    $region51: #{generator_forward.1} parent=1 // pred_check_branch
      %130 = sbr.rel (0) target = $region53
    $region52: #{generator_forward.1} parent=1 // pred_region
      %132 = dma.done [#allocation8], 8192
    $region53: #{generator_forward.1} parent=1 // pred_fallthru
      _
    // Predicated region
    $region54: #{generator_forward.1} parent=1 // pred_check
      _
    $region55: #{generator_forward.1} parent=1 // pred_check_branch
      %134 = sbr.rel (0) target = $region57
    $region56: #{generator_forward.1} parent=1 // pred_region
      %136 = dma.done [#allocation8], 64
    $region57: #{generator_forward.1} parent=1 // pred_fallthru
      _
    // Predicated region
    $region58: #{generator_forward.1} parent=1 // pred_check
      _
    $region59: #{generator_forward.1} parent=1 // pred_check_branch
      %138 = sbr.rel (0) target = $region61
    $region60: #{generator_forward.1} parent=1 // pred_region
      %140 = dma.done [#allocation11], 64
    $region61: #{generator_forward.1} parent=1 // pred_fallthru
      _
    // Predicated region
    $region62: #{generator_forward.1} parent=1 // pred_check
      _
    $region63: #{generator_forward.1} parent=1 // pred_check_branch
      %142 = sbr.rel (0) target = $region65
    $region64: #{generator_forward.1} parent=1 // pred_region
      %144 = dma.done [#allocation11], 8192
    $region65: #{generator_forward.1} parent=1 // pred_fallthru
      _
    // Predicated region
    $region66: #{generator_forward.1} parent=1 // pred_check
      _
    $region67: #{generator_forward.1} parent=1 // pred_check_branch
      %146 = sbr.rel (0) target = $region69
    $region68: #{generator_forward.1} parent=1 // pred_region
      %148 = dma.done [#allocation14], 32
    $region69: #{generator_forward.1} parent=1 // pred_fallthru
      _
    %v149 = vld [vmem:[#allocation2] sm:$0xff]
    %v150 = vld [vmem:[#allocation2 + $0x8] sm:$0xff]
    %v151 = vld [vmem:[#allocation2 + $0x10] sm:$0xff]
    %v152 = vld [vmem:[#allocation2 + $0x18] sm:$0xff]
    %v153 = vld [vmem:[#allocation2 + $0x20] sm:$0xff]
    %v154 = vld [vmem:[#allocation2 + $0x28] sm:$0xff]
    %v155 = vld [vmem:[#allocation2 + $0x30] sm:$0xff]
    %v156 = vld [vmem:[#allocation2 + $0x38] sm:$0xff]
    %v157 = vld [vmem:[#allocation2 + $0x40] sm:$0xff]
    %v158 = vld [vmem:[#allocation2 + $0x48] sm:$0xff]
    %v159 = vld [vmem:[#allocation2 + $0x50] sm:$0xff]
    %v160 = vld [vmem:[#allocation2 + $0x58] sm:$0xff]
    %v161 = vld [vmem:[#allocation2 + $0x60] sm:$0xff]
    %v162 = vld [vmem:[#allocation2 + $0x68] sm:$0xff]
    %v163 = vld [vmem:[#allocation2 + $0x70] sm:$0xff]
    %v164 = vld [vmem:[#allocation2 + $0x78] sm:$0xff]
    %v165 = vld [vmem:[#allocation2 + $0x80] sm:$0xff]
    %v166 = vld [vmem:[#allocation2 + $0x88] sm:$0xff]
    %v167 = vld [vmem:[#allocation2 + $0x90] sm:$0xff]
    %v168 = vld [vmem:[#allocation2 + $0x98] sm:$0xff]
    %v169 = vld [vmem:[#allocation2 + $0xa0] sm:$0xff]
    %v170 = vld [vmem:[#allocation2 + $0xa8] sm:$0xff]
    %v171 = vld [vmem:[#allocation2 + $0xb0] sm:$0xff]
    %v172 = vld [vmem:[#allocation2 + $0xb8] sm:$0xff]
    %v173 = vld [vmem:[#allocation2 + $0xc0] sm:$0xff]
    %v174 = vld [vmem:[#allocation2 + $0xc8] sm:$0xff]
    %v175 = vld [vmem:[#allocation2 + $0xd0] sm:$0xff]
    %v176 = vld [vmem:[#allocation2 + $0xd8] sm:$0xff]
    %v177 = vld [vmem:[#allocation2 + $0xe0] sm:$0xff]
    %v178 = vld [vmem:[#allocation2 + $0xe8] sm:$0xff]
    %v179 = vld [vmem:[#allocation2 + $0xf0] sm:$0xff]
    %v180 = vld [vmem:[#allocation2 + $0xf8] sm:$0xff]
    %v181 = vpack.c.bf16 %v150, %v149
    %v182 = vpack.c.bf16 %v152, %v151
    %v183 = vpack.c.bf16 %v154, %v153
    %v184 = vpack.c.bf16 %v156, %v155
    %v185 = vpack.c.bf16 %v158, %v157
    %v186 = vpack.c.bf16 %v160, %v159
    %v187 = vpack.c.bf16 %v162, %v161
    %v188 = vpack.c.bf16 %v164, %v163
    %v189 = vpack.c.bf16 %v166, %v165
    %v190 = vpack.c.bf16 %v168, %v167
    %v191 = vpack.c.bf16 %v170, %v169
    %v192 = vpack.c.bf16 %v172, %v171
    %v193 = vpack.c.bf16 %v174, %v173
    %v194 = vpack.c.bf16 %v176, %v175
    %v195 = vpack.c.bf16 %v178, %v177
    %v196 = vpack.c.bf16 %v180, %v179
    %v197 = vld [vmem:[#allocation4] sm:$0xff]
    %v198 = vld [vmem:[#allocation4 + $0x8] sm:$0xff]
    %v199 = vld [vmem:[#allocation4 + $0x10] sm:$0xff]
    %v200 = vld [vmem:[#allocation4 + $0x18] sm:$0xff]
    %v201 = vld [vmem:[#allocation4 + $0x20] sm:$0xff]
    %v202 = vld [vmem:[#allocation4 + $0x28] sm:$0xff]
    %v203 = vld [vmem:[#allocation4 + $0x30] sm:$0xff]
    %v204 = vld [vmem:[#allocation4 + $0x38] sm:$0xff]
    %v205 = vld [vmem:[#allocation4 + $0x40] sm:$0xff]
    %v206 = vld [vmem:[#allocation4 + $0x48] sm:$0xff]
    %v207 = vld [vmem:[#allocation4 + $0x50] sm:$0xff]
    %v208 = vld [vmem:[#allocation4 + $0x58] sm:$0xff]
    %v209 = vld [vmem:[#allocation4 + $0x60] sm:$0xff]
    %v210 = vld [vmem:[#allocation4 + $0x68] sm:$0xff]
    %v211 = vld [vmem:[#allocation4 + $0x70] sm:$0xff]
    %v212 = vld [vmem:[#allocation4 + $0x78] sm:$0xff]
    %v213 = vld [vmem:[#allocation6] sm:$0x3]
    %v215 = vperm.slane %v213, 0
    %v216 = vperm.slane %v213, 1
    %v235 = vunpack.c.l.b16 %v197
    %v236 = vunpack.c.h.b16 %v197
    %v237 = vunpack.c.l.b16 %v198
    %v238 = vunpack.c.h.b16 %v198
    %v239 = vunpack.c.l.b16 %v199
    %v240 = vunpack.c.h.b16 %v199
    %v241 = vunpack.c.l.b16 %v200
    %v242 = vunpack.c.h.b16 %v200
    %v243 = vunpack.c.l.b16 %v201
    %v244 = vunpack.c.h.b16 %v201
    %v245 = vunpack.c.l.b16 %v202
    %v246 = vunpack.c.h.b16 %v202
    %v247 = vunpack.c.l.b16 %v203
    %v248 = vunpack.c.h.b16 %v203
    %v249 = vunpack.c.l.b16 %v204
    %v250 = vunpack.c.h.b16 %v204
    %v251 = vunpack.c.l.b16 %v205
    %v252 = vunpack.c.h.b16 %v205
    %v253 = vunpack.c.l.b16 %v206
    %v254 = vunpack.c.h.b16 %v206
    %v255 = vunpack.c.l.b16 %v207
    %v256 = vunpack.c.h.b16 %v207
    %v257 = vunpack.c.l.b16 %v208
    %v258 = vunpack.c.h.b16 %v208
    %v259 = vunpack.c.l.b16 %v209
    %v260 = vunpack.c.h.b16 %v209
    %v261 = vunpack.c.l.b16 %v210
    %v262 = vunpack.c.h.b16 %v210
    %v263 = vunpack.c.l.b16 %v211
    %v264 = vunpack.c.h.b16 %v211
    %v265 = vunpack.c.l.b16 %v212
    %v266 = vunpack.c.h.b16 %v212
    %v267 = vpack.c.b16 %v237, %v235
    %v268 = vpack.c.b16 %v238, %v236
    %v269 = vpack.c.b16 %v241, %v239
    %v270 = vpack.c.b16 %v242, %v240
    %v271 = vpack.c.b16 %v245, %v243
    %v272 = vpack.c.b16 %v246, %v244
    %v273 = vpack.c.b16 %v249, %v247
    %v274 = vpack.c.b16 %v250, %v248
    %v275 = vpack.c.b16 %v253, %v251
    %v276 = vpack.c.b16 %v254, %v252
    %v277 = vpack.c.b16 %v257, %v255
    %v278 = vpack.c.b16 %v258, %v256
    %v279 = vpack.c.b16 %v261, %v259
    %v280 = vpack.c.b16 %v262, %v260
    %v281 = vpack.c.b16 %v265, %v263
    %v282 = vpack.c.b16 %v266, %v264
    %299 = vmatpush.bf16.msra.mxu0 %v281
    %300 = vmatpush.bf16.msra.mxu0 %v279
    %301 = vmatpush.bf16.msra.mxu0 %v277
    %302 = vmatpush.bf16.msra.mxu0 %v275
    %303 = vmatpush.bf16.msra.mxu0 %v273
    %304 = vmatpush.bf16.msra.mxu0 %v271
    %305 = vmatpush.bf16.msra.mxu0 %v269
    %306 = vmatpush.bf16.msra.mxu0 %v267
    %307 = vmatmul.bf16.gmra.mxu0 %v181
    %v308 = vpop.f32.mrf.mxu0
    %v309 = vadd.f32 %v215, %v308
    %v310 = vpop.f32.mrf.mxu0
    %v311 = vadd.f32 %v215, %v310
    %312 = vmatmul.bf16.gmra.mxu0 %v182
    %v313 = vpop.f32.mrf.mxu0
    %v314 = vadd.f32 %v215, %v313
    %v315 = vpop.f32.mrf.mxu0
    %v316 = vadd.f32 %v215, %v315
    %317 = vmatmul.bf16.gmra.mxu0 %v183
    %v318 = vpop.f32.mrf.mxu0
    %v319 = vadd.f32 %v215, %v318
    %v320 = vpop.f32.mrf.mxu0
    %v321 = vadd.f32 %v215, %v320
    %322 = vmatmul.bf16.gmra.mxu0 %v184
    %v323 = vpop.f32.mrf.mxu0
    %v324 = vadd.f32 %v215, %v323
    %v325 = vpop.f32.mrf.mxu0
    %v326 = vadd.f32 %v215, %v325
    %327 = vmatmul.bf16.gmra.mxu0 %v185
    %v328 = vpop.f32.mrf.mxu0
    %v329 = vadd.f32 %v215, %v328
    %v330 = vpop.f32.mrf.mxu0
    %v331 = vadd.f32 %v215, %v330
    %332 = vmatmul.bf16.gmra.mxu0 %v186
    %v333 = vpop.f32.mrf.mxu0
    %v334 = vadd.f32 %v215, %v333
    %v335 = vpop.f32.mrf.mxu0
    %v336 = vadd.f32 %v215, %v335
    %337 = vmatmul.bf16.gmra.mxu0 %v187
    %v338 = vpop.f32.mrf.mxu0
    %v339 = vadd.f32 %v215, %v338
    %v340 = vpop.f32.mrf.mxu0
    %v341 = vadd.f32 %v215, %v340
    %342 = vmatmul.bf16.gmra.mxu0 %v188
    %v343 = vpop.f32.mrf.mxu0
    %v344 = vadd.f32 %v215, %v343
    %v345 = vpop.f32.mrf.mxu0
    %v346 = vadd.f32 %v215, %v345
    %347 = vmatmul.bf16.gmra.mxu0 %v189
    %v348 = vpop.f32.mrf.mxu0
    %v349 = vadd.f32 %v215, %v348
    %v350 = vpop.f32.mrf.mxu0
    %v351 = vadd.f32 %v215, %v350
    %352 = vmatmul.bf16.gmra.mxu0 %v190
    %v353 = vpop.f32.mrf.mxu0
    %v354 = vadd.f32 %v215, %v353
    %v355 = vpop.f32.mrf.mxu0
    %v356 = vadd.f32 %v215, %v355
    %357 = vmatmul.bf16.gmra.mxu0 %v191
    %v358 = vpop.f32.mrf.mxu0
    %v359 = vadd.f32 %v215, %v358
    %v360 = vpop.f32.mrf.mxu0
    %v361 = vadd.f32 %v215, %v360
    %362 = vmatmul.bf16.gmra.mxu0 %v192
    %v363 = vpop.f32.mrf.mxu0
    %v364 = vadd.f32 %v215, %v363
    %v365 = vpop.f32.mrf.mxu0
    %v366 = vadd.f32 %v215, %v365
    %367 = vmatmul.bf16.gmra.mxu0 %v193
    %v368 = vpop.f32.mrf.mxu0
    %v369 = vadd.f32 %v215, %v368
    %v370 = vpop.f32.mrf.mxu0
    %v371 = vadd.f32 %v215, %v370
    %372 = vmatmul.bf16.gmra.mxu0 %v194
    %v373 = vpop.f32.mrf.mxu0
    %v374 = vadd.f32 %v215, %v373
    %v375 = vpop.f32.mrf.mxu0
    %v376 = vadd.f32 %v215, %v375
    %377 = vmatmul.bf16.gmra.mxu0 %v195
    %v378 = vpop.f32.mrf.mxu0
    %v379 = vadd.f32 %v215, %v378
    %v380 = vpop.f32.mrf.mxu0
    %v381 = vadd.f32 %v215, %v380
    %382 = vmatmul.bf16.gmra.mxu0 %v196
    %v383 = vpop.f32.mrf.mxu0
    %v384 = vadd.f32 %v215, %v383
    %v385 = vpop.f32.mrf.mxu0
    %v386 = vadd.f32 %v215, %v385
    %387 = vdwg.mxu0
    %388 = vmatpush.bf16.msra.mxu0 %v282
    %389 = vmatpush.bf16.msra.mxu0 %v280
    %390 = vmatpush.bf16.msra.mxu0 %v278
    %391 = vmatpush.bf16.msra.mxu0 %v276
    %392 = vmatpush.bf16.msra.mxu0 %v274
    %393 = vmatpush.bf16.msra.mxu0 %v272
    %394 = vmatpush.bf16.msra.mxu0 %v270
    %395 = vmatpush.bf16.msra.mxu0 %v268
    %396 = vmatmul.bf16.gmra.mxu0 %v181
    %v397 = vpop.f32.mrf.mxu0
    %v398 = vadd.f32 %v216, %v397
    %v399 = vpop.f32.mrf.mxu0
    %v400 = vadd.f32 %v216, %v399
    %401 = vmatmul.bf16.gmra.mxu0 %v182
    %v402 = vpop.f32.mrf.mxu0
    %v403 = vadd.f32 %v216, %v402
    %v404 = vpop.f32.mrf.mxu0
    %v405 = vadd.f32 %v216, %v404
    %406 = vmatmul.bf16.gmra.mxu0 %v183
    %v407 = vpop.f32.mrf.mxu0
    %v408 = vadd.f32 %v216, %v407
    %v409 = vpop.f32.mrf.mxu0
    %v410 = vadd.f32 %v216, %v409
    %411 = vmatmul.bf16.gmra.mxu0 %v184
    %v412 = vpop.f32.mrf.mxu0
    %v413 = vadd.f32 %v216, %v412
    %v414 = vpop.f32.mrf.mxu0
    %v415 = vadd.f32 %v216, %v414
    %416 = vmatmul.bf16.gmra.mxu0 %v185
    %v417 = vpop.f32.mrf.mxu0
    %v418 = vadd.f32 %v216, %v417
    %v419 = vpop.f32.mrf.mxu0
    %v420 = vadd.f32 %v216, %v419
    %421 = vmatmul.bf16.gmra.mxu0 %v186
    %v422 = vpop.f32.mrf.mxu0
    %v423 = vadd.f32 %v216, %v422
    %v424 = vpop.f32.mrf.mxu0
    %v425 = vadd.f32 %v216, %v424
    %426 = vmatmul.bf16.gmra.mxu0 %v187
    %v427 = vpop.f32.mrf.mxu0
    %v428 = vadd.f32 %v216, %v427
    %v429 = vpop.f32.mrf.mxu0
    %v430 = vadd.f32 %v216, %v429
    %431 = vmatmul.bf16.gmra.mxu0 %v188
    %v432 = vpop.f32.mrf.mxu0
    %v433 = vadd.f32 %v216, %v432
    %v434 = vpop.f32.mrf.mxu0
    %v435 = vadd.f32 %v216, %v434
    %436 = vmatmul.bf16.gmra.mxu0 %v189
    %v437 = vpop.f32.mrf.mxu0
    %v438 = vadd.f32 %v216, %v437
    %v439 = vpop.f32.mrf.mxu0
    %v440 = vadd.f32 %v216, %v439
    %441 = vmatmul.bf16.gmra.mxu0 %v190
    %v442 = vpop.f32.mrf.mxu0
    %v443 = vadd.f32 %v216, %v442
    %v444 = vpop.f32.mrf.mxu0
    %v445 = vadd.f32 %v216, %v444
    %446 = vmatmul.bf16.gmra.mxu0 %v191
    %v447 = vpop.f32.mrf.mxu0
    %v448 = vadd.f32 %v216, %v447
    %v449 = vpop.f32.mrf.mxu0
    %v450 = vadd.f32 %v216, %v449
    %451 = vmatmul.bf16.gmra.mxu0 %v192
    %v452 = vpop.f32.mrf.mxu0
    %v453 = vadd.f32 %v216, %v452
    %v454 = vpop.f32.mrf.mxu0
    %v455 = vadd.f32 %v216, %v454
    %456 = vmatmul.bf16.gmra.mxu0 %v193
    %v457 = vpop.f32.mrf.mxu0
    %v458 = vadd.f32 %v216, %v457
    %v459 = vpop.f32.mrf.mxu0
    %v460 = vadd.f32 %v216, %v459
    %461 = vmatmul.bf16.gmra.mxu0 %v194
    %v462 = vpop.f32.mrf.mxu0
    %v463 = vadd.f32 %v216, %v462
    %v464 = vpop.f32.mrf.mxu0
    %v465 = vadd.f32 %v216, %v464
    %466 = vmatmul.bf16.gmra.mxu0 %v195
    %v467 = vpop.f32.mrf.mxu0
    %v468 = vadd.f32 %v216, %v467
    %v469 = vpop.f32.mrf.mxu0
    %v470 = vadd.f32 %v216, %v469
    %471 = vmatmul.bf16.gmra.mxu0 %v196
    %v472 = vpop.f32.mrf.mxu0
    %v473 = vadd.f32 %v216, %v472
    %v474 = vpop.f32.mrf.mxu0
    %v475 = vadd.f32 %v216, %v474
    %476 = vdwg.mxu0
    %v477 = vmul.f32 %v309, 0.2
    %v478 = vmul.f32 %v398, 0.2
    %v479 = vmul.f32 %v311, 0.2
    %v480 = vmul.f32 %v400, 0.2
    %v481 = vmul.f32 %v314, 0.2
    %v482 = vmul.f32 %v403, 0.2
    %v483 = vmul.f32 %v316, 0.2
    %v484 = vmul.f32 %v405, 0.2
    %v485 = vmul.f32 %v319, 0.2
    %v486 = vmul.f32 %v408, 0.2
    %v487 = vmul.f32 %v321, 0.2
    %v488 = vmul.f32 %v410, 0.2
    %v489 = vmul.f32 %v324, 0.2
    %v490 = vmul.f32 %v413, 0.2
    %v491 = vmul.f32 %v326, 0.2
    %v492 = vmul.f32 %v415, 0.2
    %v493 = vmul.f32 %v329, 0.2
    %v494 = vmul.f32 %v418, 0.2
    %v495 = vmul.f32 %v331, 0.2
    %v496 = vmul.f32 %v420, 0.2
    %v497 = vmul.f32 %v334, 0.2
    %v498 = vmul.f32 %v423, 0.2
    %v499 = vmul.f32 %v336, 0.2
    %v500 = vmul.f32 %v425, 0.2
    %v501 = vmul.f32 %v339, 0.2
    %v502 = vmul.f32 %v428, 0.2
    %v503 = vmul.f32 %v341, 0.2
    %v504 = vmul.f32 %v430, 0.2
    %v505 = vmul.f32 %v344, 0.2
    %v506 = vmul.f32 %v433, 0.2
    %v507 = vmul.f32 %v346, 0.2
    %v508 = vmul.f32 %v435, 0.2
    %v509 = vmul.f32 %v349, 0.2
    %v510 = vmul.f32 %v438, 0.2
    %v511 = vmul.f32 %v351, 0.2
    %v512 = vmul.f32 %v440, 0.2
    %v513 = vmul.f32 %v354, 0.2
    %v514 = vmul.f32 %v443, 0.2
    %v515 = vmul.f32 %v356, 0.2
    %v516 = vmul.f32 %v445, 0.2
    %v517 = vmul.f32 %v359, 0.2
    %v518 = vmul.f32 %v448, 0.2
    %v519 = vmul.f32 %v361, 0.2
    %v520 = vmul.f32 %v450, 0.2
    %v521 = vmul.f32 %v364, 0.2
    %v522 = vmul.f32 %v453, 0.2
    %v523 = vmul.f32 %v366, 0.2
    %v524 = vmul.f32 %v455, 0.2
    %v525 = vmul.f32 %v369, 0.2
    %v526 = vmul.f32 %v458, 0.2
    %v527 = vmul.f32 %v371, 0.2
    %v528 = vmul.f32 %v460, 0.2
    %v529 = vmul.f32 %v374, 0.2
    %v530 = vmul.f32 %v463, 0.2
    %v531 = vmul.f32 %v376, 0.2
    %v532 = vmul.f32 %v465, 0.2
    %v533 = vmul.f32 %v379, 0.2
    %v534 = vmul.f32 %v468, 0.2
    %v535 = vmul.f32 %v381, 0.2
    %v536 = vmul.f32 %v470, 0.2
    %v537 = vmul.f32 %v384, 0.2
    %v538 = vmul.f32 %v473, 0.2
    %v539 = vmul.f32 %v386, 0.2
    %v540 = vmul.f32 %v475, 0.2
    %v541 = vmax.f32 %v309, %v477
    %v542 = vmax.f32 %v398, %v478
    %v543 = vmax.f32 %v311, %v479
    %v544 = vmax.f32 %v400, %v480
    %v545 = vmax.f32 %v314, %v481
    %v546 = vmax.f32 %v403, %v482
    %v547 = vmax.f32 %v316, %v483
    %v548 = vmax.f32 %v405, %v484
    %v549 = vmax.f32 %v319, %v485
    %v550 = vmax.f32 %v408, %v486
    %v551 = vmax.f32 %v321, %v487
    %v552 = vmax.f32 %v410, %v488
    %v553 = vmax.f32 %v324, %v489
    %v554 = vmax.f32 %v413, %v490
    %v555 = vmax.f32 %v326, %v491
    %v556 = vmax.f32 %v415, %v492
    %v557 = vmax.f32 %v329, %v493
    %v558 = vmax.f32 %v418, %v494
    %v559 = vmax.f32 %v331, %v495
    %v560 = vmax.f32 %v420, %v496
    %v561 = vmax.f32 %v334, %v497
    %v562 = vmax.f32 %v423, %v498
    %v563 = vmax.f32 %v336, %v499
    %v564 = vmax.f32 %v425, %v500
    %v565 = vmax.f32 %v339, %v501
    %v566 = vmax.f32 %v428, %v502
    %v567 = vmax.f32 %v341, %v503
    %v568 = vmax.f32 %v430, %v504
    %v569 = vmax.f32 %v344, %v505
    %v570 = vmax.f32 %v433, %v506
    %v571 = vmax.f32 %v346, %v507
    %v572 = vmax.f32 %v435, %v508
    %v573 = vmax.f32 %v349, %v509
    %v574 = vmax.f32 %v438, %v510
    %v575 = vmax.f32 %v351, %v511
    %v576 = vmax.f32 %v440, %v512
    %v577 = vmax.f32 %v354, %v513
    %v578 = vmax.f32 %v443, %v514
    %v579 = vmax.f32 %v356, %v515
    %v580 = vmax.f32 %v445, %v516
    %v581 = vmax.f32 %v359, %v517
    %v582 = vmax.f32 %v448, %v518
    %v583 = vmax.f32 %v361, %v519
    %v584 = vmax.f32 %v450, %v520
    %v585 = vmax.f32 %v364, %v521
    %v586 = vmax.f32 %v453, %v522
    %v587 = vmax.f32 %v366, %v523
    %v588 = vmax.f32 %v455, %v524
    %v589 = vmax.f32 %v369, %v525
    %v590 = vmax.f32 %v458, %v526
    %v591 = vmax.f32 %v371, %v527
    %v592 = vmax.f32 %v460, %v528
    %v593 = vmax.f32 %v374, %v529
    %v594 = vmax.f32 %v463, %v530
    %v595 = vmax.f32 %v376, %v531
    %v596 = vmax.f32 %v465, %v532
    %v597 = vmax.f32 %v379, %v533
    %v598 = vmax.f32 %v468, %v534
    %v599 = vmax.f32 %v381, %v535
    %v600 = vmax.f32 %v470, %v536
    %v601 = vmax.f32 %v384, %v537
    %v602 = vmax.f32 %v473, %v538
    %v603 = vmax.f32 %v386, %v539
    %v604 = vmax.f32 %v475, %v540
    %v605 = vpack.c.bf16 %v543, %v541
    %v606 = vpack.c.bf16 %v544, %v542
    %v607 = vpack.c.bf16 %v547, %v545
    %v608 = vpack.c.bf16 %v548, %v546
    %v609 = vpack.c.bf16 %v551, %v549
    %v610 = vpack.c.bf16 %v552, %v550
    %v611 = vpack.c.bf16 %v555, %v553
    %v612 = vpack.c.bf16 %v556, %v554
    %v613 = vpack.c.bf16 %v559, %v557
    %v614 = vpack.c.bf16 %v560, %v558
    %v615 = vpack.c.bf16 %v563, %v561
    %v616 = vpack.c.bf16 %v564, %v562
    %v617 = vpack.c.bf16 %v567, %v565
    %v618 = vpack.c.bf16 %v568, %v566
    %v619 = vpack.c.bf16 %v571, %v569
    %v620 = vpack.c.bf16 %v572, %v570
    %v621 = vpack.c.bf16 %v575, %v573
    %v622 = vpack.c.bf16 %v576, %v574
    %v623 = vpack.c.bf16 %v579, %v577
    %v624 = vpack.c.bf16 %v580, %v578
    %v625 = vpack.c.bf16 %v583, %v581
    %v626 = vpack.c.bf16 %v584, %v582
    %v627 = vpack.c.bf16 %v587, %v585
    %v628 = vpack.c.bf16 %v588, %v586
    %v629 = vpack.c.bf16 %v591, %v589
    %v630 = vpack.c.bf16 %v592, %v590
    %v631 = vpack.c.bf16 %v595, %v593
    %v632 = vpack.c.bf16 %v596, %v594
    %v633 = vpack.c.bf16 %v599, %v597
    %v634 = vpack.c.bf16 %v600, %v598
    %v635 = vpack.c.bf16 %v603, %v601
    %v636 = vpack.c.bf16 %v604, %v602
    %v637 = vld [vmem:[#allocation7] sm:$0xff]
    %v638 = vld [vmem:[#allocation7 + $0x8] sm:$0xff]
    %v639 = vld [vmem:[#allocation7 + $0x10] sm:$0xff]
    %v640 = vld [vmem:[#allocation7 + $0x18] sm:$0xff]
    %v641 = vld [vmem:[#allocation7 + $0x20] sm:$0xff]
    %v642 = vld [vmem:[#allocation7 + $0x28] sm:$0xff]
    %v643 = vld [vmem:[#allocation7 + $0x30] sm:$0xff]
    %v644 = vld [vmem:[#allocation7 + $0x38] sm:$0xff]
    %v645 = vld [vmem:[#allocation7 + $0x40] sm:$0xff]
    %v646 = vld [vmem:[#allocation7 + $0x48] sm:$0xff]
    %v647 = vld [vmem:[#allocation7 + $0x50] sm:$0xff]
    %v648 = vld [vmem:[#allocation7 + $0x58] sm:$0xff]
    %v649 = vld [vmem:[#allocation7 + $0x60] sm:$0xff]
    %v650 = vld [vmem:[#allocation7 + $0x68] sm:$0xff]
    %v651 = vld [vmem:[#allocation7 + $0x70] sm:$0xff]
    %v652 = vld [vmem:[#allocation7 + $0x78] sm:$0xff]
    %v653 = vld [vmem:[#allocation7 + $0x80] sm:$0xff]
    %v654 = vld [vmem:[#allocation7 + $0x88] sm:$0xff]
    %v655 = vld [vmem:[#allocation7 + $0x90] sm:$0xff]
    %v656 = vld [vmem:[#allocation7 + $0x98] sm:$0xff]
    %v657 = vld [vmem:[#allocation7 + $0xa0] sm:$0xff]
    %v658 = vld [vmem:[#allocation7 + $0xa8] sm:$0xff]
    %v659 = vld [vmem:[#allocation7 + $0xb0] sm:$0xff]
    %v660 = vld [vmem:[#allocation7 + $0xb8] sm:$0xff]
    %v661 = vld [vmem:[#allocation7 + $0xc0] sm:$0xff]
    %v662 = vld [vmem:[#allocation7 + $0xc8] sm:$0xff]
    %v663 = vld [vmem:[#allocation7 + $0xd0] sm:$0xff]
    %v664 = vld [vmem:[#allocation7 + $0xd8] sm:$0xff]
    %v665 = vld [vmem:[#allocation7 + $0xe0] sm:$0xff]
    %v666 = vld [vmem:[#allocation7 + $0xe8] sm:$0xff]
    %v667 = vld [vmem:[#allocation7 + $0xf0] sm:$0xff]
    %v668 = vld [vmem:[#allocation7 + $0xf8] sm:$0xff]
    %v669 = vld [vmem:[#allocation7 + $0x100] sm:$0xff]
    %v670 = vld [vmem:[#allocation7 + $0x108] sm:$0xff]
    %v671 = vld [vmem:[#allocation7 + $0x110] sm:$0xff]
    %v672 = vld [vmem:[#allocation7 + $0x118] sm:$0xff]
    %v673 = vld [vmem:[#allocation7 + $0x120] sm:$0xff]
    %v674 = vld [vmem:[#allocation7 + $0x128] sm:$0xff]
    %v675 = vld [vmem:[#allocation7 + $0x130] sm:$0xff]
    %v676 = vld [vmem:[#allocation7 + $0x138] sm:$0xff]
    %v677 = vld [vmem:[#allocation7 + $0x140] sm:$0xff]
    %v678 = vld [vmem:[#allocation7 + $0x148] sm:$0xff]
    %v679 = vld [vmem:[#allocation7 + $0x150] sm:$0xff]
    %v680 = vld [vmem:[#allocation7 + $0x158] sm:$0xff]
    %v681 = vld [vmem:[#allocation7 + $0x160] sm:$0xff]
    %v682 = vld [vmem:[#allocation7 + $0x168] sm:$0xff]
    %v683 = vld [vmem:[#allocation7 + $0x170] sm:$0xff]
    %v684 = vld [vmem:[#allocation7 + $0x178] sm:$0xff]
    %v685 = vld [vmem:[#allocation7 + $0x180] sm:$0xff]
    %v686 = vld [vmem:[#allocation7 + $0x188] sm:$0xff]
    %v687 = vld [vmem:[#allocation7 + $0x190] sm:$0xff]
    %v688 = vld [vmem:[#allocation7 + $0x198] sm:$0xff]
    %v689 = vld [vmem:[#allocation7 + $0x1a0] sm:$0xff]
    %v690 = vld [vmem:[#allocation7 + $0x1a8] sm:$0xff]
    %v691 = vld [vmem:[#allocation7 + $0x1b0] sm:$0xff]
    %v692 = vld [vmem:[#allocation7 + $0x1b8] sm:$0xff]
    %v693 = vld [vmem:[#allocation7 + $0x1c0] sm:$0xff]
    %v694 = vld [vmem:[#allocation7 + $0x1c8] sm:$0xff]
    %v695 = vld [vmem:[#allocation7 + $0x1d0] sm:$0xff]
    %v696 = vld [vmem:[#allocation7 + $0x1d8] sm:$0xff]
    %v697 = vld [vmem:[#allocation7 + $0x1e0] sm:$0xff]
    %v698 = vld [vmem:[#allocation7 + $0x1e8] sm:$0xff]
    %v699 = vld [vmem:[#allocation7 + $0x1f0] sm:$0xff]
    %v700 = vld [vmem:[#allocation7 + $0x1f8] sm:$0xff]
    %v701 = vld [vmem:[#allocation9] sm:$0xf]
    %v703 = vperm.slane %v701, 0
    %v704 = vperm.slane %v701, 1
    %v705 = vperm.slane %v701, 2
    %v706 = vperm.slane %v701, 3
    %v775 = vunpack.c.l.b16 %v637
    %v776 = vunpack.c.h.b16 %v637
    %v777 = vunpack.c.l.b16 %v638
    %v778 = vunpack.c.h.b16 %v638
    %v779 = vunpack.c.l.b16 %v639
    %v780 = vunpack.c.h.b16 %v639
    %v781 = vunpack.c.l.b16 %v640
    %v782 = vunpack.c.h.b16 %v640
    %v783 = vunpack.c.l.b16 %v641
    %v784 = vunpack.c.h.b16 %v641
    %v785 = vunpack.c.l.b16 %v642
    %v786 = vunpack.c.h.b16 %v642
    %v787 = vunpack.c.l.b16 %v643
    %v788 = vunpack.c.h.b16 %v643
    %v789 = vunpack.c.l.b16 %v644
    %v790 = vunpack.c.h.b16 %v644
    %v791 = vunpack.c.l.b16 %v645
    %v792 = vunpack.c.h.b16 %v645
    %v793 = vunpack.c.l.b16 %v646
    %v794 = vunpack.c.h.b16 %v646
    %v795 = vunpack.c.l.b16 %v647
    %v796 = vunpack.c.h.b16 %v647
    %v797 = vunpack.c.l.b16 %v648
    %v798 = vunpack.c.h.b16 %v648
    %v799 = vunpack.c.l.b16 %v649
    %v800 = vunpack.c.h.b16 %v649
    %v801 = vunpack.c.l.b16 %v650
    %v802 = vunpack.c.h.b16 %v650
    %v803 = vunpack.c.l.b16 %v651
    %v804 = vunpack.c.h.b16 %v651
    %v805 = vunpack.c.l.b16 %v652
    %v806 = vunpack.c.h.b16 %v652
    %v807 = vunpack.c.l.b16 %v653
    %v808 = vunpack.c.h.b16 %v653
    %v809 = vunpack.c.l.b16 %v654
    %v810 = vunpack.c.h.b16 %v654
    %v811 = vunpack.c.l.b16 %v655
    %v812 = vunpack.c.h.b16 %v655
    %v813 = vunpack.c.l.b16 %v656
    %v814 = vunpack.c.h.b16 %v656
    %v815 = vunpack.c.l.b16 %v657
    %v816 = vunpack.c.h.b16 %v657
    %v817 = vunpack.c.l.b16 %v658
    %v818 = vunpack.c.h.b16 %v658
    %v819 = vunpack.c.l.b16 %v659
    %v820 = vunpack.c.h.b16 %v659
    %v821 = vunpack.c.l.b16 %v660
    %v822 = vunpack.c.h.b16 %v660
    %v823 = vunpack.c.l.b16 %v661
    %v824 = vunpack.c.h.b16 %v661
    %v825 = vunpack.c.l.b16 %v662
    %v826 = vunpack.c.h.b16 %v662
    %v827 = vunpack.c.l.b16 %v663
    %v828 = vunpack.c.h.b16 %v663
    %v829 = vunpack.c.l.b16 %v664
    %v830 = vunpack.c.h.b16 %v664
    %v831 = vunpack.c.l.b16 %v665
    %v832 = vunpack.c.h.b16 %v665
    %v833 = vunpack.c.l.b16 %v666
    %v834 = vunpack.c.h.b16 %v666
    %v835 = vunpack.c.l.b16 %v667
    %v836 = vunpack.c.h.b16 %v667
    %v837 = vunpack.c.l.b16 %v668
    %v838 = vunpack.c.h.b16 %v668
    %v839 = vunpack.c.l.b16 %v669
    %v840 = vunpack.c.h.b16 %v669
    %v841 = vunpack.c.l.b16 %v670
    %v842 = vunpack.c.h.b16 %v670
    %v843 = vunpack.c.l.b16 %v671
    %v844 = vunpack.c.h.b16 %v671
    %v845 = vunpack.c.l.b16 %v672
    %v846 = vunpack.c.h.b16 %v672
    %v847 = vunpack.c.l.b16 %v673
    %v848 = vunpack.c.h.b16 %v673
    %v849 = vunpack.c.l.b16 %v674
    %v850 = vunpack.c.h.b16 %v674
    %v851 = vunpack.c.l.b16 %v675
    %v852 = vunpack.c.h.b16 %v675
    %v853 = vunpack.c.l.b16 %v676
    %v854 = vunpack.c.h.b16 %v676
    %v855 = vunpack.c.l.b16 %v677
    %v856 = vunpack.c.h.b16 %v677
    %v857 = vunpack.c.l.b16 %v678
    %v858 = vunpack.c.h.b16 %v678
    %v859 = vunpack.c.l.b16 %v679
    %v860 = vunpack.c.h.b16 %v679
    %v861 = vunpack.c.l.b16 %v680
    %v862 = vunpack.c.h.b16 %v680
    %v863 = vunpack.c.l.b16 %v681
    %v864 = vunpack.c.h.b16 %v681
    %v865 = vunpack.c.l.b16 %v682
    %v866 = vunpack.c.h.b16 %v682
    %v867 = vunpack.c.l.b16 %v683
    %v868 = vunpack.c.h.b16 %v683
    %v869 = vunpack.c.l.b16 %v684
    %v870 = vunpack.c.h.b16 %v684
    %v871 = vunpack.c.l.b16 %v685
    %v872 = vunpack.c.h.b16 %v685
    %v873 = vunpack.c.l.b16 %v686
    %v874 = vunpack.c.h.b16 %v686
    %v875 = vunpack.c.l.b16 %v687
    %v876 = vunpack.c.h.b16 %v687
    %v877 = vunpack.c.l.b16 %v688
    %v878 = vunpack.c.h.b16 %v688
    %v879 = vunpack.c.l.b16 %v689
    %v880 = vunpack.c.h.b16 %v689
    %v881 = vunpack.c.l.b16 %v690
    %v882 = vunpack.c.h.b16 %v690
    %v883 = vunpack.c.l.b16 %v691
    %v884 = vunpack.c.h.b16 %v691
    %v885 = vunpack.c.l.b16 %v692
    %v886 = vunpack.c.h.b16 %v692
    %v887 = vunpack.c.l.b16 %v693
    %v888 = vunpack.c.h.b16 %v693
    %v889 = vunpack.c.l.b16 %v694
    %v890 = vunpack.c.h.b16 %v694
    %v891 = vunpack.c.l.b16 %v695
    %v892 = vunpack.c.h.b16 %v695
    %v893 = vunpack.c.l.b16 %v696
    %v894 = vunpack.c.h.b16 %v696
    %v895 = vunpack.c.l.b16 %v697
    %v896 = vunpack.c.h.b16 %v697
    %v897 = vunpack.c.l.b16 %v698
    %v898 = vunpack.c.h.b16 %v698
    %v899 = vunpack.c.l.b16 %v699
    %v900 = vunpack.c.h.b16 %v699
    %v901 = vunpack.c.l.b16 %v700
    %v902 = vunpack.c.h.b16 %v700
    %v903 = vpack.c.b16 %v779, %v775
    %v904 = vpack.c.b16 %v780, %v776
    %v905 = vpack.c.b16 %v781, %v777
    %v906 = vpack.c.b16 %v782, %v778
    %v907 = vpack.c.b16 %v787, %v783
    %v908 = vpack.c.b16 %v788, %v784
    %v909 = vpack.c.b16 %v789, %v785
    %v910 = vpack.c.b16 %v790, %v786
    %v911 = vpack.c.b16 %v795, %v791
    %v912 = vpack.c.b16 %v796, %v792
    %v913 = vpack.c.b16 %v797, %v793
    %v914 = vpack.c.b16 %v798, %v794
    %v915 = vpack.c.b16 %v803, %v799
    %v916 = vpack.c.b16 %v804, %v800
    %v917 = vpack.c.b16 %v805, %v801
    %v918 = vpack.c.b16 %v806, %v802
    %v919 = vpack.c.b16 %v811, %v807
    %v920 = vpack.c.b16 %v812, %v808
    %v921 = vpack.c.b16 %v813, %v809
    %v922 = vpack.c.b16 %v814, %v810
    %v923 = vpack.c.b16 %v819, %v815
    %v924 = vpack.c.b16 %v820, %v816
    %v925 = vpack.c.b16 %v821, %v817
    %v926 = vpack.c.b16 %v822, %v818
    %v927 = vpack.c.b16 %v827, %v823
    %v928 = vpack.c.b16 %v828, %v824
    %v929 = vpack.c.b16 %v829, %v825
    %v930 = vpack.c.b16 %v830, %v826
    %v931 = vpack.c.b16 %v835, %v831
    %v932 = vpack.c.b16 %v836, %v832
    %v933 = vpack.c.b16 %v837, %v833
    %v934 = vpack.c.b16 %v838, %v834
    %v935 = vpack.c.b16 %v843, %v839
    %v936 = vpack.c.b16 %v844, %v840
    %v937 = vpack.c.b16 %v845, %v841
    %v938 = vpack.c.b16 %v846, %v842
    %v939 = vpack.c.b16 %v851, %v847
    %v940 = vpack.c.b16 %v852, %v848
    %v941 = vpack.c.b16 %v853, %v849
    %v942 = vpack.c.b16 %v854, %v850
    %v943 = vpack.c.b16 %v859, %v855
    %v944 = vpack.c.b16 %v860, %v856
    %v945 = vpack.c.b16 %v861, %v857
    %v946 = vpack.c.b16 %v862, %v858
    %v947 = vpack.c.b16 %v867, %v863
    %v948 = vpack.c.b16 %v868, %v864
    %v949 = vpack.c.b16 %v869, %v865
    %v950 = vpack.c.b16 %v870, %v866
    %v951 = vpack.c.b16 %v875, %v871
    %v952 = vpack.c.b16 %v876, %v872
    %v953 = vpack.c.b16 %v877, %v873
    %v954 = vpack.c.b16 %v878, %v874
    %v955 = vpack.c.b16 %v883, %v879
    %v956 = vpack.c.b16 %v884, %v880
    %v957 = vpack.c.b16 %v885, %v881
    %v958 = vpack.c.b16 %v886, %v882
    %v959 = vpack.c.b16 %v891, %v887
    %v960 = vpack.c.b16 %v892, %v888
    %v961 = vpack.c.b16 %v893, %v889
    %v962 = vpack.c.b16 %v894, %v890
    %v963 = vpack.c.b16 %v899, %v895
    %v964 = vpack.c.b16 %v900, %v896
    %v965 = vpack.c.b16 %v901, %v897
    %v966 = vpack.c.b16 %v902, %v898
    %1031 = vmatpush.bf16.msra.mxu0 %v931
    %1032 = vmatpush.bf16.msra.mxu0 %v927
    %1033 = vmatpush.bf16.msra.mxu0 %v923
    %1034 = vmatpush.bf16.msra.mxu0 %v919
    %1035 = vmatpush.bf16.msra.mxu0 %v915
    %1036 = vmatpush.bf16.msra.mxu0 %v911
    %1037 = vmatpush.bf16.msra.mxu0 %v907
    %1038 = vmatpush.bf16.msra.mxu0 %v903
    %1039 = vmatmul.bf16.gmra.mxu0 %v605
    %v1040 = vpop.f32.mrf.mxu0
    %v1041 = vadd.f32 %v703, %v1040
    %v1042 = vpop.f32.mrf.mxu0
    %v1043 = vadd.f32 %v703, %v1042
    %1044 = vmatmul.bf16.gmra.mxu0 %v607
    %v1045 = vpop.f32.mrf.mxu0
    %v1046 = vadd.f32 %v703, %v1045
    %v1047 = vpop.f32.mrf.mxu0
    %v1048 = vadd.f32 %v703, %v1047
    %1049 = vmatmul.bf16.gmra.mxu0 %v609
    %v1050 = vpop.f32.mrf.mxu0
    %v1051 = vadd.f32 %v703, %v1050
    %v1052 = vpop.f32.mrf.mxu0
    %v1053 = vadd.f32 %v703, %v1052
    %1054 = vmatmul.bf16.gmra.mxu0 %v611
    %v1055 = vpop.f32.mrf.mxu0
    %v1056 = vadd.f32 %v703, %v1055
    %v1057 = vpop.f32.mrf.mxu0
    %v1058 = vadd.f32 %v703, %v1057
    %1059 = vmatmul.bf16.gmra.mxu0 %v613
    %v1060 = vpop.f32.mrf.mxu0
    %v1061 = vadd.f32 %v703, %v1060
    %v1062 = vpop.f32.mrf.mxu0
    %v1063 = vadd.f32 %v703, %v1062
    %1064 = vmatmul.bf16.gmra.mxu0 %v615
    %v1065 = vpop.f32.mrf.mxu0
    %v1066 = vadd.f32 %v703, %v1065
    %v1067 = vpop.f32.mrf.mxu0
    %v1068 = vadd.f32 %v703, %v1067
    %1069 = vmatmul.bf16.gmra.mxu0 %v617
    %v1070 = vpop.f32.mrf.mxu0
    %v1071 = vadd.f32 %v703, %v1070
    %v1072 = vpop.f32.mrf.mxu0
    %v1073 = vadd.f32 %v703, %v1072
    %1074 = vmatmul.bf16.gmra.mxu0 %v619
    %v1075 = vpop.f32.mrf.mxu0
    %v1076 = vadd.f32 %v703, %v1075
    %v1077 = vpop.f32.mrf.mxu0
    %v1078 = vadd.f32 %v703, %v1077
    %1079 = vmatmul.bf16.gmra.mxu0 %v621
    %v1080 = vpop.f32.mrf.mxu0
    %v1081 = vadd.f32 %v703, %v1080
    %v1082 = vpop.f32.mrf.mxu0
    %v1083 = vadd.f32 %v703, %v1082
    %1084 = vmatmul.bf16.gmra.mxu0 %v623
    %v1085 = vpop.f32.mrf.mxu0
    %v1086 = vadd.f32 %v703, %v1085
    %v1087 = vpop.f32.mrf.mxu0
    %v1088 = vadd.f32 %v703, %v1087
    %1089 = vmatmul.bf16.gmra.mxu0 %v625
    %v1090 = vpop.f32.mrf.mxu0
    %v1091 = vadd.f32 %v703, %v1090
    %v1092 = vpop.f32.mrf.mxu0
    %v1093 = vadd.f32 %v703, %v1092
    %1094 = vmatmul.bf16.gmra.mxu0 %v627
    %v1095 = vpop.f32.mrf.mxu0
    %v1096 = vadd.f32 %v703, %v1095
    %v1097 = vpop.f32.mrf.mxu0
    %v1098 = vadd.f32 %v703, %v1097
    %1099 = vmatmul.bf16.gmra.mxu0 %v629
    %v1100 = vpop.f32.mrf.mxu0
    %v1101 = vadd.f32 %v703, %v1100
    %v1102 = vpop.f32.mrf.mxu0
    %v1103 = vadd.f32 %v703, %v1102
    %1104 = vmatmul.bf16.gmra.mxu0 %v631
    %v1105 = vpop.f32.mrf.mxu0
    %v1106 = vadd.f32 %v703, %v1105
    %v1107 = vpop.f32.mrf.mxu0
    %v1108 = vadd.f32 %v703, %v1107
    %1109 = vmatmul.bf16.gmra.mxu0 %v633
    %v1110 = vpop.f32.mrf.mxu0
    %v1111 = vadd.f32 %v703, %v1110
    %v1112 = vpop.f32.mrf.mxu0
    %v1113 = vadd.f32 %v703, %v1112
    %1114 = vmatmul.bf16.gmra.mxu0 %v635
    %v1115 = vpop.f32.mrf.mxu0
    %v1116 = vadd.f32 %v703, %v1115
    %v1117 = vpop.f32.mrf.mxu0
    %v1118 = vadd.f32 %v703, %v1117
    %1119 = vdwg.mxu0
    %1120 = vmatpush.bf16.msra.mxu0 %v963
    %1121 = vmatpush.bf16.msra.mxu0 %v959
    %1122 = vmatpush.bf16.msra.mxu0 %v955
    %1123 = vmatpush.bf16.msra.mxu0 %v951
    %1124 = vmatpush.bf16.msra.mxu0 %v947
    %1125 = vmatpush.bf16.msra.mxu0 %v943
    %1126 = vmatpush.bf16.msra.mxu0 %v939
    %1127 = vmatpush.bf16.msra.mxu0 %v935
    %1128 = vmatmul.bf16.gmra.mxu0 %v606
    %v1129 = vpop.f32.mrf.mxu0
    %v1130 = vadd.f32 %v1041, %v1129
    %v1131 = vpop.f32.mrf.mxu0
    %v1132 = vadd.f32 %v1043, %v1131
    %1133 = vmatmul.bf16.gmra.mxu0 %v608
    %v1134 = vpop.f32.mrf.mxu0
    %v1135 = vadd.f32 %v1046, %v1134
    %v1136 = vpop.f32.mrf.mxu0
    %v1137 = vadd.f32 %v1048, %v1136
    %1138 = vmatmul.bf16.gmra.mxu0 %v610
    %v1139 = vpop.f32.mrf.mxu0
    %v1140 = vadd.f32 %v1051, %v1139
    %v1141 = vpop.f32.mrf.mxu0
    %v1142 = vadd.f32 %v1053, %v1141
    %1143 = vmatmul.bf16.gmra.mxu0 %v612
    %v1144 = vpop.f32.mrf.mxu0
    %v1145 = vadd.f32 %v1056, %v1144
    %v1146 = vpop.f32.mrf.mxu0
    %v1147 = vadd.f32 %v1058, %v1146
    %1148 = vmatmul.bf16.gmra.mxu0 %v614
    %v1149 = vpop.f32.mrf.mxu0
    %v1150 = vadd.f32 %v1061, %v1149
    %v1151 = vpop.f32.mrf.mxu0
    %v1152 = vadd.f32 %v1063, %v1151
    %1153 = vmatmul.bf16.gmra.mxu0 %v616
    %v1154 = vpop.f32.mrf.mxu0
    %v1155 = vadd.f32 %v1066, %v1154
    %v1156 = vpop.f32.mrf.mxu0
    %v1157 = vadd.f32 %v1068, %v1156
    %1158 = vmatmul.bf16.gmra.mxu0 %v618
    %v1159 = vpop.f32.mrf.mxu0
    %v1160 = vadd.f32 %v1071, %v1159
    %v1161 = vpop.f32.mrf.mxu0
    %v1162 = vadd.f32 %v1073, %v1161
    %1163 = vmatmul.bf16.gmra.mxu0 %v620
    %v1164 = vpop.f32.mrf.mxu0
    %v1165 = vadd.f32 %v1076, %v1164
    %v1166 = vpop.f32.mrf.mxu0
    %v1167 = vadd.f32 %v1078, %v1166
    %1168 = vmatmul.bf16.gmra.mxu0 %v622
    %v1169 = vpop.f32.mrf.mxu0
    %v1170 = vadd.f32 %v1081, %v1169
    %v1171 = vpop.f32.mrf.mxu0
    %v1172 = vadd.f32 %v1083, %v1171
    %1173 = vmatmul.bf16.gmra.mxu0 %v624
    %v1174 = vpop.f32.mrf.mxu0
    %v1175 = vadd.f32 %v1086, %v1174
    %v1176 = vpop.f32.mrf.mxu0
    %v1177 = vadd.f32 %v1088, %v1176
    %1178 = vmatmul.bf16.gmra.mxu0 %v626
    %v1179 = vpop.f32.mrf.mxu0
    %v1180 = vadd.f32 %v1091, %v1179
    %v1181 = vpop.f32.mrf.mxu0
    %v1182 = vadd.f32 %v1093, %v1181
    %1183 = vmatmul.bf16.gmra.mxu0 %v628
    %v1184 = vpop.f32.mrf.mxu0
    %v1185 = vadd.f32 %v1096, %v1184
    %v1186 = vpop.f32.mrf.mxu0
    %v1187 = vadd.f32 %v1098, %v1186
    %1188 = vmatmul.bf16.gmra.mxu0 %v630
    %v1189 = vpop.f32.mrf.mxu0
    %v1190 = vadd.f32 %v1101, %v1189
    %v1191 = vpop.f32.mrf.mxu0
    %v1192 = vadd.f32 %v1103, %v1191
    %1193 = vmatmul.bf16.gmra.mxu0 %v632
    %v1194 = vpop.f32.mrf.mxu0
    %v1195 = vadd.f32 %v1106, %v1194
    %v1196 = vpop.f32.mrf.mxu0
    %v1197 = vadd.f32 %v1108, %v1196
    %1198 = vmatmul.bf16.gmra.mxu0 %v634
    %v1199 = vpop.f32.mrf.mxu0
    %v1200 = vadd.f32 %v1111, %v1199
    %v1201 = vpop.f32.mrf.mxu0
    %v1202 = vadd.f32 %v1113, %v1201
    %1203 = vmatmul.bf16.gmra.mxu0 %v636
    %v1204 = vpop.f32.mrf.mxu0
    %v1205 = vadd.f32 %v1116, %v1204
    %v1206 = vpop.f32.mrf.mxu0
    %v1207 = vadd.f32 %v1118, %v1206
    %1208 = vdwg.mxu0
    %1209 = vmatpush.bf16.msra.mxu0 %v932
    %1210 = vmatpush.bf16.msra.mxu0 %v928
    %1211 = vmatpush.bf16.msra.mxu0 %v924
    %1212 = vmatpush.bf16.msra.mxu0 %v920
    %1213 = vmatpush.bf16.msra.mxu0 %v916
    %1214 = vmatpush.bf16.msra.mxu0 %v912
    %1215 = vmatpush.bf16.msra.mxu0 %v908
    %1216 = vmatpush.bf16.msra.mxu0 %v904
    %1217 = vmatmul.bf16.gmra.mxu0 %v605
    %v1218 = vpop.f32.mrf.mxu0
    %v1219 = vadd.f32 %v704, %v1218
    %v1220 = vpop.f32.mrf.mxu0
    %v1221 = vadd.f32 %v704, %v1220
    %1222 = vmatmul.bf16.gmra.mxu0 %v607
    %v1223 = vpop.f32.mrf.mxu0
    %v1224 = vadd.f32 %v704, %v1223
    %v1225 = vpop.f32.mrf.mxu0
    %v1226 = vadd.f32 %v704, %v1225
    %1227 = vmatmul.bf16.gmra.mxu0 %v609
    %v1228 = vpop.f32.mrf.mxu0
    %v1229 = vadd.f32 %v704, %v1228
    %v1230 = vpop.f32.mrf.mxu0
    %v1231 = vadd.f32 %v704, %v1230
    %1232 = vmatmul.bf16.gmra.mxu0 %v611
    %v1233 = vpop.f32.mrf.mxu0
    %v1234 = vadd.f32 %v704, %v1233
    %v1235 = vpop.f32.mrf.mxu0
    %v1236 = vadd.f32 %v704, %v1235
    %1237 = vmatmul.bf16.gmra.mxu0 %v613
    %v1238 = vpop.f32.mrf.mxu0
    %v1239 = vadd.f32 %v704, %v1238
    %v1240 = vpop.f32.mrf.mxu0
    %v1241 = vadd.f32 %v704, %v1240
    %1242 = vmatmul.bf16.gmra.mxu0 %v615
    %v1243 = vpop.f32.mrf.mxu0
    %v1244 = vadd.f32 %v704, %v1243
    %v1245 = vpop.f32.mrf.mxu0
    %v1246 = vadd.f32 %v704, %v1245
    %1247 = vmatmul.bf16.gmra.mxu0 %v617
    %v1248 = vpop.f32.mrf.mxu0
    %v1249 = vadd.f32 %v704, %v1248
    %v1250 = vpop.f32.mrf.mxu0
    %v1251 = vadd.f32 %v704, %v1250
    %1252 = vmatmul.bf16.gmra.mxu0 %v619
    %v1253 = vpop.f32.mrf.mxu0
    %v1254 = vadd.f32 %v704, %v1253
    %v1255 = vpop.f32.mrf.mxu0
    %v1256 = vadd.f32 %v704, %v1255
    %1257 = vmatmul.bf16.gmra.mxu0 %v621
    %v1258 = vpop.f32.mrf.mxu0
    %v1259 = vadd.f32 %v704, %v1258
    %v1260 = vpop.f32.mrf.mxu0
    %v1261 = vadd.f32 %v704, %v1260
    %1262 = vmatmul.bf16.gmra.mxu0 %v623
    %v1263 = vpop.f32.mrf.mxu0
    %v1264 = vadd.f32 %v704, %v1263
    %v1265 = vpop.f32.mrf.mxu0
    %v1266 = vadd.f32 %v704, %v1265
    %1267 = vmatmul.bf16.gmra.mxu0 %v625
    %v1268 = vpop.f32.mrf.mxu0
    %v1269 = vadd.f32 %v704, %v1268
    %v1270 = vpop.f32.mrf.mxu0
    %v1271 = vadd.f32 %v704, %v1270
    %1272 = vmatmul.bf16.gmra.mxu0 %v627
    %v1273 = vpop.f32.mrf.mxu0
    %v1274 = vadd.f32 %v704, %v1273
    %v1275 = vpop.f32.mrf.mxu0
    %v1276 = vadd.f32 %v704, %v1275
    %1277 = vmatmul.bf16.gmra.mxu0 %v629
    %v1278 = vpop.f32.mrf.mxu0
    %v1279 = vadd.f32 %v704, %v1278
    %v1280 = vpop.f32.mrf.mxu0
    %v1281 = vadd.f32 %v704, %v1280
    %1282 = vmatmul.bf16.gmra.mxu0 %v631
    %v1283 = vpop.f32.mrf.mxu0
    %v1284 = vadd.f32 %v704, %v1283
    %v1285 = vpop.f32.mrf.mxu0
    %v1286 = vadd.f32 %v704, %v1285
    %1287 = vmatmul.bf16.gmra.mxu0 %v633
    %v1288 = vpop.f32.mrf.mxu0
    %v1289 = vadd.f32 %v704, %v1288
    %v1290 = vpop.f32.mrf.mxu0
    %v1291 = vadd.f32 %v704, %v1290
    %1292 = vmatmul.bf16.gmra.mxu0 %v635
    %v1293 = vpop.f32.mrf.mxu0
    %v1294 = vadd.f32 %v704, %v1293
    %v1295 = vpop.f32.mrf.mxu0
    %v1296 = vadd.f32 %v704, %v1295
    %1297 = vdwg.mxu0
    %1298 = vmatpush.bf16.msra.mxu0 %v964
    %1299 = vmatpush.bf16.msra.mxu0 %v960
    %1300 = vmatpush.bf16.msra.mxu0 %v956
    %1301 = vmatpush.bf16.msra.mxu0 %v952
    %1302 = vmatpush.bf16.msra.mxu0 %v948
    %1303 = vmatpush.bf16.msra.mxu0 %v944
    %1304 = vmatpush.bf16.msra.mxu0 %v940
    %1305 = vmatpush.bf16.msra.mxu0 %v936
    %1306 = vmatmul.bf16.gmra.mxu0 %v606
    %v1307 = vpop.f32.mrf.mxu0
    %v1308 = vadd.f32 %v1219, %v1307
    %v1309 = vpop.f32.mrf.mxu0
    %v1310 = vadd.f32 %v1221, %v1309
    %1311 = vmatmul.bf16.gmra.mxu0 %v608
    %v1312 = vpop.f32.mrf.mxu0
    %v1313 = vadd.f32 %v1224, %v1312
    %v1314 = vpop.f32.mrf.mxu0
    %v1315 = vadd.f32 %v1226, %v1314
    %1316 = vmatmul.bf16.gmra.mxu0 %v610
    %v1317 = vpop.f32.mrf.mxu0
    %v1318 = vadd.f32 %v1229, %v1317
    %v1319 = vpop.f32.mrf.mxu0
    %v1320 = vadd.f32 %v1231, %v1319
    %1321 = vmatmul.bf16.gmra.mxu0 %v612
    %v1322 = vpop.f32.mrf.mxu0
    %v1323 = vadd.f32 %v1234, %v1322
    %v1324 = vpop.f32.mrf.mxu0
    %v1325 = vadd.f32 %v1236, %v1324
    %1326 = vmatmul.bf16.gmra.mxu0 %v614
    %v1327 = vpop.f32.mrf.mxu0
    %v1328 = vadd.f32 %v1239, %v1327
    %v1329 = vpop.f32.mrf.mxu0
    %v1330 = vadd.f32 %v1241, %v1329
    %1331 = vmatmul.bf16.gmra.mxu0 %v616
    %v1332 = vpop.f32.mrf.mxu0
    %v1333 = vadd.f32 %v1244, %v1332
    %v1334 = vpop.f32.mrf.mxu0
    %v1335 = vadd.f32 %v1246, %v1334
    %1336 = vmatmul.bf16.gmra.mxu0 %v618
    %v1337 = vpop.f32.mrf.mxu0
    %v1338 = vadd.f32 %v1249, %v1337
    %v1339 = vpop.f32.mrf.mxu0
    %v1340 = vadd.f32 %v1251, %v1339
    %1341 = vmatmul.bf16.gmra.mxu0 %v620
    %v1342 = vpop.f32.mrf.mxu0
    %v1343 = vadd.f32 %v1254, %v1342
    %v1344 = vpop.f32.mrf.mxu0
    %v1345 = vadd.f32 %v1256, %v1344
    %1346 = vmatmul.bf16.gmra.mxu0 %v622
    %v1347 = vpop.f32.mrf.mxu0
    %v1348 = vadd.f32 %v1259, %v1347
    %v1349 = vpop.f32.mrf.mxu0
    %v1350 = vadd.f32 %v1261, %v1349
    %1351 = vmatmul.bf16.gmra.mxu0 %v624
    %v1352 = vpop.f32.mrf.mxu0
    %v1353 = vadd.f32 %v1264, %v1352
    %v1354 = vpop.f32.mrf.mxu0
    %v1355 = vadd.f32 %v1266, %v1354
    %1356 = vmatmul.bf16.gmra.mxu0 %v626
    %v1357 = vpop.f32.mrf.mxu0
    %v1358 = vadd.f32 %v1269, %v1357
    %v1359 = vpop.f32.mrf.mxu0
    %v1360 = vadd.f32 %v1271, %v1359
    %1361 = vmatmul.bf16.gmra.mxu0 %v628
    %v1362 = vpop.f32.mrf.mxu0
    %v1363 = vadd.f32 %v1274, %v1362
    %v1364 = vpop.f32.mrf.mxu0
    %v1365 = vadd.f32 %v1276, %v1364
    %1366 = vmatmul.bf16.gmra.mxu0 %v630
    %v1367 = vpop.f32.mrf.mxu0
    %v1368 = vadd.f32 %v1279, %v1367
    %v1369 = vpop.f32.mrf.mxu0
    %v1370 = vadd.f32 %v1281, %v1369
    %1371 = vmatmul.bf16.gmra.mxu0 %v632
    %v1372 = vpop.f32.mrf.mxu0
    %v1373 = vadd.f32 %v1284, %v1372
    %v1374 = vpop.f32.mrf.mxu0
    %v1375 = vadd.f32 %v1286, %v1374
    %1376 = vmatmul.bf16.gmra.mxu0 %v634
    %v1377 = vpop.f32.mrf.mxu0
    %v1378 = vadd.f32 %v1289, %v1377
    %v1379 = vpop.f32.mrf.mxu0
    %v1380 = vadd.f32 %v1291, %v1379
    %1381 = vmatmul.bf16.gmra.mxu0 %v636
    %v1382 = vpop.f32.mrf.mxu0
    %v1383 = vadd.f32 %v1294, %v1382
    %v1384 = vpop.f32.mrf.mxu0
    %v1385 = vadd.f32 %v1296, %v1384
    %1386 = vdwg.mxu0
    %1387 = vmatpush.bf16.msra.mxu0 %v933
    %1388 = vmatpush.bf16.msra.mxu0 %v929
    %1389 = vmatpush.bf16.msra.mxu0 %v925
    %1390 = vmatpush.bf16.msra.mxu0 %v921
    %1391 = vmatpush.bf16.msra.mxu0 %v917
    %1392 = vmatpush.bf16.msra.mxu0 %v913
    %1393 = vmatpush.bf16.msra.mxu0 %v909
    %1394 = vmatpush.bf16.msra.mxu0 %v905
    %1395 = vmatmul.bf16.gmra.mxu0 %v605
    %v1396 = vpop.f32.mrf.mxu0
    %v1397 = vadd.f32 %v705, %v1396
    %v1398 = vpop.f32.mrf.mxu0
    %v1399 = vadd.f32 %v705, %v1398
    %1400 = vmatmul.bf16.gmra.mxu0 %v607
    %v1401 = vpop.f32.mrf.mxu0
    %v1402 = vadd.f32 %v705, %v1401
    %v1403 = vpop.f32.mrf.mxu0
    %v1404 = vadd.f32 %v705, %v1403
    %1405 = vmatmul.bf16.gmra.mxu0 %v609
    %v1406 = vpop.f32.mrf.mxu0
    %v1407 = vadd.f32 %v705, %v1406
    %v1408 = vpop.f32.mrf.mxu0
    %v1409 = vadd.f32 %v705, %v1408
    %1410 = vmatmul.bf16.gmra.mxu0 %v611
    %v1411 = vpop.f32.mrf.mxu0
    %v1412 = vadd.f32 %v705, %v1411
    %v1413 = vpop.f32.mrf.mxu0
    %v1414 = vadd.f32 %v705, %v1413
    %1415 = vmatmul.bf16.gmra.mxu0 %v613
    %v1416 = vpop.f32.mrf.mxu0
    %v1417 = vadd.f32 %v705, %v1416
    %v1418 = vpop.f32.mrf.mxu0
    %v1419 = vadd.f32 %v705, %v1418
    %1420 = vmatmul.bf16.gmra.mxu0 %v615
    %v1421 = vpop.f32.mrf.mxu0
    %v1422 = vadd.f32 %v705, %v1421
    %v1423 = vpop.f32.mrf.mxu0
    %v1424 = vadd.f32 %v705, %v1423
    %1425 = vmatmul.bf16.gmra.mxu0 %v617
    %v1426 = vpop.f32.mrf.mxu0
    %v1427 = vadd.f32 %v705, %v1426
    %v1428 = vpop.f32.mrf.mxu0
    %v1429 = vadd.f32 %v705, %v1428
    %1430 = vmatmul.bf16.gmra.mxu0 %v619
    %v1431 = vpop.f32.mrf.mxu0
    %v1432 = vadd.f32 %v705, %v1431
    %v1433 = vpop.f32.mrf.mxu0
    %v1434 = vadd.f32 %v705, %v1433
    %1435 = vmatmul.bf16.gmra.mxu0 %v621
    %v1436 = vpop.f32.mrf.mxu0
    %v1437 = vadd.f32 %v705, %v1436
    %v1438 = vpop.f32.mrf.mxu0
    %v1439 = vadd.f32 %v705, %v1438
    %1440 = vmatmul.bf16.gmra.mxu0 %v623
    %v1441 = vpop.f32.mrf.mxu0
    %v1442 = vadd.f32 %v705, %v1441
    %v1443 = vpop.f32.mrf.mxu0
    %v1444 = vadd.f32 %v705, %v1443
    %1445 = vmatmul.bf16.gmra.mxu0 %v625
    %v1446 = vpop.f32.mrf.mxu0
    %v1447 = vadd.f32 %v705, %v1446
    %v1448 = vpop.f32.mrf.mxu0
    %v1449 = vadd.f32 %v705, %v1448
    %1450 = vmatmul.bf16.gmra.mxu0 %v627
    %v1451 = vpop.f32.mrf.mxu0
    %v1452 = vadd.f32 %v705, %v1451
    %v1453 = vpop.f32.mrf.mxu0
    %v1454 = vadd.f32 %v705, %v1453
    %1455 = vmatmul.bf16.gmra.mxu0 %v629
    %v1456 = vpop.f32.mrf.mxu0
    %v1457 = vadd.f32 %v705, %v1456
    %v1458 = vpop.f32.mrf.mxu0
    %v1459 = vadd.f32 %v705, %v1458
    %1460 = vmatmul.bf16.gmra.mxu0 %v631
    %v1461 = vpop.f32.mrf.mxu0
    %v1462 = vadd.f32 %v705, %v1461
    %v1463 = vpop.f32.mrf.mxu0
    %v1464 = vadd.f32 %v705, %v1463
    %1465 = vmatmul.bf16.gmra.mxu0 %v633
    %v1466 = vpop.f32.mrf.mxu0
    %v1467 = vadd.f32 %v705, %v1466
    %v1468 = vpop.f32.mrf.mxu0
    %v1469 = vadd.f32 %v705, %v1468
    %1470 = vmatmul.bf16.gmra.mxu0 %v635
    %v1471 = vpop.f32.mrf.mxu0
    %v1472 = vadd.f32 %v705, %v1471
    %v1473 = vpop.f32.mrf.mxu0
    %v1474 = vadd.f32 %v705, %v1473
    %1475 = vdwg.mxu0
    %1476 = vmatpush.bf16.msra.mxu0 %v965
    %1477 = vmatpush.bf16.msra.mxu0 %v961
    %1478 = vmatpush.bf16.msra.mxu0 %v957
    %1479 = vmatpush.bf16.msra.mxu0 %v953
    %1480 = vmatpush.bf16.msra.mxu0 %v949
    %1481 = vmatpush.bf16.msra.mxu0 %v945
    %1482 = vmatpush.bf16.msra.mxu0 %v941
    %1483 = vmatpush.bf16.msra.mxu0 %v937
    %1484 = vmatmul.bf16.gmra.mxu0 %v606
    %v1485 = vpop.f32.mrf.mxu0
    %v1486 = vadd.f32 %v1397, %v1485
    %v1487 = vpop.f32.mrf.mxu0
    %v1488 = vadd.f32 %v1399, %v1487
    %1489 = vmatmul.bf16.gmra.mxu0 %v608
    %v1490 = vpop.f32.mrf.mxu0
    %v1491 = vadd.f32 %v1402, %v1490
    %v1492 = vpop.f32.mrf.mxu0
    %v1493 = vadd.f32 %v1404, %v1492
    %1494 = vmatmul.bf16.gmra.mxu0 %v610
    %v1495 = vpop.f32.mrf.mxu0
    %v1496 = vadd.f32 %v1407, %v1495
    %v1497 = vpop.f32.mrf.mxu0
    %v1498 = vadd.f32 %v1409, %v1497
    %1499 = vmatmul.bf16.gmra.mxu0 %v612
    %v1500 = vpop.f32.mrf.mxu0
    %v1501 = vadd.f32 %v1412, %v1500
    %v1502 = vpop.f32.mrf.mxu0
    %v1503 = vadd.f32 %v1414, %v1502
    %1504 = vmatmul.bf16.gmra.mxu0 %v614
    %v1505 = vpop.f32.mrf.mxu0
    %v1506 = vadd.f32 %v1417, %v1505
    %v1507 = vpop.f32.mrf.mxu0
    %v1508 = vadd.f32 %v1419, %v1507
    %1509 = vmatmul.bf16.gmra.mxu0 %v616
    %v1510 = vpop.f32.mrf.mxu0
    %v1511 = vadd.f32 %v1422, %v1510
    %v1512 = vpop.f32.mrf.mxu0
    %v1513 = vadd.f32 %v1424, %v1512
    %1514 = vmatmul.bf16.gmra.mxu0 %v618
    %v1515 = vpop.f32.mrf.mxu0
    %v1516 = vadd.f32 %v1427, %v1515
    %v1517 = vpop.f32.mrf.mxu0
    %v1518 = vadd.f32 %v1429, %v1517
    %1519 = vmatmul.bf16.gmra.mxu0 %v620
    %v1520 = vpop.f32.mrf.mxu0
    %v1521 = vadd.f32 %v1432, %v1520
    %v1522 = vpop.f32.mrf.mxu0
    %v1523 = vadd.f32 %v1434, %v1522
    %1524 = vmatmul.bf16.gmra.mxu0 %v622
    %v1525 = vpop.f32.mrf.mxu0
    %v1526 = vadd.f32 %v1437, %v1525
    %v1527 = vpop.f32.mrf.mxu0
    %v1528 = vadd.f32 %v1439, %v1527
    %1529 = vmatmul.bf16.gmra.mxu0 %v624
    %v1530 = vpop.f32.mrf.mxu0
    %v1531 = vadd.f32 %v1442, %v1530
    %v1532 = vpop.f32.mrf.mxu0
    %v1533 = vadd.f32 %v1444, %v1532
    %1534 = vmatmul.bf16.gmra.mxu0 %v626
    %v1535 = vpop.f32.mrf.mxu0
    %v1536 = vadd.f32 %v1447, %v1535
    %v1537 = vpop.f32.mrf.mxu0
    %v1538 = vadd.f32 %v1449, %v1537
    %1539 = vmatmul.bf16.gmra.mxu0 %v628
    %v1540 = vpop.f32.mrf.mxu0
    %v1541 = vadd.f32 %v1452, %v1540
    %v1542 = vpop.f32.mrf.mxu0
    %v1543 = vadd.f32 %v1454, %v1542
    %1544 = vmatmul.bf16.gmra.mxu0 %v630
    %v1545 = vpop.f32.mrf.mxu0
    %v1546 = vadd.f32 %v1457, %v1545
    %v1547 = vpop.f32.mrf.mxu0
    %v1548 = vadd.f32 %v1459, %v1547
    %1549 = vmatmul.bf16.gmra.mxu0 %v632
    %v1550 = vpop.f32.mrf.mxu0
    %v1551 = vadd.f32 %v1462, %v1550
    %v1552 = vpop.f32.mrf.mxu0
    %v1553 = vadd.f32 %v1464, %v1552
    %1554 = vmatmul.bf16.gmra.mxu0 %v634
    %v1555 = vpop.f32.mrf.mxu0
    %v1556 = vadd.f32 %v1467, %v1555
    %v1557 = vpop.f32.mrf.mxu0
    %v1558 = vadd.f32 %v1469, %v1557
    %1559 = vmatmul.bf16.gmra.mxu0 %v636
    %v1560 = vpop.f32.mrf.mxu0
    %v1561 = vadd.f32 %v1472, %v1560
    %v1562 = vpop.f32.mrf.mxu0
    %v1563 = vadd.f32 %v1474, %v1562
    %1564 = vdwg.mxu0
    %1565 = vmatpush.bf16.msra.mxu0 %v934
    %1566 = vmatpush.bf16.msra.mxu0 %v930
    %1567 = vmatpush.bf16.msra.mxu0 %v926
    %1568 = vmatpush.bf16.msra.mxu0 %v922
    %1569 = vmatpush.bf16.msra.mxu0 %v918
    %1570 = vmatpush.bf16.msra.mxu0 %v914
    %1571 = vmatpush.bf16.msra.mxu0 %v910
    %1572 = vmatpush.bf16.msra.mxu0 %v906
    %1573 = vmatmul.bf16.gmra.mxu0 %v605
    %v1574 = vpop.f32.mrf.mxu0
    %v1575 = vadd.f32 %v706, %v1574
    %v1576 = vpop.f32.mrf.mxu0
    %v1577 = vadd.f32 %v706, %v1576
    %1578 = vmatmul.bf16.gmra.mxu0 %v607
    %v1579 = vpop.f32.mrf.mxu0
    %v1580 = vadd.f32 %v706, %v1579
    %v1581 = vpop.f32.mrf.mxu0
    %v1582 = vadd.f32 %v706, %v1581
    %1583 = vmatmul.bf16.gmra.mxu0 %v609
    %v1584 = vpop.f32.mrf.mxu0
    %v1585 = vadd.f32 %v706, %v1584
    %v1586 = vpop.f32.mrf.mxu0
    %v1587 = vadd.f32 %v706, %v1586
    %1588 = vmatmul.bf16.gmra.mxu0 %v611
    %v1589 = vpop.f32.mrf.mxu0
    %v1590 = vadd.f32 %v706, %v1589
    %v1591 = vpop.f32.mrf.mxu0
    %v1592 = vadd.f32 %v706, %v1591
    %1593 = vmatmul.bf16.gmra.mxu0 %v613
    %v1594 = vpop.f32.mrf.mxu0
    %v1595 = vadd.f32 %v706, %v1594
    %v1596 = vpop.f32.mrf.mxu0
    %v1597 = vadd.f32 %v706, %v1596
    %1598 = vmatmul.bf16.gmra.mxu0 %v615
    %v1599 = vpop.f32.mrf.mxu0
    %v1600 = vadd.f32 %v706, %v1599
    %v1601 = vpop.f32.mrf.mxu0
    %v1602 = vadd.f32 %v706, %v1601
    %1603 = vmatmul.bf16.gmra.mxu0 %v617
    %v1604 = vpop.f32.mrf.mxu0
    %v1605 = vadd.f32 %v706, %v1604
    %v1606 = vpop.f32.mrf.mxu0
    %v1607 = vadd.f32 %v706, %v1606
    %1608 = vmatmul.bf16.gmra.mxu0 %v619
    %v1609 = vpop.f32.mrf.mxu0
    %v1610 = vadd.f32 %v706, %v1609
    %v1611 = vpop.f32.mrf.mxu0
    %v1612 = vadd.f32 %v706, %v1611
    %1613 = vmatmul.bf16.gmra.mxu0 %v621
    %v1614 = vpop.f32.mrf.mxu0
    %v1615 = vadd.f32 %v706, %v1614
    %v1616 = vpop.f32.mrf.mxu0
    %v1617 = vadd.f32 %v706, %v1616
    %1618 = vmatmul.bf16.gmra.mxu0 %v623
    %v1619 = vpop.f32.mrf.mxu0
    %v1620 = vadd.f32 %v706, %v1619
    %v1621 = vpop.f32.mrf.mxu0
    %v1622 = vadd.f32 %v706, %v1621
    %1623 = vmatmul.bf16.gmra.mxu0 %v625
    %v1624 = vpop.f32.mrf.mxu0
    %v1625 = vadd.f32 %v706, %v1624
    %v1626 = vpop.f32.mrf.mxu0
    %v1627 = vadd.f32 %v706, %v1626
    %1628 = vmatmul.bf16.gmra.mxu0 %v627
    %v1629 = vpop.f32.mrf.mxu0
    %v1630 = vadd.f32 %v706, %v1629
    %v1631 = vpop.f32.mrf.mxu0
    %v1632 = vadd.f32 %v706, %v1631
    %1633 = vmatmul.bf16.gmra.mxu0 %v629
    %v1634 = vpop.f32.mrf.mxu0
    %v1635 = vadd.f32 %v706, %v1634
    %v1636 = vpop.f32.mrf.mxu0
    %v1637 = vadd.f32 %v706, %v1636
    %1638 = vmatmul.bf16.gmra.mxu0 %v631
    %v1639 = vpop.f32.mrf.mxu0
    %v1640 = vadd.f32 %v706, %v1639
    %v1641 = vpop.f32.mrf.mxu0
    %v1642 = vadd.f32 %v706, %v1641
    %1643 = vmatmul.bf16.gmra.mxu0 %v633
    %v1644 = vpop.f32.mrf.mxu0
    %v1645 = vadd.f32 %v706, %v1644
    %v1646 = vpop.f32.mrf.mxu0
    %v1647 = vadd.f32 %v706, %v1646
    %1648 = vmatmul.bf16.gmra.mxu0 %v635
    %v1649 = vpop.f32.mrf.mxu0
    %v1650 = vadd.f32 %v706, %v1649
    %v1651 = vpop.f32.mrf.mxu0
    %v1652 = vadd.f32 %v706, %v1651
    %1653 = vdwg.mxu0
    %1654 = vmatpush.bf16.msra.mxu0 %v966
    %1655 = vmatpush.bf16.msra.mxu0 %v962
    %1656 = vmatpush.bf16.msra.mxu0 %v958
    %1657 = vmatpush.bf16.msra.mxu0 %v954
    %1658 = vmatpush.bf16.msra.mxu0 %v950
    %1659 = vmatpush.bf16.msra.mxu0 %v946
    %1660 = vmatpush.bf16.msra.mxu0 %v942
    %1661 = vmatpush.bf16.msra.mxu0 %v938
    %1662 = vmatmul.bf16.gmra.mxu0 %v606
    %v1663 = vpop.f32.mrf.mxu0
    %v1664 = vadd.f32 %v1575, %v1663
    %v1665 = vpop.f32.mrf.mxu0
    %v1666 = vadd.f32 %v1577, %v1665
    %1667 = vmatmul.bf16.gmra.mxu0 %v608
    %v1668 = vpop.f32.mrf.mxu0
    %v1669 = vadd.f32 %v1580, %v1668
    %v1670 = vpop.f32.mrf.mxu0
    %v1671 = vadd.f32 %v1582, %v1670
    %1672 = vmatmul.bf16.gmra.mxu0 %v610
    %v1673 = vpop.f32.mrf.mxu0
    %v1674 = vadd.f32 %v1585, %v1673
    %v1675 = vpop.f32.mrf.mxu0
    %v1676 = vadd.f32 %v1587, %v1675
    %1677 = vmatmul.bf16.gmra.mxu0 %v612
    %v1678 = vpop.f32.mrf.mxu0
    %v1679 = vadd.f32 %v1590, %v1678
    %v1680 = vpop.f32.mrf.mxu0
    %v1681 = vadd.f32 %v1592, %v1680
    %1682 = vmatmul.bf16.gmra.mxu0 %v614
    %v1683 = vpop.f32.mrf.mxu0
    %v1684 = vadd.f32 %v1595, %v1683
    %v1685 = vpop.f32.mrf.mxu0
    %v1686 = vadd.f32 %v1597, %v1685
    %1687 = vmatmul.bf16.gmra.mxu0 %v616
    %v1688 = vpop.f32.mrf.mxu0
    %v1689 = vadd.f32 %v1600, %v1688
    %v1690 = vpop.f32.mrf.mxu0
    %v1691 = vadd.f32 %v1602, %v1690
    %1692 = vmatmul.bf16.gmra.mxu0 %v618
    %v1693 = vpop.f32.mrf.mxu0
    %v1694 = vadd.f32 %v1605, %v1693
    %v1695 = vpop.f32.mrf.mxu0
    %v1696 = vadd.f32 %v1607, %v1695
    %1697 = vmatmul.bf16.gmra.mxu0 %v620
    %v1698 = vpop.f32.mrf.mxu0
    %v1699 = vadd.f32 %v1610, %v1698
    %v1700 = vpop.f32.mrf.mxu0
    %v1701 = vadd.f32 %v1612, %v1700
    %1702 = vmatmul.bf16.gmra.mxu0 %v622
    %v1703 = vpop.f32.mrf.mxu0
    %v1704 = vadd.f32 %v1615, %v1703
    %v1705 = vpop.f32.mrf.mxu0
    %v1706 = vadd.f32 %v1617, %v1705
    %1707 = vmatmul.bf16.gmra.mxu0 %v624
    %v1708 = vpop.f32.mrf.mxu0
    %v1709 = vadd.f32 %v1620, %v1708
    %v1710 = vpop.f32.mrf.mxu0
    %v1711 = vadd.f32 %v1622, %v1710
    %1712 = vmatmul.bf16.gmra.mxu0 %v626
    %v1713 = vpop.f32.mrf.mxu0
    %v1714 = vadd.f32 %v1625, %v1713
    %v1715 = vpop.f32.mrf.mxu0
    %v1716 = vadd.f32 %v1627, %v1715
    %1717 = vmatmul.bf16.gmra.mxu0 %v628
    %v1718 = vpop.f32.mrf.mxu0
    %v1719 = vadd.f32 %v1630, %v1718
    %v1720 = vpop.f32.mrf.mxu0
    %v1721 = vadd.f32 %v1632, %v1720
    %1722 = vmatmul.bf16.gmra.mxu0 %v630
    %v1723 = vpop.f32.mrf.mxu0
    %v1724 = vadd.f32 %v1635, %v1723
    %v1725 = vpop.f32.mrf.mxu0
    %v1726 = vadd.f32 %v1637, %v1725
    %1727 = vmatmul.bf16.gmra.mxu0 %v632
    %v1728 = vpop.f32.mrf.mxu0
    %v1729 = vadd.f32 %v1640, %v1728
    %v1730 = vpop.f32.mrf.mxu0
    %v1731 = vadd.f32 %v1642, %v1730
    %1732 = vmatmul.bf16.gmra.mxu0 %v634
    %v1733 = vpop.f32.mrf.mxu0
    %v1734 = vadd.f32 %v1645, %v1733
    %v1735 = vpop.f32.mrf.mxu0
    %v1736 = vadd.f32 %v1647, %v1735
    %1737 = vmatmul.bf16.gmra.mxu0 %v636
    %v1738 = vpop.f32.mrf.mxu0
    %v1739 = vadd.f32 %v1650, %v1738
    %v1740 = vpop.f32.mrf.mxu0
    %v1741 = vadd.f32 %v1652, %v1740
    %1742 = vdwg.mxu0
    %v1743 = vadd.f32 %v1130, %v1132
    %v1744 = vadd.f32 %v1743, %v1135
    %v1745 = vadd.f32 %v1744, %v1137
    %v1746 = vadd.f32 %v1745, %v1140
    %v1747 = vadd.f32 %v1746, %v1142
    %v1748 = vadd.f32 %v1747, %v1145
    %v1749 = vadd.f32 %v1748, %v1147
    %v1750 = vadd.f32 %v1749, %v1150
    %v1751 = vadd.f32 %v1750, %v1152
    %v1752 = vadd.f32 %v1751, %v1155
    %v1753 = vadd.f32 %v1752, %v1157
    %v1754 = vadd.f32 %v1753, %v1160
    %v1755 = vadd.f32 %v1754, %v1162
    %v1756 = vadd.f32 %v1755, %v1165
    %v1757 = vadd.f32 %v1756, %v1167
    %v1758 = vadd.f32 %v1757, %v1170
    %v1759 = vadd.f32 %v1758, %v1172
    %v1760 = vadd.f32 %v1759, %v1175
    %v1761 = vadd.f32 %v1760, %v1177
    %v1762 = vadd.f32 %v1761, %v1180
    %v1763 = vadd.f32 %v1762, %v1182
    %v1764 = vadd.f32 %v1763, %v1185
    %v1765 = vadd.f32 %v1764, %v1187
    %v1766 = vadd.f32 %v1765, %v1190
    %v1767 = vadd.f32 %v1766, %v1192
    %v1768 = vadd.f32 %v1767, %v1195
    %v1769 = vadd.f32 %v1768, %v1197
    %v1770 = vadd.f32 %v1769, %v1200
    %v1771 = vadd.f32 %v1770, %v1202
    %v1772 = vadd.f32 %v1771, %v1205
    %v1773 = vadd.f32 %v1772, %v1207
    %v1774 = vrot.slane %v1773, 4
    %v1775 = vadd.f32 %v1773, %v1774
    %v1776 = vrot.slane %v1775, 2
    %v1777 = vadd.f32 %v1775, %v1776
    %v1778 = vrot.slane %v1777, 1
    %v1779 = vadd.f32 %v1777, %v1778
    %v1780 = vadd.f32 %v1308, %v1310
    %v1781 = vadd.f32 %v1780, %v1313
    %v1782 = vadd.f32 %v1781, %v1315
    %v1783 = vadd.f32 %v1782, %v1318
    %v1784 = vadd.f32 %v1783, %v1320
    %v1785 = vadd.f32 %v1784, %v1323
    %v1786 = vadd.f32 %v1785, %v1325
    %v1787 = vadd.f32 %v1786, %v1328
    %v1788 = vadd.f32 %v1787, %v1330
    %v1789 = vadd.f32 %v1788, %v1333
    %v1790 = vadd.f32 %v1789, %v1335
    %v1791 = vadd.f32 %v1790, %v1338
    %v1792 = vadd.f32 %v1791, %v1340
    %v1793 = vadd.f32 %v1792, %v1343
    %v1794 = vadd.f32 %v1793, %v1345
    %v1795 = vadd.f32 %v1794, %v1348
    %v1796 = vadd.f32 %v1795, %v1350
    %v1797 = vadd.f32 %v1796, %v1353
    %v1798 = vadd.f32 %v1797, %v1355
    %v1799 = vadd.f32 %v1798, %v1358
    %v1800 = vadd.f32 %v1799, %v1360
    %v1801 = vadd.f32 %v1800, %v1363
    %v1802 = vadd.f32 %v1801, %v1365
    %v1803 = vadd.f32 %v1802, %v1368
    %v1804 = vadd.f32 %v1803, %v1370
    %v1805 = vadd.f32 %v1804, %v1373
    %v1806 = vadd.f32 %v1805, %v1375
    %v1807 = vadd.f32 %v1806, %v1378
    %v1808 = vadd.f32 %v1807, %v1380
    %v1809 = vadd.f32 %v1808, %v1383
    %v1810 = vadd.f32 %v1809, %v1385
    %v1811 = vrot.slane %v1810, 4
    %v1812 = vadd.f32 %v1810, %v1811
    %v1813 = vrot.slane %v1812, 2
    %v1814 = vadd.f32 %v1812, %v1813
    %v1815 = vrot.slane %v1814, 1
    %v1816 = vadd.f32 %v1814, %v1815
    %v1817 = vadd.f32 %v1486, %v1488
    %v1818 = vadd.f32 %v1817, %v1491
    %v1819 = vadd.f32 %v1818, %v1493
    %v1820 = vadd.f32 %v1819, %v1496
    %v1821 = vadd.f32 %v1820, %v1498
    %v1822 = vadd.f32 %v1821, %v1501
    %v1823 = vadd.f32 %v1822, %v1503
    %v1824 = vadd.f32 %v1823, %v1506
    %v1825 = vadd.f32 %v1824, %v1508
    %v1826 = vadd.f32 %v1825, %v1511
    %v1827 = vadd.f32 %v1826, %v1513
    %v1828 = vadd.f32 %v1827, %v1516
    %v1829 = vadd.f32 %v1828, %v1518
    %v1830 = vadd.f32 %v1829, %v1521
    %v1831 = vadd.f32 %v1830, %v1523
    %v1832 = vadd.f32 %v1831, %v1526
    %v1833 = vadd.f32 %v1832, %v1528
    %v1834 = vadd.f32 %v1833, %v1531
    %v1835 = vadd.f32 %v1834, %v1533
    %v1836 = vadd.f32 %v1835, %v1536
    %v1837 = vadd.f32 %v1836, %v1538
    %v1838 = vadd.f32 %v1837, %v1541
    %v1839 = vadd.f32 %v1838, %v1543
    %v1840 = vadd.f32 %v1839, %v1546
    %v1841 = vadd.f32 %v1840, %v1548
    %v1842 = vadd.f32 %v1841, %v1551
    %v1843 = vadd.f32 %v1842, %v1553
    %v1844 = vadd.f32 %v1843, %v1556
    %v1845 = vadd.f32 %v1844, %v1558
    %v1846 = vadd.f32 %v1845, %v1561
    %v1847 = vadd.f32 %v1846, %v1563
    %v1848 = vrot.slane %v1847, 4
    %v1849 = vadd.f32 %v1847, %v1848
    %v1850 = vrot.slane %v1849, 2
    %v1851 = vadd.f32 %v1849, %v1850
    %v1852 = vrot.slane %v1851, 1
    %v1853 = vadd.f32 %v1851, %v1852
    %v1854 = vadd.f32 %v1664, %v1666
    %v1855 = vadd.f32 %v1854, %v1669
    %v1856 = vadd.f32 %v1855, %v1671
    %v1857 = vadd.f32 %v1856, %v1674
    %v1858 = vadd.f32 %v1857, %v1676
    %v1859 = vadd.f32 %v1858, %v1679
    %v1860 = vadd.f32 %v1859, %v1681
    %v1861 = vadd.f32 %v1860, %v1684
    %v1862 = vadd.f32 %v1861, %v1686
    %v1863 = vadd.f32 %v1862, %v1689
    %v1864 = vadd.f32 %v1863, %v1691
    %v1865 = vadd.f32 %v1864, %v1694
    %v1866 = vadd.f32 %v1865, %v1696
    %v1867 = vadd.f32 %v1866, %v1699
    %v1868 = vadd.f32 %v1867, %v1701
    %v1869 = vadd.f32 %v1868, %v1704
    %v1870 = vadd.f32 %v1869, %v1706
    %v1871 = vadd.f32 %v1870, %v1709
    %v1872 = vadd.f32 %v1871, %v1711
    %v1873 = vadd.f32 %v1872, %v1714
    %v1874 = vadd.f32 %v1873, %v1716
    %v1875 = vadd.f32 %v1874, %v1719
    %v1876 = vadd.f32 %v1875, %v1721
    %v1877 = vadd.f32 %v1876, %v1724
    %v1878 = vadd.f32 %v1877, %v1726
    %v1879 = vadd.f32 %v1878, %v1729
    %v1880 = vadd.f32 %v1879, %v1731
    %v1881 = vadd.f32 %v1880, %v1734
    %v1882 = vadd.f32 %v1881, %v1736
    %v1883 = vadd.f32 %v1882, %v1739
    %v1884 = vadd.f32 %v1883, %v1741
    %v1885 = vrot.slane %v1884, 4
    %v1886 = vadd.f32 %v1884, %v1885
    %v1887 = vrot.slane %v1886, 2
    %v1888 = vadd.f32 %v1886, %v1887
    %v1889 = vrot.slane %v1888, 1
    %v1890 = vadd.f32 %v1888, %v1889
    %v1891 = vrcp.pop 256.0
    %v1892 = vmul.f32 256.0, %v1891
    %v1893 = vsub.f32 1.0, %v1892
    %v1894 = vmul.f32 %v1891, %v1893
    %v1895 = vadd.f32 %v1891, %v1894
    %vm1896 = vweird.f32 %v1891
    %v1897 = vsel %vm1896, %v1891, %v1895
    %v1898 = vmul.f32 %v1779, %v1897
    %v1899 = vmul.f32 %v1816, %v1897
    %v1900 = vmul.f32 %v1853, %v1897
    %v1901 = vmul.f32 %v1890, %v1897
    %v1902 = vsub.f32 %v1130, %v1898
    %v1903 = vsub.f32 %v1308, %v1899
    %v1904 = vsub.f32 %v1486, %v1900
    %v1905 = vsub.f32 %v1664, %v1901
    %v1906 = vsub.f32 %v1132, %v1898
    %v1907 = vsub.f32 %v1310, %v1899
    %v1908 = vsub.f32 %v1488, %v1900
    %v1909 = vsub.f32 %v1666, %v1901
    %v1910 = vsub.f32 %v1135, %v1898
    %v1911 = vsub.f32 %v1313, %v1899
    %v1912 = vsub.f32 %v1491, %v1900
    %v1913 = vsub.f32 %v1669, %v1901
    %v1914 = vsub.f32 %v1137, %v1898
    %v1915 = vsub.f32 %v1315, %v1899
    %v1916 = vsub.f32 %v1493, %v1900
    %v1917 = vsub.f32 %v1671, %v1901
    %v1918 = vsub.f32 %v1140, %v1898
    %v1919 = vsub.f32 %v1318, %v1899
    %v1920 = vsub.f32 %v1496, %v1900
    %v1921 = vsub.f32 %v1674, %v1901
    %v1922 = vsub.f32 %v1142, %v1898
    %v1923 = vsub.f32 %v1320, %v1899
    %v1924 = vsub.f32 %v1498, %v1900
    %v1925 = vsub.f32 %v1676, %v1901
    %v1926 = vsub.f32 %v1145, %v1898
    %v1927 = vsub.f32 %v1323, %v1899
    %v1928 = vsub.f32 %v1501, %v1900
    %v1929 = vsub.f32 %v1679, %v1901
    %v1930 = vsub.f32 %v1147, %v1898
    %v1931 = vsub.f32 %v1325, %v1899
    %v1932 = vsub.f32 %v1503, %v1900
    %v1933 = vsub.f32 %v1681, %v1901
    %v1934 = vsub.f32 %v1150, %v1898
    %v1935 = vsub.f32 %v1328, %v1899
    %v1936 = vsub.f32 %v1506, %v1900
    %v1937 = vsub.f32 %v1684, %v1901
    %v1938 = vsub.f32 %v1152, %v1898
    %v1939 = vsub.f32 %v1330, %v1899
    %v1940 = vsub.f32 %v1508, %v1900
    %v1941 = vsub.f32 %v1686, %v1901
    %v1942 = vsub.f32 %v1155, %v1898
    %v1943 = vsub.f32 %v1333, %v1899
    %v1944 = vsub.f32 %v1511, %v1900
    %v1945 = vsub.f32 %v1689, %v1901
    %v1946 = vsub.f32 %v1157, %v1898
    %v1947 = vsub.f32 %v1335, %v1899
    %v1948 = vsub.f32 %v1513, %v1900
    %v1949 = vsub.f32 %v1691, %v1901
    %v1950 = vsub.f32 %v1160, %v1898
    %v1951 = vsub.f32 %v1338, %v1899
    %v1952 = vsub.f32 %v1516, %v1900
    %v1953 = vsub.f32 %v1694, %v1901
    %v1954 = vsub.f32 %v1162, %v1898
    %v1955 = vsub.f32 %v1340, %v1899
    %v1956 = vsub.f32 %v1518, %v1900
    %v1957 = vsub.f32 %v1696, %v1901
    %v1958 = vsub.f32 %v1165, %v1898
    %v1959 = vsub.f32 %v1343, %v1899
    %v1960 = vsub.f32 %v1521, %v1900
    %v1961 = vsub.f32 %v1699, %v1901
    %v1962 = vsub.f32 %v1167, %v1898
    %v1963 = vsub.f32 %v1345, %v1899
    %v1964 = vsub.f32 %v1523, %v1900
    %v1965 = vsub.f32 %v1701, %v1901
    %v1966 = vsub.f32 %v1170, %v1898
    %v1967 = vsub.f32 %v1348, %v1899
    %v1968 = vsub.f32 %v1526, %v1900
    %v1969 = vsub.f32 %v1704, %v1901
    %v1970 = vsub.f32 %v1172, %v1898
    %v1971 = vsub.f32 %v1350, %v1899
    %v1972 = vsub.f32 %v1528, %v1900
    %v1973 = vsub.f32 %v1706, %v1901
    %v1974 = vsub.f32 %v1175, %v1898
    %v1975 = vsub.f32 %v1353, %v1899
    %v1976 = vsub.f32 %v1531, %v1900
    %v1977 = vsub.f32 %v1709, %v1901
    %v1978 = vsub.f32 %v1177, %v1898
    %v1979 = vsub.f32 %v1355, %v1899
    %v1980 = vsub.f32 %v1533, %v1900
    %v1981 = vsub.f32 %v1711, %v1901
    %v1982 = vsub.f32 %v1180, %v1898
    %v1983 = vsub.f32 %v1358, %v1899
    %v1984 = vsub.f32 %v1536, %v1900
    %v1985 = vsub.f32 %v1714, %v1901
    %v1986 = vsub.f32 %v1182, %v1898
    %v1987 = vsub.f32 %v1360, %v1899
    %v1988 = vsub.f32 %v1538, %v1900
    %v1989 = vsub.f32 %v1716, %v1901
    %v1990 = vsub.f32 %v1185, %v1898
    %v1991 = vsub.f32 %v1363, %v1899
    %v1992 = vsub.f32 %v1541, %v1900
    %v1993 = vsub.f32 %v1719, %v1901
    %v1994 = vsub.f32 %v1187, %v1898
    %v1995 = vsub.f32 %v1365, %v1899
    %v1996 = vsub.f32 %v1543, %v1900
    %v1997 = vsub.f32 %v1721, %v1901
    %v1998 = vsub.f32 %v1190, %v1898
    %v1999 = vsub.f32 %v1368, %v1899
    %v2000 = vsub.f32 %v1546, %v1900
    %v2001 = vsub.f32 %v1724, %v1901
    %v2002 = vsub.f32 %v1192, %v1898
    %v2003 = vsub.f32 %v1370, %v1899
    %v2004 = vsub.f32 %v1548, %v1900
    %v2005 = vsub.f32 %v1726, %v1901
    %v2006 = vsub.f32 %v1195, %v1898
    %v2007 = vsub.f32 %v1373, %v1899
    %v2008 = vsub.f32 %v1551, %v1900
    %v2009 = vsub.f32 %v1729, %v1901
    %v2010 = vsub.f32 %v1197, %v1898
    %v2011 = vsub.f32 %v1375, %v1899
    %v2012 = vsub.f32 %v1553, %v1900
    %v2013 = vsub.f32 %v1731, %v1901
    %v2014 = vsub.f32 %v1200, %v1898
    %v2015 = vsub.f32 %v1378, %v1899
    %v2016 = vsub.f32 %v1556, %v1900
    %v2017 = vsub.f32 %v1734, %v1901
    %v2018 = vsub.f32 %v1202, %v1898
    %v2019 = vsub.f32 %v1380, %v1899
    %v2020 = vsub.f32 %v1558, %v1900
    %v2021 = vsub.f32 %v1736, %v1901
    %v2022 = vsub.f32 %v1205, %v1898
    %v2023 = vsub.f32 %v1383, %v1899
    %v2024 = vsub.f32 %v1561, %v1900
    %v2025 = vsub.f32 %v1739, %v1901
    %v2026 = vsub.f32 %v1207, %v1898
    %v2027 = vsub.f32 %v1385, %v1899
    %v2028 = vsub.f32 %v1563, %v1900
    %v2029 = vsub.f32 %v1741, %v1901
    %v2030 = vmul.f32 %v1902, %v1902
    %v2031 = vmul.f32 %v1903, %v1903
    %v2032 = vmul.f32 %v1904, %v1904
    %v2033 = vmul.f32 %v1905, %v1905
    %v2034 = vmul.f32 %v1906, %v1906
    %v2035 = vmul.f32 %v1907, %v1907
    %v2036 = vmul.f32 %v1908, %v1908
    %v2037 = vmul.f32 %v1909, %v1909
    %v2038 = vmul.f32 %v1910, %v1910
    %v2039 = vmul.f32 %v1911, %v1911
    %v2040 = vmul.f32 %v1912, %v1912
    %v2041 = vmul.f32 %v1913, %v1913
    %v2042 = vmul.f32 %v1914, %v1914
    %v2043 = vmul.f32 %v1915, %v1915
    %v2044 = vmul.f32 %v1916, %v1916
    %v2045 = vmul.f32 %v1917, %v1917
    %v2046 = vmul.f32 %v1918, %v1918
    %v2047 = vmul.f32 %v1919, %v1919
    %v2048 = vmul.f32 %v1920, %v1920
    %v2049 = vmul.f32 %v1921, %v1921
    %v2050 = vmul.f32 %v1922, %v1922
    %v2051 = vmul.f32 %v1923, %v1923
    %v2052 = vmul.f32 %v1924, %v1924
    %v2053 = vmul.f32 %v1925, %v1925
    %v2054 = vmul.f32 %v1926, %v1926
    %v2055 = vmul.f32 %v1927, %v1927
    %v2056 = vmul.f32 %v1928, %v1928
    %v2057 = vmul.f32 %v1929, %v1929
    %v2058 = vmul.f32 %v1930, %v1930
    %v2059 = vmul.f32 %v1931, %v1931
    %v2060 = vmul.f32 %v1932, %v1932
    %v2061 = vmul.f32 %v1933, %v1933
    %v2062 = vmul.f32 %v1934, %v1934
    %v2063 = vmul.f32 %v1935, %v1935
    %v2064 = vmul.f32 %v1936, %v1936
    %v2065 = vmul.f32 %v1937, %v1937
    %v2066 = vmul.f32 %v1938, %v1938
    %v2067 = vmul.f32 %v1939, %v1939
    %v2068 = vmul.f32 %v1940, %v1940
    %v2069 = vmul.f32 %v1941, %v1941
    %v2070 = vmul.f32 %v1942, %v1942
    %v2071 = vmul.f32 %v1943, %v1943
    %v2072 = vmul.f32 %v1944, %v1944
    %v2073 = vmul.f32 %v1945, %v1945
    %v2074 = vmul.f32 %v1946, %v1946
    %v2075 = vmul.f32 %v1947, %v1947
    %v2076 = vmul.f32 %v1948, %v1948
    %v2077 = vmul.f32 %v1949, %v1949
    %v2078 = vmul.f32 %v1950, %v1950
    %v2079 = vmul.f32 %v1951, %v1951
    %v2080 = vmul.f32 %v1952, %v1952
    %v2081 = vmul.f32 %v1953, %v1953
    %v2082 = vmul.f32 %v1954, %v1954
    %v2083 = vmul.f32 %v1955, %v1955
    %v2084 = vmul.f32 %v1956, %v1956
    %v2085 = vmul.f32 %v1957, %v1957
    %v2086 = vmul.f32 %v1958, %v1958
    %v2087 = vmul.f32 %v1959, %v1959
    %v2088 = vmul.f32 %v1960, %v1960
    %v2089 = vmul.f32 %v1961, %v1961
    %v2090 = vmul.f32 %v1962, %v1962
    %v2091 = vmul.f32 %v1963, %v1963
    %v2092 = vmul.f32 %v1964, %v1964
    %v2093 = vmul.f32 %v1965, %v1965
    %v2094 = vmul.f32 %v1966, %v1966
    %v2095 = vmul.f32 %v1967, %v1967
    %v2096 = vmul.f32 %v1968, %v1968
    %v2097 = vmul.f32 %v1969, %v1969
    %v2098 = vmul.f32 %v1970, %v1970
    %v2099 = vmul.f32 %v1971, %v1971
    %v2100 = vmul.f32 %v1972, %v1972
    %v2101 = vmul.f32 %v1973, %v1973
    %v2102 = vmul.f32 %v1974, %v1974
    %v2103 = vmul.f32 %v1975, %v1975
    %v2104 = vmul.f32 %v1976, %v1976
    %v2105 = vmul.f32 %v1977, %v1977
    %v2106 = vmul.f32 %v1978, %v1978
    %v2107 = vmul.f32 %v1979, %v1979
    %v2108 = vmul.f32 %v1980, %v1980
    %v2109 = vmul.f32 %v1981, %v1981
    %v2110 = vmul.f32 %v1982, %v1982
    %v2111 = vmul.f32 %v1983, %v1983
    %v2112 = vmul.f32 %v1984, %v1984
    %v2113 = vmul.f32 %v1985, %v1985
    %v2114 = vmul.f32 %v1986, %v1986
    %v2115 = vmul.f32 %v1987, %v1987
    %v2116 = vmul.f32 %v1988, %v1988
    %v2117 = vmul.f32 %v1989, %v1989
    %v2118 = vmul.f32 %v1990, %v1990
    %v2119 = vmul.f32 %v1991, %v1991
    %v2120 = vmul.f32 %v1992, %v1992
    %v2121 = vmul.f32 %v1993, %v1993
    %v2122 = vmul.f32 %v1994, %v1994
    %v2123 = vmul.f32 %v1995, %v1995
    %v2124 = vmul.f32 %v1996, %v1996
    %v2125 = vmul.f32 %v1997, %v1997
    %v2126 = vmul.f32 %v1998, %v1998
    %v2127 = vmul.f32 %v1999, %v1999
    %v2128 = vmul.f32 %v2000, %v2000
    %v2129 = vmul.f32 %v2001, %v2001
    %v2130 = vmul.f32 %v2002, %v2002
    %v2131 = vmul.f32 %v2003, %v2003
    %v2132 = vmul.f32 %v2004, %v2004
    %v2133 = vmul.f32 %v2005, %v2005
    %v2134 = vmul.f32 %v2006, %v2006
    %v2135 = vmul.f32 %v2007, %v2007
    %v2136 = vmul.f32 %v2008, %v2008
    %v2137 = vmul.f32 %v2009, %v2009
    %v2138 = vmul.f32 %v2010, %v2010
    %v2139 = vmul.f32 %v2011, %v2011
    %v2140 = vmul.f32 %v2012, %v2012
    %v2141 = vmul.f32 %v2013, %v2013
    %v2142 = vmul.f32 %v2014, %v2014
    %v2143 = vmul.f32 %v2015, %v2015
    %v2144 = vmul.f32 %v2016, %v2016
    %v2145 = vmul.f32 %v2017, %v2017
    %v2146 = vmul.f32 %v2018, %v2018
    %v2147 = vmul.f32 %v2019, %v2019
    %v2148 = vmul.f32 %v2020, %v2020
    %v2149 = vmul.f32 %v2021, %v2021
    %v2150 = vmul.f32 %v2022, %v2022
    %v2151 = vmul.f32 %v2023, %v2023
    %v2152 = vmul.f32 %v2024, %v2024
    %v2153 = vmul.f32 %v2025, %v2025
    %v2154 = vmul.f32 %v2026, %v2026
    %v2155 = vmul.f32 %v2027, %v2027
    %v2156 = vmul.f32 %v2028, %v2028
    %v2157 = vmul.f32 %v2029, %v2029
    %v2158 = vadd.f32 %v2030, %v2034
    %v2159 = vadd.f32 %v2158, %v2038
    %v2160 = vadd.f32 %v2159, %v2042
    %v2161 = vadd.f32 %v2160, %v2046
    %v2162 = vadd.f32 %v2161, %v2050
    %v2163 = vadd.f32 %v2162, %v2054
    %v2164 = vadd.f32 %v2163, %v2058
    %v2165 = vadd.f32 %v2164, %v2062
    %v2166 = vadd.f32 %v2165, %v2066
    %v2167 = vadd.f32 %v2166, %v2070
    %v2168 = vadd.f32 %v2167, %v2074
    %v2169 = vadd.f32 %v2168, %v2078
    %v2170 = vadd.f32 %v2169, %v2082
    %v2171 = vadd.f32 %v2170, %v2086
    %v2172 = vadd.f32 %v2171, %v2090
    %v2173 = vadd.f32 %v2172, %v2094
    %v2174 = vadd.f32 %v2173, %v2098
    %v2175 = vadd.f32 %v2174, %v2102
    %v2176 = vadd.f32 %v2175, %v2106
    %v2177 = vadd.f32 %v2176, %v2110
    %v2178 = vadd.f32 %v2177, %v2114
    %v2179 = vadd.f32 %v2178, %v2118
    %v2180 = vadd.f32 %v2179, %v2122
    %v2181 = vadd.f32 %v2180, %v2126
    %v2182 = vadd.f32 %v2181, %v2130
    %v2183 = vadd.f32 %v2182, %v2134
    %v2184 = vadd.f32 %v2183, %v2138
    %v2185 = vadd.f32 %v2184, %v2142
    %v2186 = vadd.f32 %v2185, %v2146
    %v2187 = vadd.f32 %v2186, %v2150
    %v2188 = vadd.f32 %v2187, %v2154
    %v2189 = vrot.slane %v2188, 4
    %v2190 = vadd.f32 %v2188, %v2189
    %v2191 = vrot.slane %v2190, 2
    %v2192 = vadd.f32 %v2190, %v2191
    %v2193 = vrot.slane %v2192, 1
    %v2194 = vadd.f32 %v2192, %v2193
    %v2195 = vadd.f32 %v2031, %v2035
    %v2196 = vadd.f32 %v2195, %v2039
    %v2197 = vadd.f32 %v2196, %v2043
    %v2198 = vadd.f32 %v2197, %v2047
    %v2199 = vadd.f32 %v2198, %v2051
    %v2200 = vadd.f32 %v2199, %v2055
    %v2201 = vadd.f32 %v2200, %v2059
    %v2202 = vadd.f32 %v2201, %v2063
    %v2203 = vadd.f32 %v2202, %v2067
    %v2204 = vadd.f32 %v2203, %v2071
    %v2205 = vadd.f32 %v2204, %v2075
    %v2206 = vadd.f32 %v2205, %v2079
    %v2207 = vadd.f32 %v2206, %v2083
    %v2208 = vadd.f32 %v2207, %v2087
    %v2209 = vadd.f32 %v2208, %v2091
    %v2210 = vadd.f32 %v2209, %v2095
    %v2211 = vadd.f32 %v2210, %v2099
    %v2212 = vadd.f32 %v2211, %v2103
    %v2213 = vadd.f32 %v2212, %v2107
    %v2214 = vadd.f32 %v2213, %v2111
    %v2215 = vadd.f32 %v2214, %v2115
    %v2216 = vadd.f32 %v2215, %v2119
    %v2217 = vadd.f32 %v2216, %v2123
    %v2218 = vadd.f32 %v2217, %v2127
    %v2219 = vadd.f32 %v2218, %v2131
    %v2220 = vadd.f32 %v2219, %v2135
    %v2221 = vadd.f32 %v2220, %v2139
    %v2222 = vadd.f32 %v2221, %v2143
    %v2223 = vadd.f32 %v2222, %v2147
    %v2224 = vadd.f32 %v2223, %v2151
    %v2225 = vadd.f32 %v2224, %v2155
    %v2226 = vrot.slane %v2225, 4
    %v2227 = vadd.f32 %v2225, %v2226
    %v2228 = vrot.slane %v2227, 2
    %v2229 = vadd.f32 %v2227, %v2228
    %v2230 = vrot.slane %v2229, 1
    %v2231 = vadd.f32 %v2229, %v2230
    %v2232 = vadd.f32 %v2032, %v2036
    %v2233 = vadd.f32 %v2232, %v2040
    %v2234 = vadd.f32 %v2233, %v2044
    %v2235 = vadd.f32 %v2234, %v2048
    %v2236 = vadd.f32 %v2235, %v2052
    %v2237 = vadd.f32 %v2236, %v2056
    %v2238 = vadd.f32 %v2237, %v2060
    %v2239 = vadd.f32 %v2238, %v2064
    %v2240 = vadd.f32 %v2239, %v2068
    %v2241 = vadd.f32 %v2240, %v2072
    %v2242 = vadd.f32 %v2241, %v2076
    %v2243 = vadd.f32 %v2242, %v2080
    %v2244 = vadd.f32 %v2243, %v2084
    %v2245 = vadd.f32 %v2244, %v2088
    %v2246 = vadd.f32 %v2245, %v2092
    %v2247 = vadd.f32 %v2246, %v2096
    %v2248 = vadd.f32 %v2247, %v2100
    %v2249 = vadd.f32 %v2248, %v2104
    %v2250 = vadd.f32 %v2249, %v2108
    %v2251 = vadd.f32 %v2250, %v2112
    %v2252 = vadd.f32 %v2251, %v2116
    %v2253 = vadd.f32 %v2252, %v2120
    %v2254 = vadd.f32 %v2253, %v2124
    %v2255 = vadd.f32 %v2254, %v2128
    %v2256 = vadd.f32 %v2255, %v2132
    %v2257 = vadd.f32 %v2256, %v2136
    %v2258 = vadd.f32 %v2257, %v2140
    %v2259 = vadd.f32 %v2258, %v2144
    %v2260 = vadd.f32 %v2259, %v2148
    %v2261 = vadd.f32 %v2260, %v2152
    %v2262 = vadd.f32 %v2261, %v2156
    %v2263 = vrot.slane %v2262, 4
    %v2264 = vadd.f32 %v2262, %v2263
    %v2265 = vrot.slane %v2264, 2
    %v2266 = vadd.f32 %v2264, %v2265
    %v2267 = vrot.slane %v2266, 1
    %v2268 = vadd.f32 %v2266, %v2267
    %v2269 = vadd.f32 %v2033, %v2037
    %v2270 = vadd.f32 %v2269, %v2041
    %v2271 = vadd.f32 %v2270, %v2045
    %v2272 = vadd.f32 %v2271, %v2049
    %v2273 = vadd.f32 %v2272, %v2053
    %v2274 = vadd.f32 %v2273, %v2057
    %v2275 = vadd.f32 %v2274, %v2061
    %v2276 = vadd.f32 %v2275, %v2065
    %v2277 = vadd.f32 %v2276, %v2069
    %v2278 = vadd.f32 %v2277, %v2073
    %v2279 = vadd.f32 %v2278, %v2077
    %v2280 = vadd.f32 %v2279, %v2081
    %v2281 = vadd.f32 %v2280, %v2085
    %v2282 = vadd.f32 %v2281, %v2089
    %v2283 = vadd.f32 %v2282, %v2093
    %v2284 = vadd.f32 %v2283, %v2097
    %v2285 = vadd.f32 %v2284, %v2101
    %v2286 = vadd.f32 %v2285, %v2105
    %v2287 = vadd.f32 %v2286, %v2109
    %v2288 = vadd.f32 %v2287, %v2113
    %v2289 = vadd.f32 %v2288, %v2117
    %v2290 = vadd.f32 %v2289, %v2121
    %v2291 = vadd.f32 %v2290, %v2125
    %v2292 = vadd.f32 %v2291, %v2129
    %v2293 = vadd.f32 %v2292, %v2133
    %v2294 = vadd.f32 %v2293, %v2137
    %v2295 = vadd.f32 %v2294, %v2141
    %v2296 = vadd.f32 %v2295, %v2145
    %v2297 = vadd.f32 %v2296, %v2149
    %v2298 = vadd.f32 %v2297, %v2153
    %v2299 = vadd.f32 %v2298, %v2157
    %v2300 = vrot.slane %v2299, 4
    %v2301 = vadd.f32 %v2299, %v2300
    %v2302 = vrot.slane %v2301, 2
    %v2303 = vadd.f32 %v2301, %v2302
    %v2304 = vrot.slane %v2303, 1
    %v2305 = vadd.f32 %v2303, %v2304
    %v2306 = vmul.f32 %v2194, %v1897
    %v2307 = vmul.f32 %v2231, %v1897
    %v2308 = vmul.f32 %v2268, %v1897
    %v2309 = vmul.f32 %v2305, %v1897
    %v2310 = vadd.f32 %v2306, 1e-05
    %v2311 = vadd.f32 %v2307, 1e-05
    %v2312 = vadd.f32 %v2308, 1e-05
    %v2313 = vadd.f32 %v2309, 1e-05
    %v2314 = vrsqrt.pop %v2310
    %v2315 = vmul.f32 %v2314, %v2310
    %v2316 = vmul.f32 %v2315, %v2314
    %v2317 = vmul.f32 0.5, %v2316
    %v2318 = vsub.f32 1.5, %v2317
    %v2319 = vmul.f32 %v2314, %v2318
    %vm2320 = vweird.f32 %v2310
    %vm2321 = vweird.f32 %v2314
    %vm2322 = vmor %vm2320, %vm2321
    %v2323 = vsel %vm2322, %v2314, %v2319
    %v2324 = vrsqrt.pop %v2311
    %v2325 = vmul.f32 %v2324, %v2311
    %v2326 = vmul.f32 %v2325, %v2324
    %v2327 = vmul.f32 0.5, %v2326
    %v2328 = vsub.f32 1.5, %v2327
    %v2329 = vmul.f32 %v2324, %v2328
    %vm2330 = vweird.f32 %v2311
    %vm2331 = vweird.f32 %v2324
    %vm2332 = vmor %vm2330, %vm2331
    %v2333 = vsel %vm2332, %v2324, %v2329
    %v2334 = vrsqrt.pop %v2312
    %v2335 = vmul.f32 %v2334, %v2312
    %v2336 = vmul.f32 %v2335, %v2334
    %v2337 = vmul.f32 0.5, %v2336
    %v2338 = vsub.f32 1.5, %v2337
    %v2339 = vmul.f32 %v2334, %v2338
    %vm2340 = vweird.f32 %v2312
    %vm2341 = vweird.f32 %v2334
    %vm2342 = vmor %vm2340, %vm2341
    %v2343 = vsel %vm2342, %v2334, %v2339
    %v2344 = vrsqrt.pop %v2313
    %v2345 = vmul.f32 %v2344, %v2313
    %v2346 = vmul.f32 %v2345, %v2344
    %v2347 = vmul.f32 0.5, %v2346
    %v2348 = vsub.f32 1.5, %v2347
    %v2349 = vmul.f32 %v2344, %v2348
    %vm2350 = vweird.f32 %v2313
    %vm2351 = vweird.f32 %v2344
    %vm2352 = vmor %vm2350, %vm2351
    %v2353 = vsel %vm2352, %v2344, %v2349
    %v2354 = vmul.f32 %v1902, %v2323
    %v2355 = vmul.f32 %v1903, %v2333
    %v2356 = vmul.f32 %v1904, %v2343
    %v2357 = vmul.f32 %v1905, %v2353
    %v2358 = vmul.f32 %v1906, %v2323
    %v2359 = vmul.f32 %v1907, %v2333
    %v2360 = vmul.f32 %v1908, %v2343
    %v2361 = vmul.f32 %v1909, %v2353
    %v2362 = vmul.f32 %v1910, %v2323
    %v2363 = vmul.f32 %v1911, %v2333
    %v2364 = vmul.f32 %v1912, %v2343
    %v2365 = vmul.f32 %v1913, %v2353
    %v2366 = vmul.f32 %v1914, %v2323
    %v2367 = vmul.f32 %v1915, %v2333
    %v2368 = vmul.f32 %v1916, %v2343
    %v2369 = vmul.f32 %v1917, %v2353
    %v2370 = vmul.f32 %v1918, %v2323
    %v2371 = vmul.f32 %v1919, %v2333
    %v2372 = vmul.f32 %v1920, %v2343
    %v2373 = vmul.f32 %v1921, %v2353
    %v2374 = vmul.f32 %v1922, %v2323
    %v2375 = vmul.f32 %v1923, %v2333
    %v2376 = vmul.f32 %v1924, %v2343
    %v2377 = vmul.f32 %v1925, %v2353
    %v2378 = vmul.f32 %v1926, %v2323
    %v2379 = vmul.f32 %v1927, %v2333
    %v2380 = vmul.f32 %v1928, %v2343
    %v2381 = vmul.f32 %v1929, %v2353
    %v2382 = vmul.f32 %v1930, %v2323
    %v2383 = vmul.f32 %v1931, %v2333
    %v2384 = vmul.f32 %v1932, %v2343
    %v2385 = vmul.f32 %v1933, %v2353
    %v2386 = vmul.f32 %v1934, %v2323
    %v2387 = vmul.f32 %v1935, %v2333
    %v2388 = vmul.f32 %v1936, %v2343
    %v2389 = vmul.f32 %v1937, %v2353
    %v2390 = vmul.f32 %v1938, %v2323
    %v2391 = vmul.f32 %v1939, %v2333
    %v2392 = vmul.f32 %v1940, %v2343
    %v2393 = vmul.f32 %v1941, %v2353
    %v2394 = vmul.f32 %v1942, %v2323
    %v2395 = vmul.f32 %v1943, %v2333
    %v2396 = vmul.f32 %v1944, %v2343
    %v2397 = vmul.f32 %v1945, %v2353
    %v2398 = vmul.f32 %v1946, %v2323
    %v2399 = vmul.f32 %v1947, %v2333
    %v2400 = vmul.f32 %v1948, %v2343
    %v2401 = vmul.f32 %v1949, %v2353
    %v2402 = vmul.f32 %v1950, %v2323
    %v2403 = vmul.f32 %v1951, %v2333
    %v2404 = vmul.f32 %v1952, %v2343
    %v2405 = vmul.f32 %v1953, %v2353
    %v2406 = vmul.f32 %v1954, %v2323
    %v2407 = vmul.f32 %v1955, %v2333
    %v2408 = vmul.f32 %v1956, %v2343
    %v2409 = vmul.f32 %v1957, %v2353
    %v2410 = vmul.f32 %v1958, %v2323
    %v2411 = vmul.f32 %v1959, %v2333
    %v2412 = vmul.f32 %v1960, %v2343
    %v2413 = vmul.f32 %v1961, %v2353
    %v2414 = vmul.f32 %v1962, %v2323
    %v2415 = vmul.f32 %v1963, %v2333
    %v2416 = vmul.f32 %v1964, %v2343
    %v2417 = vmul.f32 %v1965, %v2353
    %v2418 = vmul.f32 %v1966, %v2323
    %v2419 = vmul.f32 %v1967, %v2333
    %v2420 = vmul.f32 %v1968, %v2343
    %v2421 = vmul.f32 %v1969, %v2353
    %v2422 = vmul.f32 %v1970, %v2323
    %v2423 = vmul.f32 %v1971, %v2333
    %v2424 = vmul.f32 %v1972, %v2343
    %v2425 = vmul.f32 %v1973, %v2353
    %v2426 = vmul.f32 %v1974, %v2323
    %v2427 = vmul.f32 %v1975, %v2333
    %v2428 = vmul.f32 %v1976, %v2343
    %v2429 = vmul.f32 %v1977, %v2353
    %v2430 = vmul.f32 %v1978, %v2323
    %v2431 = vmul.f32 %v1979, %v2333
    %v2432 = vmul.f32 %v1980, %v2343
    %v2433 = vmul.f32 %v1981, %v2353
    %v2434 = vmul.f32 %v1982, %v2323
    %v2435 = vmul.f32 %v1983, %v2333
    %v2436 = vmul.f32 %v1984, %v2343
    %v2437 = vmul.f32 %v1985, %v2353
    %v2438 = vmul.f32 %v1986, %v2323
    %v2439 = vmul.f32 %v1987, %v2333
    %v2440 = vmul.f32 %v1988, %v2343
    %v2441 = vmul.f32 %v1989, %v2353
    %v2442 = vmul.f32 %v1990, %v2323
    %v2443 = vmul.f32 %v1991, %v2333
    %v2444 = vmul.f32 %v1992, %v2343
    %v2445 = vmul.f32 %v1993, %v2353
    %v2446 = vmul.f32 %v1994, %v2323
    %v2447 = vmul.f32 %v1995, %v2333
    %v2448 = vmul.f32 %v1996, %v2343
    %v2449 = vmul.f32 %v1997, %v2353
    %v2450 = vmul.f32 %v1998, %v2323
    %v2451 = vmul.f32 %v1999, %v2333
    %v2452 = vmul.f32 %v2000, %v2343
    %v2453 = vmul.f32 %v2001, %v2353
    %v2454 = vmul.f32 %v2002, %v2323
    %v2455 = vmul.f32 %v2003, %v2333
    %v2456 = vmul.f32 %v2004, %v2343
    %v2457 = vmul.f32 %v2005, %v2353
    %v2458 = vmul.f32 %v2006, %v2323
    %v2459 = vmul.f32 %v2007, %v2333
    %v2460 = vmul.f32 %v2008, %v2343
    %v2461 = vmul.f32 %v2009, %v2353
    %v2462 = vmul.f32 %v2010, %v2323
    %v2463 = vmul.f32 %v2011, %v2333
    %v2464 = vmul.f32 %v2012, %v2343
    %v2465 = vmul.f32 %v2013, %v2353
    %v2466 = vmul.f32 %v2014, %v2323
    %v2467 = vmul.f32 %v2015, %v2333
    %v2468 = vmul.f32 %v2016, %v2343
    %v2469 = vmul.f32 %v2017, %v2353
    %v2470 = vmul.f32 %v2018, %v2323
    %v2471 = vmul.f32 %v2019, %v2333
    %v2472 = vmul.f32 %v2020, %v2343
    %v2473 = vmul.f32 %v2021, %v2353
    %v2474 = vmul.f32 %v2022, %v2323
    %v2475 = vmul.f32 %v2023, %v2333
    %v2476 = vmul.f32 %v2024, %v2343
    %v2477 = vmul.f32 %v2025, %v2353
    %v2478 = vmul.f32 %v2026, %v2323
    %v2479 = vmul.f32 %v2027, %v2333
    %v2480 = vmul.f32 %v2028, %v2343
    %v2481 = vmul.f32 %v2029, %v2353
    %v2482 = vld [vmem:[%s5] sm:$0xf]
    %v2484 = vperm.slane %v2482, 0
    %v2485 = vperm.slane %v2482, 1
    %v2486 = vperm.slane %v2482, 2
    %v2487 = vperm.slane %v2482, 3
    %v2492 = vmul.f32 %v2354, %v2484
    %v2493 = vmul.f32 %v2355, %v2485
    %v2494 = vmul.f32 %v2356, %v2486
    %v2495 = vmul.f32 %v2357, %v2487
    %v2496 = vmul.f32 %v2358, %v2484
    %v2497 = vmul.f32 %v2359, %v2485
    %v2498 = vmul.f32 %v2360, %v2486
    %v2499 = vmul.f32 %v2361, %v2487
    %v2500 = vmul.f32 %v2362, %v2484
    %v2501 = vmul.f32 %v2363, %v2485
    %v2502 = vmul.f32 %v2364, %v2486
    %v2503 = vmul.f32 %v2365, %v2487
    %v2504 = vmul.f32 %v2366, %v2484
    %v2505 = vmul.f32 %v2367, %v2485
    %v2506 = vmul.f32 %v2368, %v2486
    %v2507 = vmul.f32 %v2369, %v2487
    %v2508 = vmul.f32 %v2370, %v2484
    %v2509 = vmul.f32 %v2371, %v2485
    %v2510 = vmul.f32 %v2372, %v2486
    %v2511 = vmul.f32 %v2373, %v2487
    %v2512 = vmul.f32 %v2374, %v2484
    %v2513 = vmul.f32 %v2375, %v2485
    %v2514 = vmul.f32 %v2376, %v2486
    %v2515 = vmul.f32 %v2377, %v2487
    %v2516 = vmul.f32 %v2378, %v2484
    %v2517 = vmul.f32 %v2379, %v2485
    %v2518 = vmul.f32 %v2380, %v2486
    %v2519 = vmul.f32 %v2381, %v2487
    %v2520 = vmul.f32 %v2382, %v2484
    %v2521 = vmul.f32 %v2383, %v2485
    %v2522 = vmul.f32 %v2384, %v2486
    %v2523 = vmul.f32 %v2385, %v2487
    %v2524 = vmul.f32 %v2386, %v2484
    %v2525 = vmul.f32 %v2387, %v2485
    %v2526 = vmul.f32 %v2388, %v2486
    %v2527 = vmul.f32 %v2389, %v2487
    %v2528 = vmul.f32 %v2390, %v2484
    %v2529 = vmul.f32 %v2391, %v2485
    %v2530 = vmul.f32 %v2392, %v2486
    %v2531 = vmul.f32 %v2393, %v2487
    %v2532 = vmul.f32 %v2394, %v2484
    %v2533 = vmul.f32 %v2395, %v2485
    %v2534 = vmul.f32 %v2396, %v2486
    %v2535 = vmul.f32 %v2397, %v2487
    %v2536 = vmul.f32 %v2398, %v2484
    %v2537 = vmul.f32 %v2399, %v2485
    %v2538 = vmul.f32 %v2400, %v2486
    %v2539 = vmul.f32 %v2401, %v2487
    %v2540 = vmul.f32 %v2402, %v2484
    %v2541 = vmul.f32 %v2403, %v2485
    %v2542 = vmul.f32 %v2404, %v2486
    %v2543 = vmul.f32 %v2405, %v2487
    %v2544 = vmul.f32 %v2406, %v2484
    %v2545 = vmul.f32 %v2407, %v2485
    %v2546 = vmul.f32 %v2408, %v2486
    %v2547 = vmul.f32 %v2409, %v2487
    %v2548 = vmul.f32 %v2410, %v2484
    %v2549 = vmul.f32 %v2411, %v2485
    %v2550 = vmul.f32 %v2412, %v2486
    %v2551 = vmul.f32 %v2413, %v2487
    %v2552 = vmul.f32 %v2414, %v2484
    %v2553 = vmul.f32 %v2415, %v2485
    %v2554 = vmul.f32 %v2416, %v2486
    %v2555 = vmul.f32 %v2417, %v2487
    %v2556 = vmul.f32 %v2418, %v2484
    %v2557 = vmul.f32 %v2419, %v2485
    %v2558 = vmul.f32 %v2420, %v2486
    %v2559 = vmul.f32 %v2421, %v2487
    %v2560 = vmul.f32 %v2422, %v2484
    %v2561 = vmul.f32 %v2423, %v2485
    %v2562 = vmul.f32 %v2424, %v2486
    %v2563 = vmul.f32 %v2425, %v2487
    %v2564 = vmul.f32 %v2426, %v2484
    %v2565 = vmul.f32 %v2427, %v2485
    %v2566 = vmul.f32 %v2428, %v2486
    %v2567 = vmul.f32 %v2429, %v2487
    %v2568 = vmul.f32 %v2430, %v2484
    %v2569 = vmul.f32 %v2431, %v2485
    %v2570 = vmul.f32 %v2432, %v2486
    %v2571 = vmul.f32 %v2433, %v2487
    %v2572 = vmul.f32 %v2434, %v2484
    %v2573 = vmul.f32 %v2435, %v2485
    %v2574 = vmul.f32 %v2436, %v2486
    %v2575 = vmul.f32 %v2437, %v2487
    %v2576 = vmul.f32 %v2438, %v2484
    %v2577 = vmul.f32 %v2439, %v2485
    %v2578 = vmul.f32 %v2440, %v2486
    %v2579 = vmul.f32 %v2441, %v2487
    %v2580 = vmul.f32 %v2442, %v2484
    %v2581 = vmul.f32 %v2443, %v2485
    %v2582 = vmul.f32 %v2444, %v2486
    %v2583 = vmul.f32 %v2445, %v2487
    %v2584 = vmul.f32 %v2446, %v2484
    %v2585 = vmul.f32 %v2447, %v2485
    %v2586 = vmul.f32 %v2448, %v2486
    %v2587 = vmul.f32 %v2449, %v2487
    %v2588 = vmul.f32 %v2450, %v2484
    %v2589 = vmul.f32 %v2451, %v2485
    %v2590 = vmul.f32 %v2452, %v2486
    %v2591 = vmul.f32 %v2453, %v2487
    %v2592 = vmul.f32 %v2454, %v2484
    %v2593 = vmul.f32 %v2455, %v2485
    %v2594 = vmul.f32 %v2456, %v2486
    %v2595 = vmul.f32 %v2457, %v2487
    %v2596 = vmul.f32 %v2458, %v2484
    %v2597 = vmul.f32 %v2459, %v2485
    %v2598 = vmul.f32 %v2460, %v2486
    %v2599 = vmul.f32 %v2461, %v2487
    %v2600 = vmul.f32 %v2462, %v2484
    %v2601 = vmul.f32 %v2463, %v2485
    %v2602 = vmul.f32 %v2464, %v2486
    %v2603 = vmul.f32 %v2465, %v2487
    %v2604 = vmul.f32 %v2466, %v2484
    %v2605 = vmul.f32 %v2467, %v2485
    %v2606 = vmul.f32 %v2468, %v2486
    %v2607 = vmul.f32 %v2469, %v2487
    %v2608 = vmul.f32 %v2470, %v2484
    %v2609 = vmul.f32 %v2471, %v2485
    %v2610 = vmul.f32 %v2472, %v2486
    %v2611 = vmul.f32 %v2473, %v2487
    %v2612 = vmul.f32 %v2474, %v2484
    %v2613 = vmul.f32 %v2475, %v2485
    %v2614 = vmul.f32 %v2476, %v2486
    %v2615 = vmul.f32 %v2477, %v2487
    %v2616 = vmul.f32 %v2478, %v2484
    %v2617 = vmul.f32 %v2479, %v2485
    %v2618 = vmul.f32 %v2480, %v2486
    %v2619 = vmul.f32 %v2481, %v2487
    %v2620 = vld [vmem:[#allocation10] sm:$0xf]
    %v2622 = vperm.slane %v2620, 0
    %v2623 = vperm.slane %v2620, 1
    %v2624 = vperm.slane %v2620, 2
    %v2625 = vperm.slane %v2620, 3
    %v2630 = vadd.f32 %v2492, %v2622
    %v2631 = vadd.f32 %v2493, %v2623
    %v2632 = vadd.f32 %v2494, %v2624
    %v2633 = vadd.f32 %v2495, %v2625
    %v2634 = vadd.f32 %v2496, %v2622
    %v2635 = vadd.f32 %v2497, %v2623
    %v2636 = vadd.f32 %v2498, %v2624
    %v2637 = vadd.f32 %v2499, %v2625
    %v2638 = vadd.f32 %v2500, %v2622
    %v2639 = vadd.f32 %v2501, %v2623
    %v2640 = vadd.f32 %v2502, %v2624
    %v2641 = vadd.f32 %v2503, %v2625
    %v2642 = vadd.f32 %v2504, %v2622
    %v2643 = vadd.f32 %v2505, %v2623
    %v2644 = vadd.f32 %v2506, %v2624
    %v2645 = vadd.f32 %v2507, %v2625
    %v2646 = vadd.f32 %v2508, %v2622
    %v2647 = vadd.f32 %v2509, %v2623
    %v2648 = vadd.f32 %v2510, %v2624
    %v2649 = vadd.f32 %v2511, %v2625
    %v2650 = vadd.f32 %v2512, %v2622
    %v2651 = vadd.f32 %v2513, %v2623
    %v2652 = vadd.f32 %v2514, %v2624
    %v2653 = vadd.f32 %v2515, %v2625
    %v2654 = vadd.f32 %v2516, %v2622
    %v2655 = vadd.f32 %v2517, %v2623
    %v2656 = vadd.f32 %v2518, %v2624
    %v2657 = vadd.f32 %v2519, %v2625
    %v2658 = vadd.f32 %v2520, %v2622
    %v2659 = vadd.f32 %v2521, %v2623
    %v2660 = vadd.f32 %v2522, %v2624
    %v2661 = vadd.f32 %v2523, %v2625
    %v2662 = vadd.f32 %v2524, %v2622
    %v2663 = vadd.f32 %v2525, %v2623
    %v2664 = vadd.f32 %v2526, %v2624
    %v2665 = vadd.f32 %v2527, %v2625
    %v2666 = vadd.f32 %v2528, %v2622
    %v2667 = vadd.f32 %v2529, %v2623
    %v2668 = vadd.f32 %v2530, %v2624
    %v2669 = vadd.f32 %v2531, %v2625
    %v2670 = vadd.f32 %v2532, %v2622
    %v2671 = vadd.f32 %v2533, %v2623
    %v2672 = vadd.f32 %v2534, %v2624
    %v2673 = vadd.f32 %v2535, %v2625
    %v2674 = vadd.f32 %v2536, %v2622
    %v2675 = vadd.f32 %v2537, %v2623
    %v2676 = vadd.f32 %v2538, %v2624
    %v2677 = vadd.f32 %v2539, %v2625
    %v2678 = vadd.f32 %v2540, %v2622
    %v2679 = vadd.f32 %v2541, %v2623
    %v2680 = vadd.f32 %v2542, %v2624
    %v2681 = vadd.f32 %v2543, %v2625
    %v2682 = vadd.f32 %v2544, %v2622
    %v2683 = vadd.f32 %v2545, %v2623
    %v2684 = vadd.f32 %v2546, %v2624
    %v2685 = vadd.f32 %v2547, %v2625
    %v2686 = vadd.f32 %v2548, %v2622
    %v2687 = vadd.f32 %v2549, %v2623
    %v2688 = vadd.f32 %v2550, %v2624
    %v2689 = vadd.f32 %v2551, %v2625
    %v2690 = vadd.f32 %v2552, %v2622
    %v2691 = vadd.f32 %v2553, %v2623
    %v2692 = vadd.f32 %v2554, %v2624
    %v2693 = vadd.f32 %v2555, %v2625
    %v2694 = vadd.f32 %v2556, %v2622
    %v2695 = vadd.f32 %v2557, %v2623
    %v2696 = vadd.f32 %v2558, %v2624
    %v2697 = vadd.f32 %v2559, %v2625
    %v2698 = vadd.f32 %v2560, %v2622
    %v2699 = vadd.f32 %v2561, %v2623
    %v2700 = vadd.f32 %v2562, %v2624
    %v2701 = vadd.f32 %v2563, %v2625
    %v2702 = vadd.f32 %v2564, %v2622
    %v2703 = vadd.f32 %v2565, %v2623
    %v2704 = vadd.f32 %v2566, %v2624
    %v2705 = vadd.f32 %v2567, %v2625
    %v2706 = vadd.f32 %v2568, %v2622
    %v2707 = vadd.f32 %v2569, %v2623
    %v2708 = vadd.f32 %v2570, %v2624
    %v2709 = vadd.f32 %v2571, %v2625
    %v2710 = vadd.f32 %v2572, %v2622
    %v2711 = vadd.f32 %v2573, %v2623
    %v2712 = vadd.f32 %v2574, %v2624
    %v2713 = vadd.f32 %v2575, %v2625
    %v2714 = vadd.f32 %v2576, %v2622
    %v2715 = vadd.f32 %v2577, %v2623
    %v2716 = vadd.f32 %v2578, %v2624
    %v2717 = vadd.f32 %v2579, %v2625
    %v2718 = vadd.f32 %v2580, %v2622
    %v2719 = vadd.f32 %v2581, %v2623
    %v2720 = vadd.f32 %v2582, %v2624
    %v2721 = vadd.f32 %v2583, %v2625
    %v2722 = vadd.f32 %v2584, %v2622
    %v2723 = vadd.f32 %v2585, %v2623
    %v2724 = vadd.f32 %v2586, %v2624
    %v2725 = vadd.f32 %v2587, %v2625
    %v2726 = vadd.f32 %v2588, %v2622
    %v2727 = vadd.f32 %v2589, %v2623
    %v2728 = vadd.f32 %v2590, %v2624
    %v2729 = vadd.f32 %v2591, %v2625
    %v2730 = vadd.f32 %v2592, %v2622
    %v2731 = vadd.f32 %v2593, %v2623
    %v2732 = vadd.f32 %v2594, %v2624
    %v2733 = vadd.f32 %v2595, %v2625
    %v2734 = vadd.f32 %v2596, %v2622
    %v2735 = vadd.f32 %v2597, %v2623
    %v2736 = vadd.f32 %v2598, %v2624
    %v2737 = vadd.f32 %v2599, %v2625
    %v2738 = vadd.f32 %v2600, %v2622
    %v2739 = vadd.f32 %v2601, %v2623
    %v2740 = vadd.f32 %v2602, %v2624
    %v2741 = vadd.f32 %v2603, %v2625
    %v2742 = vadd.f32 %v2604, %v2622
    %v2743 = vadd.f32 %v2605, %v2623
    %v2744 = vadd.f32 %v2606, %v2624
    %v2745 = vadd.f32 %v2607, %v2625
    %v2746 = vadd.f32 %v2608, %v2622
    %v2747 = vadd.f32 %v2609, %v2623
    %v2748 = vadd.f32 %v2610, %v2624
    %v2749 = vadd.f32 %v2611, %v2625
    %v2750 = vadd.f32 %v2612, %v2622
    %v2751 = vadd.f32 %v2613, %v2623
    %v2752 = vadd.f32 %v2614, %v2624
    %v2753 = vadd.f32 %v2615, %v2625
    %v2754 = vadd.f32 %v2616, %v2622
    %v2755 = vadd.f32 %v2617, %v2623
    %v2756 = vadd.f32 %v2618, %v2624
    %v2757 = vadd.f32 %v2619, %v2625
    %v2758 = vmul.f32 %v2630, 0.2
    %v2759 = vmul.f32 %v2631, 0.2
    %v2760 = vmul.f32 %v2632, 0.2
    %v2761 = vmul.f32 %v2633, 0.2
    %v2762 = vmul.f32 %v2634, 0.2
    %v2763 = vmul.f32 %v2635, 0.2
    %v2764 = vmul.f32 %v2636, 0.2
    %v2765 = vmul.f32 %v2637, 0.2
    %v2766 = vmul.f32 %v2638, 0.2
    %v2767 = vmul.f32 %v2639, 0.2
    %v2768 = vmul.f32 %v2640, 0.2
    %v2769 = vmul.f32 %v2641, 0.2
    %v2770 = vmul.f32 %v2642, 0.2
    %v2771 = vmul.f32 %v2643, 0.2
    %v2772 = vmul.f32 %v2644, 0.2
    %v2773 = vmul.f32 %v2645, 0.2
    %v2774 = vmul.f32 %v2646, 0.2
    %v2775 = vmul.f32 %v2647, 0.2
    %v2776 = vmul.f32 %v2648, 0.2
    %v2777 = vmul.f32 %v2649, 0.2
    %v2778 = vmul.f32 %v2650, 0.2
    %v2779 = vmul.f32 %v2651, 0.2
    %v2780 = vmul.f32 %v2652, 0.2
    %v2781 = vmul.f32 %v2653, 0.2
    %v2782 = vmul.f32 %v2654, 0.2
    %v2783 = vmul.f32 %v2655, 0.2
    %v2784 = vmul.f32 %v2656, 0.2
    %v2785 = vmul.f32 %v2657, 0.2
    %v2786 = vmul.f32 %v2658, 0.2
    %v2787 = vmul.f32 %v2659, 0.2
    %v2788 = vmul.f32 %v2660, 0.2
    %v2789 = vmul.f32 %v2661, 0.2
    %v2790 = vmul.f32 %v2662, 0.2
    %v2791 = vmul.f32 %v2663, 0.2
    %v2792 = vmul.f32 %v2664, 0.2
    %v2793 = vmul.f32 %v2665, 0.2
    %v2794 = vmul.f32 %v2666, 0.2
    %v2795 = vmul.f32 %v2667, 0.2
    %v2796 = vmul.f32 %v2668, 0.2
    %v2797 = vmul.f32 %v2669, 0.2
    %v2798 = vmul.f32 %v2670, 0.2
    %v2799 = vmul.f32 %v2671, 0.2
    %v2800 = vmul.f32 %v2672, 0.2
    %v2801 = vmul.f32 %v2673, 0.2
    %v2802 = vmul.f32 %v2674, 0.2
    %v2803 = vmul.f32 %v2675, 0.2
    %v2804 = vmul.f32 %v2676, 0.2
    %v2805 = vmul.f32 %v2677, 0.2
    %v2806 = vmul.f32 %v2678, 0.2
    %v2807 = vmul.f32 %v2679, 0.2
    %v2808 = vmul.f32 %v2680, 0.2
    %v2809 = vmul.f32 %v2681, 0.2
    %v2810 = vmul.f32 %v2682, 0.2
    %v2811 = vmul.f32 %v2683, 0.2
    %v2812 = vmul.f32 %v2684, 0.2
    %v2813 = vmul.f32 %v2685, 0.2
    %v2814 = vmul.f32 %v2686, 0.2
    %v2815 = vmul.f32 %v2687, 0.2
    %v2816 = vmul.f32 %v2688, 0.2
    %v2817 = vmul.f32 %v2689, 0.2
    %v2818 = vmul.f32 %v2690, 0.2
    %v2819 = vmul.f32 %v2691, 0.2
    %v2820 = vmul.f32 %v2692, 0.2
    %v2821 = vmul.f32 %v2693, 0.2
    %v2822 = vmul.f32 %v2694, 0.2
    %v2823 = vmul.f32 %v2695, 0.2
    %v2824 = vmul.f32 %v2696, 0.2
    %v2825 = vmul.f32 %v2697, 0.2
    %v2826 = vmul.f32 %v2698, 0.2
    %v2827 = vmul.f32 %v2699, 0.2
    %v2828 = vmul.f32 %v2700, 0.2
    %v2829 = vmul.f32 %v2701, 0.2
    %v2830 = vmul.f32 %v2702, 0.2
    %v2831 = vmul.f32 %v2703, 0.2
    %v2832 = vmul.f32 %v2704, 0.2
    %v2833 = vmul.f32 %v2705, 0.2
    %v2834 = vmul.f32 %v2706, 0.2
    %v2835 = vmul.f32 %v2707, 0.2
    %v2836 = vmul.f32 %v2708, 0.2
    %v2837 = vmul.f32 %v2709, 0.2
    %v2838 = vmul.f32 %v2710, 0.2
    %v2839 = vmul.f32 %v2711, 0.2
    %v2840 = vmul.f32 %v2712, 0.2
    %v2841 = vmul.f32 %v2713, 0.2
    %v2842 = vmul.f32 %v2714, 0.2
    %v2843 = vmul.f32 %v2715, 0.2
    %v2844 = vmul.f32 %v2716, 0.2
    %v2845 = vmul.f32 %v2717, 0.2
    %v2846 = vmul.f32 %v2718, 0.2
    %v2847 = vmul.f32 %v2719, 0.2
    %v2848 = vmul.f32 %v2720, 0.2
    %v2849 = vmul.f32 %v2721, 0.2
    %v2850 = vmul.f32 %v2722, 0.2
    %v2851 = vmul.f32 %v2723, 0.2
    %v2852 = vmul.f32 %v2724, 0.2
    %v2853 = vmul.f32 %v2725, 0.2
    %v2854 = vmul.f32 %v2726, 0.2
    %v2855 = vmul.f32 %v2727, 0.2
    %v2856 = vmul.f32 %v2728, 0.2
    %v2857 = vmul.f32 %v2729, 0.2
    %v2858 = vmul.f32 %v2730, 0.2
    %v2859 = vmul.f32 %v2731, 0.2
    %v2860 = vmul.f32 %v2732, 0.2
    %v2861 = vmul.f32 %v2733, 0.2
    %v2862 = vmul.f32 %v2734, 0.2
    %v2863 = vmul.f32 %v2735, 0.2
    %v2864 = vmul.f32 %v2736, 0.2
    %v2865 = vmul.f32 %v2737, 0.2
    %v2866 = vmul.f32 %v2738, 0.2
    %v2867 = vmul.f32 %v2739, 0.2
    %v2868 = vmul.f32 %v2740, 0.2
    %v2869 = vmul.f32 %v2741, 0.2
    %v2870 = vmul.f32 %v2742, 0.2
    %v2871 = vmul.f32 %v2743, 0.2
    %v2872 = vmul.f32 %v2744, 0.2
    %v2873 = vmul.f32 %v2745, 0.2
    %v2874 = vmul.f32 %v2746, 0.2
    %v2875 = vmul.f32 %v2747, 0.2
    %v2876 = vmul.f32 %v2748, 0.2
    %v2877 = vmul.f32 %v2749, 0.2
    %v2878 = vmul.f32 %v2750, 0.2
    %v2879 = vmul.f32 %v2751, 0.2
    %v2880 = vmul.f32 %v2752, 0.2
    %v2881 = vmul.f32 %v2753, 0.2
    %v2882 = vmul.f32 %v2754, 0.2
    %v2883 = vmul.f32 %v2755, 0.2
    %v2884 = vmul.f32 %v2756, 0.2
    %v2885 = vmul.f32 %v2757, 0.2
    %v2886 = vmax.f32 %v2630, %v2758
    %v2887 = vmax.f32 %v2631, %v2759
    %v2888 = vmax.f32 %v2632, %v2760
    %v2889 = vmax.f32 %v2633, %v2761
    %v2890 = vmax.f32 %v2634, %v2762
    %v2891 = vmax.f32 %v2635, %v2763
    %v2892 = vmax.f32 %v2636, %v2764
    %v2893 = vmax.f32 %v2637, %v2765
    %v2894 = vmax.f32 %v2638, %v2766
    %v2895 = vmax.f32 %v2639, %v2767
    %v2896 = vmax.f32 %v2640, %v2768
    %v2897 = vmax.f32 %v2641, %v2769
    %v2898 = vmax.f32 %v2642, %v2770
    %v2899 = vmax.f32 %v2643, %v2771
    %v2900 = vmax.f32 %v2644, %v2772
    %v2901 = vmax.f32 %v2645, %v2773
    %v2902 = vmax.f32 %v2646, %v2774
    %v2903 = vmax.f32 %v2647, %v2775
    %v2904 = vmax.f32 %v2648, %v2776
    %v2905 = vmax.f32 %v2649, %v2777
    %v2906 = vmax.f32 %v2650, %v2778
    %v2907 = vmax.f32 %v2651, %v2779
    %v2908 = vmax.f32 %v2652, %v2780
    %v2909 = vmax.f32 %v2653, %v2781
    %v2910 = vmax.f32 %v2654, %v2782
    %v2911 = vmax.f32 %v2655, %v2783
    %v2912 = vmax.f32 %v2656, %v2784
    %v2913 = vmax.f32 %v2657, %v2785
    %v2914 = vmax.f32 %v2658, %v2786
    %v2915 = vmax.f32 %v2659, %v2787
    %v2916 = vmax.f32 %v2660, %v2788
    %v2917 = vmax.f32 %v2661, %v2789
    %v2918 = vmax.f32 %v2662, %v2790
    %v2919 = vmax.f32 %v2663, %v2791
    %v2920 = vmax.f32 %v2664, %v2792
    %v2921 = vmax.f32 %v2665, %v2793
    %v2922 = vmax.f32 %v2666, %v2794
    %v2923 = vmax.f32 %v2667, %v2795
    %v2924 = vmax.f32 %v2668, %v2796
    %v2925 = vmax.f32 %v2669, %v2797
    %v2926 = vmax.f32 %v2670, %v2798
    %v2927 = vmax.f32 %v2671, %v2799
    %v2928 = vmax.f32 %v2672, %v2800
    %v2929 = vmax.f32 %v2673, %v2801
    %v2930 = vmax.f32 %v2674, %v2802
    %v2931 = vmax.f32 %v2675, %v2803
    %v2932 = vmax.f32 %v2676, %v2804
    %v2933 = vmax.f32 %v2677, %v2805
    %v2934 = vmax.f32 %v2678, %v2806
    %v2935 = vmax.f32 %v2679, %v2807
    %v2936 = vmax.f32 %v2680, %v2808
    %v2937 = vmax.f32 %v2681, %v2809
    %v2938 = vmax.f32 %v2682, %v2810
    %v2939 = vmax.f32 %v2683, %v2811
    %v2940 = vmax.f32 %v2684, %v2812
    %v2941 = vmax.f32 %v2685, %v2813
    %v2942 = vmax.f32 %v2686, %v2814
    %v2943 = vmax.f32 %v2687, %v2815
    %v2944 = vmax.f32 %v2688, %v2816
    %v2945 = vmax.f32 %v2689, %v2817
    %v2946 = vmax.f32 %v2690, %v2818
    %v2947 = vmax.f32 %v2691, %v2819
    %v2948 = vmax.f32 %v2692, %v2820
    %v2949 = vmax.f32 %v2693, %v2821
    %v2950 = vmax.f32 %v2694, %v2822
    %v2951 = vmax.f32 %v2695, %v2823
    %v2952 = vmax.f32 %v2696, %v2824
    %v2953 = vmax.f32 %v2697, %v2825
    %v2954 = vmax.f32 %v2698, %v2826
    %v2955 = vmax.f32 %v2699, %v2827
    %v2956 = vmax.f32 %v2700, %v2828
    %v2957 = vmax.f32 %v2701, %v2829
    %v2958 = vmax.f32 %v2702, %v2830
    %v2959 = vmax.f32 %v2703, %v2831
    %v2960 = vmax.f32 %v2704, %v2832
    %v2961 = vmax.f32 %v2705, %v2833
    %v2962 = vmax.f32 %v2706, %v2834
    %v2963 = vmax.f32 %v2707, %v2835
    %v2964 = vmax.f32 %v2708, %v2836
    %v2965 = vmax.f32 %v2709, %v2837
    %v2966 = vmax.f32 %v2710, %v2838
    %v2967 = vmax.f32 %v2711, %v2839
    %v2968 = vmax.f32 %v2712, %v2840
    %v2969 = vmax.f32 %v2713, %v2841
    %v2970 = vmax.f32 %v2714, %v2842
    %v2971 = vmax.f32 %v2715, %v2843
    %v2972 = vmax.f32 %v2716, %v2844
    %v2973 = vmax.f32 %v2717, %v2845
    %v2974 = vmax.f32 %v2718, %v2846
    %v2975 = vmax.f32 %v2719, %v2847
    %v2976 = vmax.f32 %v2720, %v2848
    %v2977 = vmax.f32 %v2721, %v2849
    %v2978 = vmax.f32 %v2722, %v2850
    %v2979 = vmax.f32 %v2723, %v2851
    %v2980 = vmax.f32 %v2724, %v2852
    %v2981 = vmax.f32 %v2725, %v2853
    %v2982 = vmax.f32 %v2726, %v2854
    %v2983 = vmax.f32 %v2727, %v2855
    %v2984 = vmax.f32 %v2728, %v2856
    %v2985 = vmax.f32 %v2729, %v2857
    %v2986 = vmax.f32 %v2730, %v2858
    %v2987 = vmax.f32 %v2731, %v2859
    %v2988 = vmax.f32 %v2732, %v2860
    %v2989 = vmax.f32 %v2733, %v2861
    %v2990 = vmax.f32 %v2734, %v2862
    %v2991 = vmax.f32 %v2735, %v2863
    %v2992 = vmax.f32 %v2736, %v2864
    %v2993 = vmax.f32 %v2737, %v2865
    %v2994 = vmax.f32 %v2738, %v2866
    %v2995 = vmax.f32 %v2739, %v2867
    %v2996 = vmax.f32 %v2740, %v2868
    %v2997 = vmax.f32 %v2741, %v2869
    %v2998 = vmax.f32 %v2742, %v2870
    %v2999 = vmax.f32 %v2743, %v2871
    %v3000 = vmax.f32 %v2744, %v2872
    %v3001 = vmax.f32 %v2745, %v2873
    %v3002 = vmax.f32 %v2746, %v2874
    %v3003 = vmax.f32 %v2747, %v2875
    %v3004 = vmax.f32 %v2748, %v2876
    %v3005 = vmax.f32 %v2749, %v2877
    %v3006 = vmax.f32 %v2750, %v2878
    %v3007 = vmax.f32 %v2751, %v2879
    %v3008 = vmax.f32 %v2752, %v2880
    %v3009 = vmax.f32 %v2753, %v2881
    %v3010 = vmax.f32 %v2754, %v2882
    %v3011 = vmax.f32 %v2755, %v2883
    %v3012 = vmax.f32 %v2756, %v2884
    %v3013 = vmax.f32 %v2757, %v2885
    %v3014 = vpack.c.bf16 %v2890, %v2886
    %v3015 = vpack.c.bf16 %v2891, %v2887
    %v3016 = vpack.c.bf16 %v2892, %v2888
    %v3017 = vpack.c.bf16 %v2893, %v2889
    %v3018 = vpack.c.bf16 %v2898, %v2894
    %v3019 = vpack.c.bf16 %v2899, %v2895
    %v3020 = vpack.c.bf16 %v2900, %v2896
    %v3021 = vpack.c.bf16 %v2901, %v2897
    %v3022 = vpack.c.bf16 %v2906, %v2902
    %v3023 = vpack.c.bf16 %v2907, %v2903
    %v3024 = vpack.c.bf16 %v2908, %v2904
    %v3025 = vpack.c.bf16 %v2909, %v2905
    %v3026 = vpack.c.bf16 %v2914, %v2910
    %v3027 = vpack.c.bf16 %v2915, %v2911
    %v3028 = vpack.c.bf16 %v2916, %v2912
    %v3029 = vpack.c.bf16 %v2917, %v2913
    %v3030 = vpack.c.bf16 %v2922, %v2918
    %v3031 = vpack.c.bf16 %v2923, %v2919
    %v3032 = vpack.c.bf16 %v2924, %v2920
    %v3033 = vpack.c.bf16 %v2925, %v2921
    %v3034 = vpack.c.bf16 %v2930, %v2926
    %v3035 = vpack.c.bf16 %v2931, %v2927
    %v3036 = vpack.c.bf16 %v2932, %v2928
    %v3037 = vpack.c.bf16 %v2933, %v2929
    %v3038 = vpack.c.bf16 %v2938, %v2934
    %v3039 = vpack.c.bf16 %v2939, %v2935
    %v3040 = vpack.c.bf16 %v2940, %v2936
    %v3041 = vpack.c.bf16 %v2941, %v2937
    %v3042 = vpack.c.bf16 %v2946, %v2942
    %v3043 = vpack.c.bf16 %v2947, %v2943
    %v3044 = vpack.c.bf16 %v2948, %v2944
    %v3045 = vpack.c.bf16 %v2949, %v2945
    %v3046 = vpack.c.bf16 %v2954, %v2950
    %v3047 = vpack.c.bf16 %v2955, %v2951
    %v3048 = vpack.c.bf16 %v2956, %v2952
    %v3049 = vpack.c.bf16 %v2957, %v2953
    %v3050 = vpack.c.bf16 %v2962, %v2958
    %v3051 = vpack.c.bf16 %v2963, %v2959
    %v3052 = vpack.c.bf16 %v2964, %v2960
    %v3053 = vpack.c.bf16 %v2965, %v2961
    %v3054 = vpack.c.bf16 %v2970, %v2966
    %v3055 = vpack.c.bf16 %v2971, %v2967
    %v3056 = vpack.c.bf16 %v2972, %v2968
    %v3057 = vpack.c.bf16 %v2973, %v2969
    %v3058 = vpack.c.bf16 %v2978, %v2974
    %v3059 = vpack.c.bf16 %v2979, %v2975
    %v3060 = vpack.c.bf16 %v2980, %v2976
    %v3061 = vpack.c.bf16 %v2981, %v2977
    %v3062 = vpack.c.bf16 %v2986, %v2982
    %v3063 = vpack.c.bf16 %v2987, %v2983
    %v3064 = vpack.c.bf16 %v2988, %v2984
    %v3065 = vpack.c.bf16 %v2989, %v2985
    %v3066 = vpack.c.bf16 %v2994, %v2990
    %v3067 = vpack.c.bf16 %v2995, %v2991
    %v3068 = vpack.c.bf16 %v2996, %v2992
    %v3069 = vpack.c.bf16 %v2997, %v2993
    %v3070 = vpack.c.bf16 %v3002, %v2998
    %v3071 = vpack.c.bf16 %v3003, %v2999
    %v3072 = vpack.c.bf16 %v3004, %v3000
    %v3073 = vpack.c.bf16 %v3005, %v3001
    %v3074 = vpack.c.bf16 %v3010, %v3006
    %v3075 = vpack.c.bf16 %v3011, %v3007
    %v3076 = vpack.c.bf16 %v3012, %v3008
    %v3077 = vpack.c.bf16 %v3013, %v3009
    %v3078 = vld [vmem:[#allocation12] sm:$0xff]
    %v3079 = vld [vmem:[#allocation12 + $0x8] sm:$0xff]
    %v3080 = vld [vmem:[#allocation12 + $0x10] sm:$0xff]
    %v3081 = vld [vmem:[#allocation12 + $0x18] sm:$0xff]
    %v3082 = vld [vmem:[#allocation12 + $0x20] sm:$0xff]
    %v3083 = vld [vmem:[#allocation12 + $0x28] sm:$0xff]
    %v3084 = vld [vmem:[#allocation12 + $0x30] sm:$0xff]
    %v3085 = vld [vmem:[#allocation12 + $0x38] sm:$0xff]
    %v3086 = vld [vmem:[#allocation12 + $0x40] sm:$0xff]
    %v3087 = vld [vmem:[#allocation12 + $0x48] sm:$0xff]
    %v3088 = vld [vmem:[#allocation12 + $0x50] sm:$0xff]
    %v3089 = vld [vmem:[#allocation12 + $0x58] sm:$0xff]
    %v3090 = vld [vmem:[#allocation12 + $0x60] sm:$0xff]
    %v3091 = vld [vmem:[#allocation12 + $0x68] sm:$0xff]
    %v3092 = vld [vmem:[#allocation12 + $0x70] sm:$0xff]
    %v3093 = vld [vmem:[#allocation12 + $0x78] sm:$0xff]
    %v3094 = vld [vmem:[#allocation12 + $0x80] sm:$0xff]
    %v3095 = vld [vmem:[#allocation12 + $0x88] sm:$0xff]
    %v3096 = vld [vmem:[#allocation12 + $0x90] sm:$0xff]
    %v3097 = vld [vmem:[#allocation12 + $0x98] sm:$0xff]
    %v3098 = vld [vmem:[#allocation12 + $0xa0] sm:$0xff]
    %v3099 = vld [vmem:[#allocation12 + $0xa8] sm:$0xff]
    %v3100 = vld [vmem:[#allocation12 + $0xb0] sm:$0xff]
    %v3101 = vld [vmem:[#allocation12 + $0xb8] sm:$0xff]
    %v3102 = vld [vmem:[#allocation12 + $0xc0] sm:$0xff]
    %v3103 = vld [vmem:[#allocation12 + $0xc8] sm:$0xff]
    %v3104 = vld [vmem:[#allocation12 + $0xd0] sm:$0xff]
    %v3105 = vld [vmem:[#allocation12 + $0xd8] sm:$0xff]
    %v3106 = vld [vmem:[#allocation12 + $0xe0] sm:$0xff]
    %v3107 = vld [vmem:[#allocation12 + $0xe8] sm:$0xff]
    %v3108 = vld [vmem:[#allocation12 + $0xf0] sm:$0xff]
    %v3109 = vld [vmem:[#allocation12 + $0xf8] sm:$0xff]
    %v3110 = vld [vmem:[#allocation12 + $0x100] sm:$0xff]
    %v3111 = vld [vmem:[#allocation12 + $0x108] sm:$0xff]
    %v3112 = vld [vmem:[#allocation12 + $0x110] sm:$0xff]
    %v3113 = vld [vmem:[#allocation12 + $0x118] sm:$0xff]
    %v3114 = vld [vmem:[#allocation12 + $0x120] sm:$0xff]
    %v3115 = vld [vmem:[#allocation12 + $0x128] sm:$0xff]
    %v3116 = vld [vmem:[#allocation12 + $0x130] sm:$0xff]
    %v3117 = vld [vmem:[#allocation12 + $0x138] sm:$0xff]
    %v3118 = vld [vmem:[#allocation12 + $0x140] sm:$0xff]
    %v3119 = vld [vmem:[#allocation12 + $0x148] sm:$0xff]
    %v3120 = vld [vmem:[#allocation12 + $0x150] sm:$0xff]
    %v3121 = vld [vmem:[#allocation12 + $0x158] sm:$0xff]
    %v3122 = vld [vmem:[#allocation12 + $0x160] sm:$0xff]
    %v3123 = vld [vmem:[#allocation12 + $0x168] sm:$0xff]
    %v3124 = vld [vmem:[#allocation12 + $0x170] sm:$0xff]
    %v3125 = vld [vmem:[#allocation12 + $0x178] sm:$0xff]
    %v3126 = vld [vmem:[#allocation12 + $0x180] sm:$0xff]
    %v3127 = vld [vmem:[#allocation12 + $0x188] sm:$0xff]
    %v3128 = vld [vmem:[#allocation12 + $0x190] sm:$0xff]
    %v3129 = vld [vmem:[#allocation12 + $0x198] sm:$0xff]
    %v3130 = vld [vmem:[#allocation12 + $0x1a0] sm:$0xff]
    %v3131 = vld [vmem:[#allocation12 + $0x1a8] sm:$0xff]
    %v3132 = vld [vmem:[#allocation12 + $0x1b0] sm:$0xff]
    %v3133 = vld [vmem:[#allocation12 + $0x1b8] sm:$0xff]
    %v3134 = vld [vmem:[#allocation12 + $0x1c0] sm:$0xff]
    %v3135 = vld [vmem:[#allocation12 + $0x1c8] sm:$0xff]
    %v3136 = vld [vmem:[#allocation12 + $0x1d0] sm:$0xff]
    %v3137 = vld [vmem:[#allocation12 + $0x1d8] sm:$0xff]
    %v3138 = vld [vmem:[#allocation12 + $0x1e0] sm:$0xff]
    %v3139 = vld [vmem:[#allocation12 + $0x1e8] sm:$0xff]
    %v3140 = vld [vmem:[#allocation12 + $0x1f0] sm:$0xff]
    %v3141 = vld [vmem:[#allocation12 + $0x1f8] sm:$0xff]
    %v3142 = vld [vmem:[#allocation13] sm:$0x3]
    %v3144 = vperm.slane %v3142, 0
    %v3145 = vperm.slane %v3142, 1
    %v3212 = vunpack.c.l.b16 %v3078
    %v3213 = vunpack.c.h.b16 %v3078
    %v3214 = vunpack.c.l.b16 %v3079
    %v3215 = vunpack.c.h.b16 %v3079
    %v3216 = vunpack.c.l.b16 %v3080
    %v3217 = vunpack.c.h.b16 %v3080
    %v3218 = vunpack.c.l.b16 %v3081
    %v3219 = vunpack.c.h.b16 %v3081
    %v3220 = vunpack.c.l.b16 %v3082
    %v3221 = vunpack.c.h.b16 %v3082
    %v3222 = vunpack.c.l.b16 %v3083
    %v3223 = vunpack.c.h.b16 %v3083
    %v3224 = vunpack.c.l.b16 %v3084
    %v3225 = vunpack.c.h.b16 %v3084
    %v3226 = vunpack.c.l.b16 %v3085
    %v3227 = vunpack.c.h.b16 %v3085
    %v3228 = vunpack.c.l.b16 %v3086
    %v3229 = vunpack.c.h.b16 %v3086
    %v3230 = vunpack.c.l.b16 %v3087
    %v3231 = vunpack.c.h.b16 %v3087
    %v3232 = vunpack.c.l.b16 %v3088
    %v3233 = vunpack.c.h.b16 %v3088
    %v3234 = vunpack.c.l.b16 %v3089
    %v3235 = vunpack.c.h.b16 %v3089
    %v3236 = vunpack.c.l.b16 %v3090
    %v3237 = vunpack.c.h.b16 %v3090
    %v3238 = vunpack.c.l.b16 %v3091
    %v3239 = vunpack.c.h.b16 %v3091
    %v3240 = vunpack.c.l.b16 %v3092
    %v3241 = vunpack.c.h.b16 %v3092
    %v3242 = vunpack.c.l.b16 %v3093
    %v3243 = vunpack.c.h.b16 %v3093
    %v3244 = vunpack.c.l.b16 %v3094
    %v3245 = vunpack.c.h.b16 %v3094
    %v3246 = vunpack.c.l.b16 %v3095
    %v3247 = vunpack.c.h.b16 %v3095
    %v3248 = vunpack.c.l.b16 %v3096
    %v3249 = vunpack.c.h.b16 %v3096
    %v3250 = vunpack.c.l.b16 %v3097
    %v3251 = vunpack.c.h.b16 %v3097
    %v3252 = vunpack.c.l.b16 %v3098
    %v3253 = vunpack.c.h.b16 %v3098
    %v3254 = vunpack.c.l.b16 %v3099
    %v3255 = vunpack.c.h.b16 %v3099
    %v3256 = vunpack.c.l.b16 %v3100
    %v3257 = vunpack.c.h.b16 %v3100
    %v3258 = vunpack.c.l.b16 %v3101
    %v3259 = vunpack.c.h.b16 %v3101
    %v3260 = vunpack.c.l.b16 %v3102
    %v3261 = vunpack.c.h.b16 %v3102
    %v3262 = vunpack.c.l.b16 %v3103
    %v3263 = vunpack.c.h.b16 %v3103
    %v3264 = vunpack.c.l.b16 %v3104
    %v3265 = vunpack.c.h.b16 %v3104
    %v3266 = vunpack.c.l.b16 %v3105
    %v3267 = vunpack.c.h.b16 %v3105
    %v3268 = vunpack.c.l.b16 %v3106
    %v3269 = vunpack.c.h.b16 %v3106
    %v3270 = vunpack.c.l.b16 %v3107
    %v3271 = vunpack.c.h.b16 %v3107
    %v3272 = vunpack.c.l.b16 %v3108
    %v3273 = vunpack.c.h.b16 %v3108
    %v3274 = vunpack.c.l.b16 %v3109
    %v3275 = vunpack.c.h.b16 %v3109
    %v3276 = vunpack.c.l.b16 %v3110
    %v3277 = vunpack.c.h.b16 %v3110
    %v3278 = vunpack.c.l.b16 %v3111
    %v3279 = vunpack.c.h.b16 %v3111
    %v3280 = vunpack.c.l.b16 %v3112
    %v3281 = vunpack.c.h.b16 %v3112
    %v3282 = vunpack.c.l.b16 %v3113
    %v3283 = vunpack.c.h.b16 %v3113
    %v3284 = vunpack.c.l.b16 %v3114
    %v3285 = vunpack.c.h.b16 %v3114
    %v3286 = vunpack.c.l.b16 %v3115
    %v3287 = vunpack.c.h.b16 %v3115
    %v3288 = vunpack.c.l.b16 %v3116
    %v3289 = vunpack.c.h.b16 %v3116
    %v3290 = vunpack.c.l.b16 %v3117
    %v3291 = vunpack.c.h.b16 %v3117
    %v3292 = vunpack.c.l.b16 %v3118
    %v3293 = vunpack.c.h.b16 %v3118
    %v3294 = vunpack.c.l.b16 %v3119
    %v3295 = vunpack.c.h.b16 %v3119
    %v3296 = vunpack.c.l.b16 %v3120
    %v3297 = vunpack.c.h.b16 %v3120
    %v3298 = vunpack.c.l.b16 %v3121
    %v3299 = vunpack.c.h.b16 %v3121
    %v3300 = vunpack.c.l.b16 %v3122
    %v3301 = vunpack.c.h.b16 %v3122
    %v3302 = vunpack.c.l.b16 %v3123
    %v3303 = vunpack.c.h.b16 %v3123
    %v3304 = vunpack.c.l.b16 %v3124
    %v3305 = vunpack.c.h.b16 %v3124
    %v3306 = vunpack.c.l.b16 %v3125
    %v3307 = vunpack.c.h.b16 %v3125
    %v3308 = vunpack.c.l.b16 %v3126
    %v3309 = vunpack.c.h.b16 %v3126
    %v3310 = vunpack.c.l.b16 %v3127
    %v3311 = vunpack.c.h.b16 %v3127
    %v3312 = vunpack.c.l.b16 %v3128
    %v3313 = vunpack.c.h.b16 %v3128
    %v3314 = vunpack.c.l.b16 %v3129
    %v3315 = vunpack.c.h.b16 %v3129
    %v3316 = vunpack.c.l.b16 %v3130
    %v3317 = vunpack.c.h.b16 %v3130
    %v3318 = vunpack.c.l.b16 %v3131
    %v3319 = vunpack.c.h.b16 %v3131
    %v3320 = vunpack.c.l.b16 %v3132
    %v3321 = vunpack.c.h.b16 %v3132
    %v3322 = vunpack.c.l.b16 %v3133
    %v3323 = vunpack.c.h.b16 %v3133
    %v3324 = vunpack.c.l.b16 %v3134
    %v3325 = vunpack.c.h.b16 %v3134
    %v3326 = vunpack.c.l.b16 %v3135
    %v3327 = vunpack.c.h.b16 %v3135
    %v3328 = vunpack.c.l.b16 %v3136
    %v3329 = vunpack.c.h.b16 %v3136
    %v3330 = vunpack.c.l.b16 %v3137
    %v3331 = vunpack.c.h.b16 %v3137
    %v3332 = vunpack.c.l.b16 %v3138
    %v3333 = vunpack.c.h.b16 %v3138
    %v3334 = vunpack.c.l.b16 %v3139
    %v3335 = vunpack.c.h.b16 %v3139
    %v3336 = vunpack.c.l.b16 %v3140
    %v3337 = vunpack.c.h.b16 %v3140
    %v3338 = vunpack.c.l.b16 %v3141
    %v3339 = vunpack.c.h.b16 %v3141
    %v3340 = vpack.c.b16 %v3214, %v3212
    %v3341 = vpack.c.b16 %v3215, %v3213
    %v3342 = vpack.c.b16 %v3218, %v3216
    %v3343 = vpack.c.b16 %v3219, %v3217
    %v3344 = vpack.c.b16 %v3222, %v3220
    %v3345 = vpack.c.b16 %v3223, %v3221
    %v3346 = vpack.c.b16 %v3226, %v3224
    %v3347 = vpack.c.b16 %v3227, %v3225
    %v3348 = vpack.c.b16 %v3230, %v3228
    %v3349 = vpack.c.b16 %v3231, %v3229
    %v3350 = vpack.c.b16 %v3234, %v3232
    %v3351 = vpack.c.b16 %v3235, %v3233
    %v3352 = vpack.c.b16 %v3238, %v3236
    %v3353 = vpack.c.b16 %v3239, %v3237
    %v3354 = vpack.c.b16 %v3242, %v3240
    %v3355 = vpack.c.b16 %v3243, %v3241
    %v3356 = vpack.c.b16 %v3246, %v3244
    %v3357 = vpack.c.b16 %v3247, %v3245
    %v3358 = vpack.c.b16 %v3250, %v3248
    %v3359 = vpack.c.b16 %v3251, %v3249
    %v3360 = vpack.c.b16 %v3254, %v3252
    %v3361 = vpack.c.b16 %v3255, %v3253
    %v3362 = vpack.c.b16 %v3258, %v3256
    %v3363 = vpack.c.b16 %v3259, %v3257
    %v3364 = vpack.c.b16 %v3262, %v3260
    %v3365 = vpack.c.b16 %v3263, %v3261
    %v3366 = vpack.c.b16 %v3266, %v3264
    %v3367 = vpack.c.b16 %v3267, %v3265
    %v3368 = vpack.c.b16 %v3270, %v3268
    %v3369 = vpack.c.b16 %v3271, %v3269
    %v3370 = vpack.c.b16 %v3274, %v3272
    %v3371 = vpack.c.b16 %v3275, %v3273
    %v3372 = vpack.c.b16 %v3278, %v3276
    %v3373 = vpack.c.b16 %v3279, %v3277
    %v3374 = vpack.c.b16 %v3282, %v3280
    %v3375 = vpack.c.b16 %v3283, %v3281
    %v3376 = vpack.c.b16 %v3286, %v3284
    %v3377 = vpack.c.b16 %v3287, %v3285
    %v3378 = vpack.c.b16 %v3290, %v3288
    %v3379 = vpack.c.b16 %v3291, %v3289
    %v3380 = vpack.c.b16 %v3294, %v3292
    %v3381 = vpack.c.b16 %v3295, %v3293
    %v3382 = vpack.c.b16 %v3298, %v3296
    %v3383 = vpack.c.b16 %v3299, %v3297
    %v3384 = vpack.c.b16 %v3302, %v3300
    %v3385 = vpack.c.b16 %v3303, %v3301
    %v3386 = vpack.c.b16 %v3306, %v3304
    %v3387 = vpack.c.b16 %v3307, %v3305
    %v3388 = vpack.c.b16 %v3310, %v3308
    %v3389 = vpack.c.b16 %v3311, %v3309
    %v3390 = vpack.c.b16 %v3314, %v3312
    %v3391 = vpack.c.b16 %v3315, %v3313
    %v3392 = vpack.c.b16 %v3318, %v3316
    %v3393 = vpack.c.b16 %v3319, %v3317
    %v3394 = vpack.c.b16 %v3322, %v3320
    %v3395 = vpack.c.b16 %v3323, %v3321
    %v3396 = vpack.c.b16 %v3326, %v3324
    %v3397 = vpack.c.b16 %v3327, %v3325
    %v3398 = vpack.c.b16 %v3330, %v3328
    %v3399 = vpack.c.b16 %v3331, %v3329
    %v3400 = vpack.c.b16 %v3334, %v3332
    %v3401 = vpack.c.b16 %v3335, %v3333
    %v3402 = vpack.c.b16 %v3338, %v3336
    %v3403 = vpack.c.b16 %v3339, %v3337
    %3468 = vmatpush.bf16.msra.mxu0 %v3354
    %3469 = vmatpush.bf16.msra.mxu0 %v3352
    %3470 = vmatpush.bf16.msra.mxu0 %v3350
    %3471 = vmatpush.bf16.msra.mxu0 %v3348
    %3472 = vmatpush.bf16.msra.mxu0 %v3346
    %3473 = vmatpush.bf16.msra.mxu0 %v3344
    %3474 = vmatpush.bf16.msra.mxu0 %v3342
    %3475 = vmatpush.bf16.msra.mxu0 %v3340
    %3476 = vmatmul.bf16.gmra.mxu0 %v3014
    %v3477 = vpop.f32.mrf.mxu0
    %v3478 = vadd.f32 %v3144, %v3477
    %v3479 = vpop.f32.mrf.mxu0
    %v3480 = vadd.f32 %v3144, %v3479
    %3481 = vmatmul.bf16.gmra.mxu0 %v3018
    %v3482 = vpop.f32.mrf.mxu0
    %v3483 = vadd.f32 %v3144, %v3482
    %v3484 = vpop.f32.mrf.mxu0
    %v3485 = vadd.f32 %v3144, %v3484
    %3486 = vmatmul.bf16.gmra.mxu0 %v3022
    %v3487 = vpop.f32.mrf.mxu0
    %v3488 = vadd.f32 %v3144, %v3487
    %v3489 = vpop.f32.mrf.mxu0
    %v3490 = vadd.f32 %v3144, %v3489
    %3491 = vmatmul.bf16.gmra.mxu0 %v3026
    %v3492 = vpop.f32.mrf.mxu0
    %v3493 = vadd.f32 %v3144, %v3492
    %v3494 = vpop.f32.mrf.mxu0
    %v3495 = vadd.f32 %v3144, %v3494
    %3496 = vmatmul.bf16.gmra.mxu0 %v3030
    %v3497 = vpop.f32.mrf.mxu0
    %v3498 = vadd.f32 %v3144, %v3497
    %v3499 = vpop.f32.mrf.mxu0
    %v3500 = vadd.f32 %v3144, %v3499
    %3501 = vmatmul.bf16.gmra.mxu0 %v3034
    %v3502 = vpop.f32.mrf.mxu0
    %v3503 = vadd.f32 %v3144, %v3502
    %v3504 = vpop.f32.mrf.mxu0
    %v3505 = vadd.f32 %v3144, %v3504
    %3506 = vmatmul.bf16.gmra.mxu0 %v3038
    %v3507 = vpop.f32.mrf.mxu0
    %v3508 = vadd.f32 %v3144, %v3507
    %v3509 = vpop.f32.mrf.mxu0
    %v3510 = vadd.f32 %v3144, %v3509
    %3511 = vmatmul.bf16.gmra.mxu0 %v3042
    %v3512 = vpop.f32.mrf.mxu0
    %v3513 = vadd.f32 %v3144, %v3512
    %v3514 = vpop.f32.mrf.mxu0
    %v3515 = vadd.f32 %v3144, %v3514
    %3516 = vmatmul.bf16.gmra.mxu0 %v3046
    %v3517 = vpop.f32.mrf.mxu0
    %v3518 = vadd.f32 %v3144, %v3517
    %v3519 = vpop.f32.mrf.mxu0
    %v3520 = vadd.f32 %v3144, %v3519
    %3521 = vmatmul.bf16.gmra.mxu0 %v3050
    %v3522 = vpop.f32.mrf.mxu0
    %v3523 = vadd.f32 %v3144, %v3522
    %v3524 = vpop.f32.mrf.mxu0
    %v3525 = vadd.f32 %v3144, %v3524
    %3526 = vmatmul.bf16.gmra.mxu0 %v3054
    %v3527 = vpop.f32.mrf.mxu0
    %v3528 = vadd.f32 %v3144, %v3527
    %v3529 = vpop.f32.mrf.mxu0
    %v3530 = vadd.f32 %v3144, %v3529
    %3531 = vmatmul.bf16.gmra.mxu0 %v3058
    %v3532 = vpop.f32.mrf.mxu0
    %v3533 = vadd.f32 %v3144, %v3532
    %v3534 = vpop.f32.mrf.mxu0
    %v3535 = vadd.f32 %v3144, %v3534
    %3536 = vmatmul.bf16.gmra.mxu0 %v3062
    %v3537 = vpop.f32.mrf.mxu0
    %v3538 = vadd.f32 %v3144, %v3537
    %v3539 = vpop.f32.mrf.mxu0
    %v3540 = vadd.f32 %v3144, %v3539
    %3541 = vmatmul.bf16.gmra.mxu0 %v3066
    %v3542 = vpop.f32.mrf.mxu0
    %v3543 = vadd.f32 %v3144, %v3542
    %v3544 = vpop.f32.mrf.mxu0
    %v3545 = vadd.f32 %v3144, %v3544
    %3546 = vmatmul.bf16.gmra.mxu0 %v3070
    %v3547 = vpop.f32.mrf.mxu0
    %v3548 = vadd.f32 %v3144, %v3547
    %v3549 = vpop.f32.mrf.mxu0
    %v3550 = vadd.f32 %v3144, %v3549
    %3551 = vmatmul.bf16.gmra.mxu0 %v3074
    %v3552 = vpop.f32.mrf.mxu0
    %v3553 = vadd.f32 %v3144, %v3552
    %v3554 = vpop.f32.mrf.mxu0
    %v3555 = vadd.f32 %v3144, %v3554
    %3556 = vdwg.mxu0
    %3557 = vmatpush.bf16.msra.mxu0 %v3370
    %3558 = vmatpush.bf16.msra.mxu0 %v3368
    %3559 = vmatpush.bf16.msra.mxu0 %v3366
    %3560 = vmatpush.bf16.msra.mxu0 %v3364
    %3561 = vmatpush.bf16.msra.mxu0 %v3362
    %3562 = vmatpush.bf16.msra.mxu0 %v3360
    %3563 = vmatpush.bf16.msra.mxu0 %v3358
    %3564 = vmatpush.bf16.msra.mxu0 %v3356
    %3565 = vmatmul.bf16.gmra.mxu0 %v3015
    %v3566 = vpop.f32.mrf.mxu0
    %v3567 = vadd.f32 %v3478, %v3566
    %v3568 = vpop.f32.mrf.mxu0
    %v3569 = vadd.f32 %v3480, %v3568
    %3570 = vmatmul.bf16.gmra.mxu0 %v3019
    %v3571 = vpop.f32.mrf.mxu0
    %v3572 = vadd.f32 %v3483, %v3571
    %v3573 = vpop.f32.mrf.mxu0
    %v3574 = vadd.f32 %v3485, %v3573
    %3575 = vmatmul.bf16.gmra.mxu0 %v3023
    %v3576 = vpop.f32.mrf.mxu0
    %v3577 = vadd.f32 %v3488, %v3576
    %v3578 = vpop.f32.mrf.mxu0
    %v3579 = vadd.f32 %v3490, %v3578
    %3580 = vmatmul.bf16.gmra.mxu0 %v3027
    %v3581 = vpop.f32.mrf.mxu0
    %v3582 = vadd.f32 %v3493, %v3581
    %v3583 = vpop.f32.mrf.mxu0
    %v3584 = vadd.f32 %v3495, %v3583
    %3585 = vmatmul.bf16.gmra.mxu0 %v3031
    %v3586 = vpop.f32.mrf.mxu0
    %v3587 = vadd.f32 %v3498, %v3586
    %v3588 = vpop.f32.mrf.mxu0
    %v3589 = vadd.f32 %v3500, %v3588
    %3590 = vmatmul.bf16.gmra.mxu0 %v3035
    %v3591 = vpop.f32.mrf.mxu0
    %v3592 = vadd.f32 %v3503, %v3591
    %v3593 = vpop.f32.mrf.mxu0
    %v3594 = vadd.f32 %v3505, %v3593
    %3595 = vmatmul.bf16.gmra.mxu0 %v3039
    %v3596 = vpop.f32.mrf.mxu0
    %v3597 = vadd.f32 %v3508, %v3596
    %v3598 = vpop.f32.mrf.mxu0
    %v3599 = vadd.f32 %v3510, %v3598
    %3600 = vmatmul.bf16.gmra.mxu0 %v3043
    %v3601 = vpop.f32.mrf.mxu0
    %v3602 = vadd.f32 %v3513, %v3601
    %v3603 = vpop.f32.mrf.mxu0
    %v3604 = vadd.f32 %v3515, %v3603
    %3605 = vmatmul.bf16.gmra.mxu0 %v3047
    %v3606 = vpop.f32.mrf.mxu0
    %v3607 = vadd.f32 %v3518, %v3606
    %v3608 = vpop.f32.mrf.mxu0
    %v3609 = vadd.f32 %v3520, %v3608
    %3610 = vmatmul.bf16.gmra.mxu0 %v3051
    %v3611 = vpop.f32.mrf.mxu0
    %v3612 = vadd.f32 %v3523, %v3611
    %v3613 = vpop.f32.mrf.mxu0
    %v3614 = vadd.f32 %v3525, %v3613
    %3615 = vmatmul.bf16.gmra.mxu0 %v3055
    %v3616 = vpop.f32.mrf.mxu0
    %v3617 = vadd.f32 %v3528, %v3616
    %v3618 = vpop.f32.mrf.mxu0
    %v3619 = vadd.f32 %v3530, %v3618
    %3620 = vmatmul.bf16.gmra.mxu0 %v3059
    %v3621 = vpop.f32.mrf.mxu0
    %v3622 = vadd.f32 %v3533, %v3621
    %v3623 = vpop.f32.mrf.mxu0
    %v3624 = vadd.f32 %v3535, %v3623
    %3625 = vmatmul.bf16.gmra.mxu0 %v3063
    %v3626 = vpop.f32.mrf.mxu0
    %v3627 = vadd.f32 %v3538, %v3626
    %v3628 = vpop.f32.mrf.mxu0
    %v3629 = vadd.f32 %v3540, %v3628
    %3630 = vmatmul.bf16.gmra.mxu0 %v3067
    %v3631 = vpop.f32.mrf.mxu0
    %v3632 = vadd.f32 %v3543, %v3631
    %v3633 = vpop.f32.mrf.mxu0
    %v3634 = vadd.f32 %v3545, %v3633
    %3635 = vmatmul.bf16.gmra.mxu0 %v3071
    %v3636 = vpop.f32.mrf.mxu0
    %v3637 = vadd.f32 %v3548, %v3636
    %v3638 = vpop.f32.mrf.mxu0
    %v3639 = vadd.f32 %v3550, %v3638
    %3640 = vmatmul.bf16.gmra.mxu0 %v3075
    %v3641 = vpop.f32.mrf.mxu0
    %v3642 = vadd.f32 %v3553, %v3641
    %v3643 = vpop.f32.mrf.mxu0
    %v3644 = vadd.f32 %v3555, %v3643
    %3645 = vdwg.mxu0
    %3646 = vmatpush.bf16.msra.mxu0 %v3386
    %3647 = vmatpush.bf16.msra.mxu0 %v3384
    %3648 = vmatpush.bf16.msra.mxu0 %v3382
    %3649 = vmatpush.bf16.msra.mxu0 %v3380
    %3650 = vmatpush.bf16.msra.mxu0 %v3378
    %3651 = vmatpush.bf16.msra.mxu0 %v3376
    %3652 = vmatpush.bf16.msra.mxu0 %v3374
    %3653 = vmatpush.bf16.msra.mxu0 %v3372
    %3654 = vmatmul.bf16.gmra.mxu0 %v3016
    %v3655 = vpop.f32.mrf.mxu0
    %v3656 = vadd.f32 %v3567, %v3655
    %v3657 = vpop.f32.mrf.mxu0
    %v3658 = vadd.f32 %v3569, %v3657
    %3659 = vmatmul.bf16.gmra.mxu0 %v3020
    %v3660 = vpop.f32.mrf.mxu0
    %v3661 = vadd.f32 %v3572, %v3660
    %v3662 = vpop.f32.mrf.mxu0
    %v3663 = vadd.f32 %v3574, %v3662
    %3664 = vmatmul.bf16.gmra.mxu0 %v3024
    %v3665 = vpop.f32.mrf.mxu0
    %v3666 = vadd.f32 %v3577, %v3665
    %v3667 = vpop.f32.mrf.mxu0
    %v3668 = vadd.f32 %v3579, %v3667
    %3669 = vmatmul.bf16.gmra.mxu0 %v3028
    %v3670 = vpop.f32.mrf.mxu0
    %v3671 = vadd.f32 %v3582, %v3670
    %v3672 = vpop.f32.mrf.mxu0
    %v3673 = vadd.f32 %v3584, %v3672
    %3674 = vmatmul.bf16.gmra.mxu0 %v3032
    %v3675 = vpop.f32.mrf.mxu0
    %v3676 = vadd.f32 %v3587, %v3675
    %v3677 = vpop.f32.mrf.mxu0
    %v3678 = vadd.f32 %v3589, %v3677
    %3679 = vmatmul.bf16.gmra.mxu0 %v3036
    %v3680 = vpop.f32.mrf.mxu0
    %v3681 = vadd.f32 %v3592, %v3680
    %v3682 = vpop.f32.mrf.mxu0
    %v3683 = vadd.f32 %v3594, %v3682
    %3684 = vmatmul.bf16.gmra.mxu0 %v3040
    %v3685 = vpop.f32.mrf.mxu0
    %v3686 = vadd.f32 %v3597, %v3685
    %v3687 = vpop.f32.mrf.mxu0
    %v3688 = vadd.f32 %v3599, %v3687
    %3689 = vmatmul.bf16.gmra.mxu0 %v3044
    %v3690 = vpop.f32.mrf.mxu0
    %v3691 = vadd.f32 %v3602, %v3690
    %v3692 = vpop.f32.mrf.mxu0
    %v3693 = vadd.f32 %v3604, %v3692
    %3694 = vmatmul.bf16.gmra.mxu0 %v3048
    %v3695 = vpop.f32.mrf.mxu0
    %v3696 = vadd.f32 %v3607, %v3695
    %v3697 = vpop.f32.mrf.mxu0
    %v3698 = vadd.f32 %v3609, %v3697
    %3699 = vmatmul.bf16.gmra.mxu0 %v3052
    %v3700 = vpop.f32.mrf.mxu0
    %v3701 = vadd.f32 %v3612, %v3700
    %v3702 = vpop.f32.mrf.mxu0
    %v3703 = vadd.f32 %v3614, %v3702
    %3704 = vmatmul.bf16.gmra.mxu0 %v3056
    %v3705 = vpop.f32.mrf.mxu0
    %v3706 = vadd.f32 %v3617, %v3705
    %v3707 = vpop.f32.mrf.mxu0
    %v3708 = vadd.f32 %v3619, %v3707
    %3709 = vmatmul.bf16.gmra.mxu0 %v3060
    %v3710 = vpop.f32.mrf.mxu0
    %v3711 = vadd.f32 %v3622, %v3710
    %v3712 = vpop.f32.mrf.mxu0
    %v3713 = vadd.f32 %v3624, %v3712
    %3714 = vmatmul.bf16.gmra.mxu0 %v3064
    %v3715 = vpop.f32.mrf.mxu0
    %v3716 = vadd.f32 %v3627, %v3715
    %v3717 = vpop.f32.mrf.mxu0
    %v3718 = vadd.f32 %v3629, %v3717
    %3719 = vmatmul.bf16.gmra.mxu0 %v3068
    %v3720 = vpop.f32.mrf.mxu0
    %v3721 = vadd.f32 %v3632, %v3720
    %v3722 = vpop.f32.mrf.mxu0
    %v3723 = vadd.f32 %v3634, %v3722
    %3724 = vmatmul.bf16.gmra.mxu0 %v3072
    %v3725 = vpop.f32.mrf.mxu0
    %v3726 = vadd.f32 %v3637, %v3725
    %v3727 = vpop.f32.mrf.mxu0
    %v3728 = vadd.f32 %v3639, %v3727
    %3729 = vmatmul.bf16.gmra.mxu0 %v3076
    %v3730 = vpop.f32.mrf.mxu0
    %v3731 = vadd.f32 %v3642, %v3730
    %v3732 = vpop.f32.mrf.mxu0
    %v3733 = vadd.f32 %v3644, %v3732
    %3734 = vdwg.mxu0
    %3735 = vmatpush.bf16.msra.mxu0 %v3402
    %3736 = vmatpush.bf16.msra.mxu0 %v3400
    %3737 = vmatpush.bf16.msra.mxu0 %v3398
    %3738 = vmatpush.bf16.msra.mxu0 %v3396
    %3739 = vmatpush.bf16.msra.mxu0 %v3394
    %3740 = vmatpush.bf16.msra.mxu0 %v3392
    %3741 = vmatpush.bf16.msra.mxu0 %v3390
    %3742 = vmatpush.bf16.msra.mxu0 %v3388
    %3743 = vmatmul.bf16.gmra.mxu0 %v3017
    %v3744 = vpop.f32.mrf.mxu0
    %v3745 = vadd.f32 %v3656, %v3744
    %v3746 = vpop.f32.mrf.mxu0
    %v3747 = vadd.f32 %v3658, %v3746
    %3748 = vmatmul.bf16.gmra.mxu0 %v3021
    %v3749 = vpop.f32.mrf.mxu0
    %v3750 = vadd.f32 %v3661, %v3749
    %v3751 = vpop.f32.mrf.mxu0
    %v3752 = vadd.f32 %v3663, %v3751
    %3753 = vmatmul.bf16.gmra.mxu0 %v3025
    %v3754 = vpop.f32.mrf.mxu0
    %v3755 = vadd.f32 %v3666, %v3754
    %v3756 = vpop.f32.mrf.mxu0
    %v3757 = vadd.f32 %v3668, %v3756
    %3758 = vmatmul.bf16.gmra.mxu0 %v3029
    %v3759 = vpop.f32.mrf.mxu0
    %v3760 = vadd.f32 %v3671, %v3759
    %v3761 = vpop.f32.mrf.mxu0
    %v3762 = vadd.f32 %v3673, %v3761
    %3763 = vmatmul.bf16.gmra.mxu0 %v3033
    %v3764 = vpop.f32.mrf.mxu0
    %v3765 = vadd.f32 %v3676, %v3764
    %v3766 = vpop.f32.mrf.mxu0
    %v3767 = vadd.f32 %v3678, %v3766
    %3768 = vmatmul.bf16.gmra.mxu0 %v3037
    %v3769 = vpop.f32.mrf.mxu0
    %v3770 = vadd.f32 %v3681, %v3769
    %v3771 = vpop.f32.mrf.mxu0
    %v3772 = vadd.f32 %v3683, %v3771
    %3773 = vmatmul.bf16.gmra.mxu0 %v3041
    %v3774 = vpop.f32.mrf.mxu0
    %v3775 = vadd.f32 %v3686, %v3774
    %v3776 = vpop.f32.mrf.mxu0
    %v3777 = vadd.f32 %v3688, %v3776
    %3778 = vmatmul.bf16.gmra.mxu0 %v3045
    %v3779 = vpop.f32.mrf.mxu0
    %v3780 = vadd.f32 %v3691, %v3779
    %v3781 = vpop.f32.mrf.mxu0
    %v3782 = vadd.f32 %v3693, %v3781
    %3783 = vmatmul.bf16.gmra.mxu0 %v3049
    %v3784 = vpop.f32.mrf.mxu0
    %v3785 = vadd.f32 %v3696, %v3784
    %v3786 = vpop.f32.mrf.mxu0
    %v3787 = vadd.f32 %v3698, %v3786
    %3788 = vmatmul.bf16.gmra.mxu0 %v3053
    %v3789 = vpop.f32.mrf.mxu0
    %v3790 = vadd.f32 %v3701, %v3789
    %v3791 = vpop.f32.mrf.mxu0
    %v3792 = vadd.f32 %v3703, %v3791
    %3793 = vmatmul.bf16.gmra.mxu0 %v3057
    %v3794 = vpop.f32.mrf.mxu0
    %v3795 = vadd.f32 %v3706, %v3794
    %v3796 = vpop.f32.mrf.mxu0
    %v3797 = vadd.f32 %v3708, %v3796
    %3798 = vmatmul.bf16.gmra.mxu0 %v3061
    %v3799 = vpop.f32.mrf.mxu0
    %v3800 = vadd.f32 %v3711, %v3799
    %v3801 = vpop.f32.mrf.mxu0
    %v3802 = vadd.f32 %v3713, %v3801
    %3803 = vmatmul.bf16.gmra.mxu0 %v3065
    %v3804 = vpop.f32.mrf.mxu0
    %v3805 = vadd.f32 %v3716, %v3804
    %v3806 = vpop.f32.mrf.mxu0
    %v3807 = vadd.f32 %v3718, %v3806
    %3808 = vmatmul.bf16.gmra.mxu0 %v3069
    %v3809 = vpop.f32.mrf.mxu0
    %v3810 = vadd.f32 %v3721, %v3809
    %v3811 = vpop.f32.mrf.mxu0
    %v3812 = vadd.f32 %v3723, %v3811
    %3813 = vmatmul.bf16.gmra.mxu0 %v3073
    %v3814 = vpop.f32.mrf.mxu0
    %v3815 = vadd.f32 %v3726, %v3814
    %v3816 = vpop.f32.mrf.mxu0
    %v3817 = vadd.f32 %v3728, %v3816
    %3818 = vmatmul.bf16.gmra.mxu0 %v3077
    %v3819 = vpop.f32.mrf.mxu0
    %v3820 = vadd.f32 %v3731, %v3819
    %v3821 = vpop.f32.mrf.mxu0
    %v3822 = vadd.f32 %v3733, %v3821
    %3823 = vdwg.mxu0
    %3824 = vmatpush.bf16.msra.mxu0 %v3355
    %3825 = vmatpush.bf16.msra.mxu0 %v3353
    %3826 = vmatpush.bf16.msra.mxu0 %v3351
    %3827 = vmatpush.bf16.msra.mxu0 %v3349
    %3828 = vmatpush.bf16.msra.mxu0 %v3347
    %3829 = vmatpush.bf16.msra.mxu0 %v3345
    %3830 = vmatpush.bf16.msra.mxu0 %v3343
    %3831 = vmatpush.bf16.msra.mxu0 %v3341
    %3832 = vmatmul.bf16.gmra.mxu0 %v3014
    %v3833 = vpop.f32.mrf.mxu0
    %v3834 = vadd.f32 %v3145, %v3833
    %v3835 = vpop.f32.mrf.mxu0
    %v3836 = vadd.f32 %v3145, %v3835
    %3837 = vmatmul.bf16.gmra.mxu0 %v3018
    %v3838 = vpop.f32.mrf.mxu0
    %v3839 = vadd.f32 %v3145, %v3838
    %v3840 = vpop.f32.mrf.mxu0
    %v3841 = vadd.f32 %v3145, %v3840
    %3842 = vmatmul.bf16.gmra.mxu0 %v3022
    %v3843 = vpop.f32.mrf.mxu0
    %v3844 = vadd.f32 %v3145, %v3843
    %v3845 = vpop.f32.mrf.mxu0
    %v3846 = vadd.f32 %v3145, %v3845
    %3847 = vmatmul.bf16.gmra.mxu0 %v3026
    %v3848 = vpop.f32.mrf.mxu0
    %v3849 = vadd.f32 %v3145, %v3848
    %v3850 = vpop.f32.mrf.mxu0
    %v3851 = vadd.f32 %v3145, %v3850
    %3852 = vmatmul.bf16.gmra.mxu0 %v3030
    %v3853 = vpop.f32.mrf.mxu0
    %v3854 = vadd.f32 %v3145, %v3853
    %v3855 = vpop.f32.mrf.mxu0
    %v3856 = vadd.f32 %v3145, %v3855
    %3857 = vmatmul.bf16.gmra.mxu0 %v3034
    %v3858 = vpop.f32.mrf.mxu0
    %v3859 = vadd.f32 %v3145, %v3858
    %v3860 = vpop.f32.mrf.mxu0
    %v3861 = vadd.f32 %v3145, %v3860
    %3862 = vmatmul.bf16.gmra.mxu0 %v3038
    %v3863 = vpop.f32.mrf.mxu0
    %v3864 = vadd.f32 %v3145, %v3863
    %v3865 = vpop.f32.mrf.mxu0
    %v3866 = vadd.f32 %v3145, %v3865
    %3867 = vmatmul.bf16.gmra.mxu0 %v3042
    %v3868 = vpop.f32.mrf.mxu0
    %v3869 = vadd.f32 %v3145, %v3868
    %v3870 = vpop.f32.mrf.mxu0
    %v3871 = vadd.f32 %v3145, %v3870
    %3872 = vmatmul.bf16.gmra.mxu0 %v3046
    %v3873 = vpop.f32.mrf.mxu0
    %v3874 = vadd.f32 %v3145, %v3873
    %v3875 = vpop.f32.mrf.mxu0
    %v3876 = vadd.f32 %v3145, %v3875
    %3877 = vmatmul.bf16.gmra.mxu0 %v3050
    %v3878 = vpop.f32.mrf.mxu0
    %v3879 = vadd.f32 %v3145, %v3878
    %v3880 = vpop.f32.mrf.mxu0
    %v3881 = vadd.f32 %v3145, %v3880
    %3882 = vmatmul.bf16.gmra.mxu0 %v3054
    %v3883 = vpop.f32.mrf.mxu0
    %v3884 = vadd.f32 %v3145, %v3883
    %v3885 = vpop.f32.mrf.mxu0
    %v3886 = vadd.f32 %v3145, %v3885
    %3887 = vmatmul.bf16.gmra.mxu0 %v3058
    %v3888 = vpop.f32.mrf.mxu0
    %v3889 = vadd.f32 %v3145, %v3888
    %v3890 = vpop.f32.mrf.mxu0
    %v3891 = vadd.f32 %v3145, %v3890
    %3892 = vmatmul.bf16.gmra.mxu0 %v3062
    %v3893 = vpop.f32.mrf.mxu0
    %v3894 = vadd.f32 %v3145, %v3893
    %v3895 = vpop.f32.mrf.mxu0
    %v3896 = vadd.f32 %v3145, %v3895
    %3897 = vmatmul.bf16.gmra.mxu0 %v3066
    %v3898 = vpop.f32.mrf.mxu0
    %v3899 = vadd.f32 %v3145, %v3898
    %v3900 = vpop.f32.mrf.mxu0
    %v3901 = vadd.f32 %v3145, %v3900
    %3902 = vmatmul.bf16.gmra.mxu0 %v3070
    %v3903 = vpop.f32.mrf.mxu0
    %v3904 = vadd.f32 %v3145, %v3903
    %v3905 = vpop.f32.mrf.mxu0
    %v3906 = vadd.f32 %v3145, %v3905
    %3907 = vmatmul.bf16.gmra.mxu0 %v3074
    %v3908 = vpop.f32.mrf.mxu0
    %v3909 = vadd.f32 %v3145, %v3908
    %v3910 = vpop.f32.mrf.mxu0
    %v3911 = vadd.f32 %v3145, %v3910
    %3912 = vdwg.mxu0
    %3913 = vmatpush.bf16.msra.mxu0 %v3371
    %3914 = vmatpush.bf16.msra.mxu0 %v3369
    %3915 = vmatpush.bf16.msra.mxu0 %v3367
    %3916 = vmatpush.bf16.msra.mxu0 %v3365
    %3917 = vmatpush.bf16.msra.mxu0 %v3363
    %3918 = vmatpush.bf16.msra.mxu0 %v3361
    %3919 = vmatpush.bf16.msra.mxu0 %v3359
    %3920 = vmatpush.bf16.msra.mxu0 %v3357
    %3921 = vmatmul.bf16.gmra.mxu0 %v3015
    %v3922 = vpop.f32.mrf.mxu0
    %v3923 = vadd.f32 %v3834, %v3922
    %v3924 = vpop.f32.mrf.mxu0
    %v3925 = vadd.f32 %v3836, %v3924
    %3926 = vmatmul.bf16.gmra.mxu0 %v3019
    %v3927 = vpop.f32.mrf.mxu0
    %v3928 = vadd.f32 %v3839, %v3927
    %v3929 = vpop.f32.mrf.mxu0
    %v3930 = vadd.f32 %v3841, %v3929
    %3931 = vmatmul.bf16.gmra.mxu0 %v3023
    %v3932 = vpop.f32.mrf.mxu0
    %v3933 = vadd.f32 %v3844, %v3932
    %v3934 = vpop.f32.mrf.mxu0
    %v3935 = vadd.f32 %v3846, %v3934
    %3936 = vmatmul.bf16.gmra.mxu0 %v3027
    %v3937 = vpop.f32.mrf.mxu0
    %v3938 = vadd.f32 %v3849, %v3937
    %v3939 = vpop.f32.mrf.mxu0
    %v3940 = vadd.f32 %v3851, %v3939
    %3941 = vmatmul.bf16.gmra.mxu0 %v3031
    %v3942 = vpop.f32.mrf.mxu0
    %v3943 = vadd.f32 %v3854, %v3942
    %v3944 = vpop.f32.mrf.mxu0
    %v3945 = vadd.f32 %v3856, %v3944
    %3946 = vmatmul.bf16.gmra.mxu0 %v3035
    %v3947 = vpop.f32.mrf.mxu0
    %v3948 = vadd.f32 %v3859, %v3947
    %v3949 = vpop.f32.mrf.mxu0
    %v3950 = vadd.f32 %v3861, %v3949
    %3951 = vmatmul.bf16.gmra.mxu0 %v3039
    %v3952 = vpop.f32.mrf.mxu0
    %v3953 = vadd.f32 %v3864, %v3952
    %v3954 = vpop.f32.mrf.mxu0
    %v3955 = vadd.f32 %v3866, %v3954
    %3956 = vmatmul.bf16.gmra.mxu0 %v3043
    %v3957 = vpop.f32.mrf.mxu0
    %v3958 = vadd.f32 %v3869, %v3957
    %v3959 = vpop.f32.mrf.mxu0
    %v3960 = vadd.f32 %v3871, %v3959
    %3961 = vmatmul.bf16.gmra.mxu0 %v3047
    %v3962 = vpop.f32.mrf.mxu0
    %v3963 = vadd.f32 %v3874, %v3962
    %v3964 = vpop.f32.mrf.mxu0
    %v3965 = vadd.f32 %v3876, %v3964
    %3966 = vmatmul.bf16.gmra.mxu0 %v3051
    %v3967 = vpop.f32.mrf.mxu0
    %v3968 = vadd.f32 %v3879, %v3967
    %v3969 = vpop.f32.mrf.mxu0
    %v3970 = vadd.f32 %v3881, %v3969
    %3971 = vmatmul.bf16.gmra.mxu0 %v3055
    %v3972 = vpop.f32.mrf.mxu0
    %v3973 = vadd.f32 %v3884, %v3972
    %v3974 = vpop.f32.mrf.mxu0
    %v3975 = vadd.f32 %v3886, %v3974
    %3976 = vmatmul.bf16.gmra.mxu0 %v3059
    %v3977 = vpop.f32.mrf.mxu0
    %v3978 = vadd.f32 %v3889, %v3977
    %v3979 = vpop.f32.mrf.mxu0
    %v3980 = vadd.f32 %v3891, %v3979
    %3981 = vmatmul.bf16.gmra.mxu0 %v3063
    %v3982 = vpop.f32.mrf.mxu0
    %v3983 = vadd.f32 %v3894, %v3982
    %v3984 = vpop.f32.mrf.mxu0
    %v3985 = vadd.f32 %v3896, %v3984
    %3986 = vmatmul.bf16.gmra.mxu0 %v3067
    %v3987 = vpop.f32.mrf.mxu0
    %v3988 = vadd.f32 %v3899, %v3987
    %v3989 = vpop.f32.mrf.mxu0
    %v3990 = vadd.f32 %v3901, %v3989
    %3991 = vmatmul.bf16.gmra.mxu0 %v3071
    %v3992 = vpop.f32.mrf.mxu0
    %v3993 = vadd.f32 %v3904, %v3992
    %v3994 = vpop.f32.mrf.mxu0
    %v3995 = vadd.f32 %v3906, %v3994
    %3996 = vmatmul.bf16.gmra.mxu0 %v3075
    %v3997 = vpop.f32.mrf.mxu0
    %v3998 = vadd.f32 %v3909, %v3997
    %v3999 = vpop.f32.mrf.mxu0
    %v4000 = vadd.f32 %v3911, %v3999
    %4001 = vdwg.mxu0
    %4002 = vmatpush.bf16.msra.mxu0 %v3387
    %4003 = vmatpush.bf16.msra.mxu0 %v3385
    %4004 = vmatpush.bf16.msra.mxu0 %v3383
    %4005 = vmatpush.bf16.msra.mxu0 %v3381
    %4006 = vmatpush.bf16.msra.mxu0 %v3379
    %4007 = vmatpush.bf16.msra.mxu0 %v3377
    %4008 = vmatpush.bf16.msra.mxu0 %v3375
    %4009 = vmatpush.bf16.msra.mxu0 %v3373
    %4010 = vmatmul.bf16.gmra.mxu0 %v3016
    %v4011 = vpop.f32.mrf.mxu0
    %v4012 = vadd.f32 %v3923, %v4011
    %v4013 = vpop.f32.mrf.mxu0
    %v4014 = vadd.f32 %v3925, %v4013
    %4015 = vmatmul.bf16.gmra.mxu0 %v3020
    %v4016 = vpop.f32.mrf.mxu0
    %v4017 = vadd.f32 %v3928, %v4016
    %v4018 = vpop.f32.mrf.mxu0
    %v4019 = vadd.f32 %v3930, %v4018
    %4020 = vmatmul.bf16.gmra.mxu0 %v3024
    %v4021 = vpop.f32.mrf.mxu0
    %v4022 = vadd.f32 %v3933, %v4021
    %v4023 = vpop.f32.mrf.mxu0
    %v4024 = vadd.f32 %v3935, %v4023
    %4025 = vmatmul.bf16.gmra.mxu0 %v3028
    %v4026 = vpop.f32.mrf.mxu0
    %v4027 = vadd.f32 %v3938, %v4026
    %v4028 = vpop.f32.mrf.mxu0
    %v4029 = vadd.f32 %v3940, %v4028
    %4030 = vmatmul.bf16.gmra.mxu0 %v3032
    %v4031 = vpop.f32.mrf.mxu0
    %v4032 = vadd.f32 %v3943, %v4031
    %v4033 = vpop.f32.mrf.mxu0
    %v4034 = vadd.f32 %v3945, %v4033
    %4035 = vmatmul.bf16.gmra.mxu0 %v3036
    %v4036 = vpop.f32.mrf.mxu0
    %v4037 = vadd.f32 %v3948, %v4036
    %v4038 = vpop.f32.mrf.mxu0
    %v4039 = vadd.f32 %v3950, %v4038
    %4040 = vmatmul.bf16.gmra.mxu0 %v3040
    %v4041 = vpop.f32.mrf.mxu0
    %v4042 = vadd.f32 %v3953, %v4041
    %v4043 = vpop.f32.mrf.mxu0
    %v4044 = vadd.f32 %v3955, %v4043
    %4045 = vmatmul.bf16.gmra.mxu0 %v3044
    %v4046 = vpop.f32.mrf.mxu0
    %v4047 = vadd.f32 %v3958, %v4046
    %v4048 = vpop.f32.mrf.mxu0
    %v4049 = vadd.f32 %v3960, %v4048
    %4050 = vmatmul.bf16.gmra.mxu0 %v3048
    %v4051 = vpop.f32.mrf.mxu0
    %v4052 = vadd.f32 %v3963, %v4051
    %v4053 = vpop.f32.mrf.mxu0
    %v4054 = vadd.f32 %v3965, %v4053
    %4055 = vmatmul.bf16.gmra.mxu0 %v3052
    %v4056 = vpop.f32.mrf.mxu0
    %v4057 = vadd.f32 %v3968, %v4056
    %v4058 = vpop.f32.mrf.mxu0
    %v4059 = vadd.f32 %v3970, %v4058
    %4060 = vmatmul.bf16.gmra.mxu0 %v3056
    %v4061 = vpop.f32.mrf.mxu0
    %v4062 = vadd.f32 %v3973, %v4061
    %v4063 = vpop.f32.mrf.mxu0
    %v4064 = vadd.f32 %v3975, %v4063
    %4065 = vmatmul.bf16.gmra.mxu0 %v3060
    %v4066 = vpop.f32.mrf.mxu0
    %v4067 = vadd.f32 %v3978, %v4066
    %v4068 = vpop.f32.mrf.mxu0
    %v4069 = vadd.f32 %v3980, %v4068
    %4070 = vmatmul.bf16.gmra.mxu0 %v3064
    %v4071 = vpop.f32.mrf.mxu0
    %v4072 = vadd.f32 %v3983, %v4071
    %v4073 = vpop.f32.mrf.mxu0
    %v4074 = vadd.f32 %v3985, %v4073
    %4075 = vmatmul.bf16.gmra.mxu0 %v3068
    %v4076 = vpop.f32.mrf.mxu0
    %v4077 = vadd.f32 %v3988, %v4076
    %v4078 = vpop.f32.mrf.mxu0
    %v4079 = vadd.f32 %v3990, %v4078
    %4080 = vmatmul.bf16.gmra.mxu0 %v3072
    %v4081 = vpop.f32.mrf.mxu0
    %v4082 = vadd.f32 %v3993, %v4081
    %v4083 = vpop.f32.mrf.mxu0
    %v4084 = vadd.f32 %v3995, %v4083
    %4085 = vmatmul.bf16.gmra.mxu0 %v3076
    %v4086 = vpop.f32.mrf.mxu0
    %v4087 = vadd.f32 %v3998, %v4086
    %v4088 = vpop.f32.mrf.mxu0
    %v4089 = vadd.f32 %v4000, %v4088
    %4090 = vdwg.mxu0
    %4091 = vmatpush.bf16.msra.mxu0 %v3403
    %4092 = vmatpush.bf16.msra.mxu0 %v3401
    %4093 = vmatpush.bf16.msra.mxu0 %v3399
    %4094 = vmatpush.bf16.msra.mxu0 %v3397
    %4095 = vmatpush.bf16.msra.mxu0 %v3395
    %4096 = vmatpush.bf16.msra.mxu0 %v3393
    %4097 = vmatpush.bf16.msra.mxu0 %v3391
    %4098 = vmatpush.bf16.msra.mxu0 %v3389
    %4099 = vmatmul.bf16.gmra.mxu0 %v3017
    %v4100 = vpop.f32.mrf.mxu0
    %v4101 = vadd.f32 %v4012, %v4100
    %v4102 = vpop.f32.mrf.mxu0
    %v4103 = vadd.f32 %v4014, %v4102
    %4104 = vmatmul.bf16.gmra.mxu0 %v3021
    %v4105 = vpop.f32.mrf.mxu0
    %v4106 = vadd.f32 %v4017, %v4105
    %v4107 = vpop.f32.mrf.mxu0
    %v4108 = vadd.f32 %v4019, %v4107
    %4109 = vmatmul.bf16.gmra.mxu0 %v3025
    %v4110 = vpop.f32.mrf.mxu0
    %v4111 = vadd.f32 %v4022, %v4110
    %v4112 = vpop.f32.mrf.mxu0
    %v4113 = vadd.f32 %v4024, %v4112
    %4114 = vmatmul.bf16.gmra.mxu0 %v3029
    %v4115 = vpop.f32.mrf.mxu0
    %v4116 = vadd.f32 %v4027, %v4115
    %v4117 = vpop.f32.mrf.mxu0
    %v4118 = vadd.f32 %v4029, %v4117
    %4119 = vmatmul.bf16.gmra.mxu0 %v3033
    %v4120 = vpop.f32.mrf.mxu0
    %v4121 = vadd.f32 %v4032, %v4120
    %v4122 = vpop.f32.mrf.mxu0
    %v4123 = vadd.f32 %v4034, %v4122
    %4124 = vmatmul.bf16.gmra.mxu0 %v3037
    %v4125 = vpop.f32.mrf.mxu0
    %v4126 = vadd.f32 %v4037, %v4125
    %v4127 = vpop.f32.mrf.mxu0
    %v4128 = vadd.f32 %v4039, %v4127
    %4129 = vmatmul.bf16.gmra.mxu0 %v3041
    %v4130 = vpop.f32.mrf.mxu0
    %v4131 = vadd.f32 %v4042, %v4130
    %v4132 = vpop.f32.mrf.mxu0
    %v4133 = vadd.f32 %v4044, %v4132
    %4134 = vmatmul.bf16.gmra.mxu0 %v3045
    %v4135 = vpop.f32.mrf.mxu0
    %v4136 = vadd.f32 %v4047, %v4135
    %v4137 = vpop.f32.mrf.mxu0
    %v4138 = vadd.f32 %v4049, %v4137
    %4139 = vmatmul.bf16.gmra.mxu0 %v3049
    %v4140 = vpop.f32.mrf.mxu0
    %v4141 = vadd.f32 %v4052, %v4140
    %v4142 = vpop.f32.mrf.mxu0
    %v4143 = vadd.f32 %v4054, %v4142
    %4144 = vmatmul.bf16.gmra.mxu0 %v3053
    %v4145 = vpop.f32.mrf.mxu0
    %v4146 = vadd.f32 %v4057, %v4145
    %v4147 = vpop.f32.mrf.mxu0
    %v4148 = vadd.f32 %v4059, %v4147
    %4149 = vmatmul.bf16.gmra.mxu0 %v3057
    %v4150 = vpop.f32.mrf.mxu0
    %v4151 = vadd.f32 %v4062, %v4150
    %v4152 = vpop.f32.mrf.mxu0
    %v4153 = vadd.f32 %v4064, %v4152
    %4154 = vmatmul.bf16.gmra.mxu0 %v3061
    %v4155 = vpop.f32.mrf.mxu0
    %v4156 = vadd.f32 %v4067, %v4155
    %v4157 = vpop.f32.mrf.mxu0
    %v4158 = vadd.f32 %v4069, %v4157
    %4159 = vmatmul.bf16.gmra.mxu0 %v3065
    %v4160 = vpop.f32.mrf.mxu0
    %v4161 = vadd.f32 %v4072, %v4160
    %v4162 = vpop.f32.mrf.mxu0
    %v4163 = vadd.f32 %v4074, %v4162
    %4164 = vmatmul.bf16.gmra.mxu0 %v3069
    %v4165 = vpop.f32.mrf.mxu0
    %v4166 = vadd.f32 %v4077, %v4165
    %v4167 = vpop.f32.mrf.mxu0
    %v4168 = vadd.f32 %v4079, %v4167
    %4169 = vmatmul.bf16.gmra.mxu0 %v3073
    %v4170 = vpop.f32.mrf.mxu0
    %v4171 = vadd.f32 %v4082, %v4170
    %v4172 = vpop.f32.mrf.mxu0
    %v4173 = vadd.f32 %v4084, %v4172
    %4174 = vmatmul.bf16.gmra.mxu0 %v3077
    %v4175 = vpop.f32.mrf.mxu0
    %v4176 = vadd.f32 %v4087, %v4175
    %v4177 = vpop.f32.mrf.mxu0
    %v4178 = vadd.f32 %v4089, %v4177
    %4179 = vdwg.mxu0
    %v4180 = vtanh.pop %v3745
    %v4181 = vtanh.pop %v4101
    %v4182 = vtanh.pop %v3747
    %v4183 = vtanh.pop %v4103
    %v4184 = vtanh.pop %v3750
    %v4185 = vtanh.pop %v4106
    %v4186 = vtanh.pop %v3752
    %v4187 = vtanh.pop %v4108
    %v4188 = vtanh.pop %v3755
    %v4189 = vtanh.pop %v4111
    %v4190 = vtanh.pop %v3757
    %v4191 = vtanh.pop %v4113
    %v4192 = vtanh.pop %v3760
    %v4193 = vtanh.pop %v4116
    %v4194 = vtanh.pop %v3762
    %v4195 = vtanh.pop %v4118
    %v4196 = vtanh.pop %v3765
    %v4197 = vtanh.pop %v4121
    %v4198 = vtanh.pop %v3767
    %v4199 = vtanh.pop %v4123
    %v4200 = vtanh.pop %v3770
    %v4201 = vtanh.pop %v4126
    %v4202 = vtanh.pop %v3772
    %v4203 = vtanh.pop %v4128
    %v4204 = vtanh.pop %v3775
    %v4205 = vtanh.pop %v4131
    %v4206 = vtanh.pop %v3777
    %v4207 = vtanh.pop %v4133
    %v4208 = vtanh.pop %v3780
    %v4209 = vtanh.pop %v4136
    %v4210 = vtanh.pop %v3782
    %v4211 = vtanh.pop %v4138
    %v4212 = vtanh.pop %v3785
    %v4213 = vtanh.pop %v4141
    %v4214 = vtanh.pop %v3787
    %v4215 = vtanh.pop %v4143
    %v4216 = vtanh.pop %v3790
    %v4217 = vtanh.pop %v4146
    %v4218 = vtanh.pop %v3792
    %v4219 = vtanh.pop %v4148
    %v4220 = vtanh.pop %v3795
    %v4221 = vtanh.pop %v4151
    %v4222 = vtanh.pop %v3797
    %v4223 = vtanh.pop %v4153
    %v4224 = vtanh.pop %v3800
    %v4225 = vtanh.pop %v4156
    %v4226 = vtanh.pop %v3802
    %v4227 = vtanh.pop %v4158
    %v4228 = vtanh.pop %v3805
    %v4229 = vtanh.pop %v4161
    %v4230 = vtanh.pop %v3807
    %v4231 = vtanh.pop %v4163
    %v4232 = vtanh.pop %v3810
    %v4233 = vtanh.pop %v4166
    %v4234 = vtanh.pop %v3812
    %v4235 = vtanh.pop %v4168
    %v4236 = vtanh.pop %v3815
    %v4237 = vtanh.pop %v4171
    %v4238 = vtanh.pop %v3817
    %v4239 = vtanh.pop %v4173
    %v4240 = vtanh.pop %v3820
    %v4241 = vtanh.pop %v4176
    %v4242 = vtanh.pop %v3822
    %v4243 = vtanh.pop %v4178
    %4244 = vst [vmem:[%s9] sm:$0xff] %v4180
    %4245 = vst [vmem:[%s9 + $0x8] sm:$0xff] %v4181
    %4246 = vst [vmem:[%s9 + $0x10] sm:$0xff] %v4182
    %4247 = vst [vmem:[%s9 + $0x18] sm:$0xff] %v4183
    %4248 = vst [vmem:[%s9 + $0x20] sm:$0xff] %v4184
    %4249 = vst [vmem:[%s9 + $0x28] sm:$0xff] %v4185
    %4250 = vst [vmem:[%s9 + $0x30] sm:$0xff] %v4186
    %4251 = vst [vmem:[%s9 + $0x38] sm:$0xff] %v4187
    %4252 = vst [vmem:[%s9 + $0x40] sm:$0xff] %v4188
    %4253 = vst [vmem:[%s9 + $0x48] sm:$0xff] %v4189
    %4254 = vst [vmem:[%s9 + $0x50] sm:$0xff] %v4190
    %4255 = vst [vmem:[%s9 + $0x58] sm:$0xff] %v4191
    %4256 = vst [vmem:[%s9 + $0x60] sm:$0xff] %v4192
    %4257 = vst [vmem:[%s9 + $0x68] sm:$0xff] %v4193
    %4258 = vst [vmem:[%s9 + $0x70] sm:$0xff] %v4194
    %4259 = vst [vmem:[%s9 + $0x78] sm:$0xff] %v4195
    %4260 = vst [vmem:[%s9 + $0x80] sm:$0xff] %v4196
    %4261 = vst [vmem:[%s9 + $0x88] sm:$0xff] %v4197
    %4262 = vst [vmem:[%s9 + $0x90] sm:$0xff] %v4198
    %4263 = vst [vmem:[%s9 + $0x98] sm:$0xff] %v4199
    %4264 = vst [vmem:[%s9 + $0xa0] sm:$0xff] %v4200
    %4265 = vst [vmem:[%s9 + $0xa8] sm:$0xff] %v4201
    %4266 = vst [vmem:[%s9 + $0xb0] sm:$0xff] %v4202
    %4267 = vst [vmem:[%s9 + $0xb8] sm:$0xff] %v4203
    %4268 = vst [vmem:[%s9 + $0xc0] sm:$0xff] %v4204
    %4269 = vst [vmem:[%s9 + $0xc8] sm:$0xff] %v4205
    %4270 = vst [vmem:[%s9 + $0xd0] sm:$0xff] %v4206
    %4271 = vst [vmem:[%s9 + $0xd8] sm:$0xff] %v4207
    %4272 = vst [vmem:[%s9 + $0xe0] sm:$0xff] %v4208
    %4273 = vst [vmem:[%s9 + $0xe8] sm:$0xff] %v4209
    %4274 = vst [vmem:[%s9 + $0xf0] sm:$0xff] %v4210
    %4275 = vst [vmem:[%s9 + $0xf8] sm:$0xff] %v4211
    %4276 = vst [vmem:[%s9 + $0x100] sm:$0xff] %v4212
    %4277 = vst [vmem:[%s9 + $0x108] sm:$0xff] %v4213
    %4278 = vst [vmem:[%s9 + $0x110] sm:$0xff] %v4214
    %4279 = vst [vmem:[%s9 + $0x118] sm:$0xff] %v4215
    %4280 = vst [vmem:[%s9 + $0x120] sm:$0xff] %v4216
    %4281 = vst [vmem:[%s9 + $0x128] sm:$0xff] %v4217
    %4282 = vst [vmem:[%s9 + $0x130] sm:$0xff] %v4218
    %4283 = vst [vmem:[%s9 + $0x138] sm:$0xff] %v4219
    %4284 = vst [vmem:[%s9 + $0x140] sm:$0xff] %v4220
    %4285 = vst [vmem:[%s9 + $0x148] sm:$0xff] %v4221
    %4286 = vst [vmem:[%s9 + $0x150] sm:$0xff] %v4222
    %4287 = vst [vmem:[%s9 + $0x158] sm:$0xff] %v4223
    %4288 = vst [vmem:[%s9 + $0x160] sm:$0xff] %v4224
    %4289 = vst [vmem:[%s9 + $0x168] sm:$0xff] %v4225
    %4290 = vst [vmem:[%s9 + $0x170] sm:$0xff] %v4226
    %4291 = vst [vmem:[%s9 + $0x178] sm:$0xff] %v4227
    %4292 = vst [vmem:[%s9 + $0x180] sm:$0xff] %v4228
    %4293 = vst [vmem:[%s9 + $0x188] sm:$0xff] %v4229
    %4294 = vst [vmem:[%s9 + $0x190] sm:$0xff] %v4230
    %4295 = vst [vmem:[%s9 + $0x198] sm:$0xff] %v4231
    %4296 = vst [vmem:[%s9 + $0x1a0] sm:$0xff] %v4232
    %4297 = vst [vmem:[%s9 + $0x1a8] sm:$0xff] %v4233
    %4298 = vst [vmem:[%s9 + $0x1b0] sm:$0xff] %v4234
    %4299 = vst [vmem:[%s9 + $0x1b8] sm:$0xff] %v4235
    %4300 = vst [vmem:[%s9 + $0x1c0] sm:$0xff] %v4236
    %4301 = vst [vmem:[%s9 + $0x1c8] sm:$0xff] %v4237
    %4302 = vst [vmem:[%s9 + $0x1d0] sm:$0xff] %v4238
    %4303 = vst [vmem:[%s9 + $0x1d8] sm:$0xff] %v4239
    %4304 = vst [vmem:[%s9 + $0x1e0] sm:$0xff] %v4240
    %4305 = vst [vmem:[%s9 + $0x1e8] sm:$0xff] %v4241
    %4306 = vst [vmem:[%s9 + $0x1f0] sm:$0xff] %v4242
    %4307 = vst [vmem:[%s9 + $0x1f8] sm:$0xff] %v4243
    // Predicated region
    $region70: #{generator_forward.1} parent=1 // pred_check
      _
    $region71: #{generator_forward.1} parent=1 // pred_check_branch
      %4309 = sbr.rel (0) target = $region73
    $region72: #{generator_forward.1} parent=1 // pred_region
      _
    $region73: #{generator_forward.1} parent=1 // pred_fallthru
      _
    // Predicated region
    $region74: #{generator_forward.1} parent=1 // pred_check
      _
    $region75: #{generator_forward.1} parent=1 // pred_check_branch
      %4311 = sbr.rel (0) target = $region77
    $region76: #{generator_forward.1} parent=1 // pred_region
      _
    $region77: #{generator_forward.1} parent=1 // pred_fallthru
      _
    %4312 = vsyncpa [#allocation3], 1
    %4313 = vsyncpa [#allocation5], 1
    %4314 = vsyncpa [#allocation8], 1
    %4315 = vsyncpa [#allocation11], 1
    %4316 = vsyncpa [#allocation14], 1

</llo_original>
